<compile_context>
chip_gen: v6e
topology: v6e:2x2x1
jax: 0.10.0
libtpu: 0.0.40
codegen_flags: <defaults>
</compile_context>

<pallas_src>
import functools
import math

import jax
import jax.numpy as jnp
from jax.experimental import pallas as pl
from jax.experimental.pallas import tpu as pltpu


# ----------------------------- fused kernel -------------------------------

def _layernorm(z, g, b, eps=1e-5):
    mu = jnp.mean(z, axis=-1, keepdims=True)
    var = jnp.mean(jnp.square(z - mu), axis=-1, keepdims=True)
    return (z - mu) * jax.lax.rsqrt(var + eps) * g + b


def _encoder_kernel(lens_ref,                                  # SMEM (B,) i32
                    x_emb_ref,                                 # (1, T, H)
                    relk_ref, relv_ref,                        # (2w+1, D)
                    wqkv_ref, bqkv_ref,                        # (1,H,3H) (1,1,3H)
                    wo_ref, bo_ref,                            # (1,H,H)  (1,1,H)
                    ln1g_ref, ln1b_ref,                        # (1,1,H)
                    w1_ref, b1_ref,                            # (1,3H,F) (1,1,F)
                    w2_ref, b2_ref,                            # (1,3F,H) (1,1,H)
                    ln2g_ref, ln2b_ref,                        # (1,1,H)
                    projw_ref, projb_ref,                      # (H,2O)   (1,2O)
                    x_out_ref, stats_ref,                      # outputs
                    x_vmem,                                    # scratch (T, H)
                    *, n_heads, window):
    b = pl.program_id(0)
    l = pl.program_id(1)
    T, H = x_vmem.shape
    D = H // n_heads
    W = 2 * window + 1
    scale = 1.0 / math.sqrt(D)

    seq_len = lens_ref[b]
    t_ids = jax.lax.broadcasted_iota(jnp.int32, (T, 1), 0)
    mask_t = (t_ids < seq_len).astype(jnp.float32)             # (T, 1)

    # layer 0: load the embedded input into the resident VMEM activation.
    @pl.when(l == 0)
    def _init():
        x_vmem[...] = x_emb_ref[0] * mask_t

    x = x_vmem[...]                                            # (T, H)

    # ---------------- relative-position multi-head self-attention ----------
    # fused QKV projection: one (T,H) @ (H,3H) matmul
    qkv = jnp.dot(x, wqkv_ref[0], preferred_element_type=jnp.float32) + bqkv_ref[0]

    ri = jax.lax.broadcasted_iota(jnp.int32, (T, T), 0)        # i (query pos)
    ci = jax.lax.broadcasted_iota(jnp.int32, (T, T), 1)        # j (key pos)
    rel = ci - ri                                              # j - i
    valid = jnp.logical_and(ri < seq_len, ci < seq_len)        # attn mask

    relk = relk_ref[...]                                       # (2w+1, D)
    relv = relv_ref[...]                                       # (2w+1, D)

    head_outs = []
    for h in range(n_heads):
        q = qkv[:, h * D:(h + 1) * D] * scale
        k = qkv[:, H + h * D:H + (h + 1) * D]
        v = qkv[:, 2 * H + h * D:2 * H + (h + 1) * D]

        # content scores (MXU)
        scores = jax.lax.dot_general(q, k, (((1,), (1,)), ((), ())),
                                     preferred_element_type=jnp.float32)  # (T,T)

        # relative key bias: compact matmul + diagonal-offset scatter
        rlog = jax.lax.dot_general(q, relk, (((1,), (1,)), ((), ())),
                                   preferred_element_type=jnp.float32)   # (T,2w+1)
        for c in range(W):
            scores = scores + jnp.where(rel == (c - window), rlog[:, c:c + 1], 0.0)

        scores = jnp.where(valid, scores, -1e4)

        # softmax with EUP reciprocal
        mx = jnp.max(scores, axis=-1, keepdims=True)
        e = jnp.exp(scores - mx)
        p = e * pl.reciprocal(jnp.sum(e, axis=-1, keepdims=True), approx=True)
        # TODO(synk): attention dropout (p_dropout) omitted -- eval mode.

        out = jnp.dot(p, v, preferred_element_type=jnp.float32)          # (T,D)

        # relative value bias: p -> relative layout (T,2w+1), one MXU matmul
        p_rel = jnp.concatenate(
            [jnp.sum(jnp.where(rel == (c - window), p, 0.0), axis=-1, keepdims=True)
             for c in range(W)], axis=-1)                                 # (T,2w+1)
        out = out + jnp.dot(p_rel, relv, preferred_element_type=jnp.float32)
        head_outs.append(out)

    attn = jnp.concatenate(head_outs, axis=-1)                            # (T,H)

    # output projection + residual + LayerNorm (fused epilogue)
    y = jnp.dot(attn, wo_ref[0], preferred_element_type=jnp.float32) + bo_ref[0]
    x = _layernorm(x + y, ln1g_ref[0], ln1b_ref[0])

    # ---------------- k=3 "same" conv FFN as one wide matmul ---------------
    def _shift3(a):
        # [a(t-1) | a(t) | a(t+1)] with zero boundary padding -> (T, 3C)
        zero = jnp.zeros((1, a.shape[1]), jnp.float32)
        prev = jnp.concatenate([zero, a[:-1, :]], axis=0)
        nxt = jnp.concatenate([a[1:, :], zero], axis=0)
        return jnp.concatenate([prev, a, nxt], axis=-1)

    xm = x * mask_t
    h1 = jnp.dot(_shift3(xm), w1_ref[0], preferred_element_type=jnp.float32) + b1_ref[0]
    h1 = jnp.maximum(h1, 0.0) * mask_t                          # relu + mask
    # TODO(synk): FFN dropout omitted -- eval mode.
    y = jnp.dot(_shift3(h1), w2_ref[0], preferred_element_type=jnp.float32) + b2_ref[0]
    x = _layernorm(x + y * mask_t, ln2g_ref[0], ln2b_ref[0])

    x_vmem[...] = x                                             # carry to next layer

    # last layer: write encoder output + fused final 1x1 projection
    @pl.when(l == pl.num_programs(1) - 1)
    def _finalize():
        xo = x * mask_t
        x_out_ref[0] = xo
        stats = (jnp.dot(xo, projw_ref[...], preferred_element_type=jnp.float32)
                 + projb_ref[...])
        stats_ref[0] = stats * mask_t


# ----------------------------- parameters ---------------------------------

def init_params(key, *, n_vocab, hidden, filter_channels, n_heads, n_layers,
                window_size, out_channels):
    D = hidden // n_heads
    L = n_layers
    ks = jax.random.split(key, 8)

    def nrm(k, shape, s):
        return jax.random.normal(k, shape, jnp.float32) * s

    return {
        "emb": nrm(ks[0], (n_vocab, hidden), hidden ** -0.5),
        # shared relative-position bias tables (heads_share + shared across layers)
        "rel_k": nrm(ks[1], (2 * window_size + 1, D), D ** -0.5),
        "rel_v": nrm(ks[2], (2 * window_size + 1, D), D ** -0.5),
        # fused QKV weight: [Wq | Wk | Wv] along the output axis
        "wqkv": nrm(ks[3], (L, hidden, 3 * hidden), 0.08),
        "bqkv": jnp.zeros((L, 1, 3 * hidden), jnp.float32),
        "wo": nrm(ks[4], (L, hidden, hidden), 0.08),
        "bo": jnp.zeros((L, 1, hidden), jnp.float32),
        "ln1_g": jnp.ones((L, 1, hidden), jnp.float32),
        "ln1_b": jnp.zeros((L, 1, hidden), jnp.float32),
        # k=3 conv taps stacked along the input axis in [t-1, t, t+1] order
        # (torch weight (Cout, Cin, 3) -> transpose(2, 1, 0).reshape(3*Cin, Cout))
        "w1": nrm(ks[5], (L, 3 * hidden, filter_channels), 0.08),
        "b1": jnp.zeros((L, 1, filter_channels), jnp.float32),
        "w2": nrm(ks[6], (L, 3 * filter_channels, hidden), 0.08),
        "b2": jnp.zeros((L, 1, hidden), jnp.float32),
        "ln2_g": jnp.ones((L, 1, hidden), jnp.float32),
        "ln2_b": jnp.zeros((L, 1, hidden), jnp.float32),
        "proj_w": nrm(ks[7], (hidden, 2 * out_channels), 0.08),
        "proj_b": jnp.zeros((1, 2 * out_channels), jnp.float32),
    }


# ------------------------------ forward ------------------------------------

def text_encoder_forward(params, tokens, x_lengths, *, hidden, filter_channels,
                         n_heads, n_layers, out_channels, window_size):
    B, T = tokens.shape
    D = hidden // n_heads
    W = 2 * window_size + 1
    lens = x_lengths.astype(jnp.int32)

    # embedding lookup (gather = JAX glue) + sqrt(H) scale
    x_emb = jnp.take(params["emb"], tokens, axis=0) * math.sqrt(hidden)  # (B,T,H)
    # TODO(synk): gin_channels=0 so the speaker-conditioning branch is absent.

    kernel = functools.partial(_encoder_kernel, n_heads=n_heads, window=window_size)

    cmap = lambda b, l, lens_ref: (b, 0, 0)     # per-batch, resident across layers
    lmap = lambda b, l, lens_ref: (l, 0, 0)     # per-layer stacked weights (streamed)
    smap = lambda b, l, lens_ref: (0, 0)        # shared / constant

    x_out, stats = pl.pallas_call(
        kernel,
        grid_spec=pltpu.PrefetchScalarGridSpec(
            num_scalar_prefetch=1,              # x_lengths -> SMEM
            grid=(B, n_layers),
            in_specs=[
                pl.BlockSpec((1, T, hidden), cmap),                     # x_emb
                pl.BlockSpec((W, D), smap),                             # rel_k
                pl.BlockSpec((W, D), smap),                             # rel_v
                pl.BlockSpec((1, hidden, 3 * hidden), lmap),            # wqkv
                pl.BlockSpec((1, 1, 3 * hidden), lmap),                 # bqkv
                pl.BlockSpec((1, hidden, hidden), lmap),                # wo
                pl.BlockSpec((1, 1, hidden), lmap),                     # bo
                pl.BlockSpec((1, 1, hidden), lmap),                     # ln1_g
                pl.BlockSpec((1, 1, hidden), lmap),                     # ln1_b
                pl.BlockSpec((1, 3 * hidden, filter_channels), lmap),   # w1
                pl.BlockSpec((1, 1, filter_channels), lmap),            # b1
                pl.BlockSpec((1, 3 * filter_channels, hidden), lmap),   # w2
                pl.BlockSpec((1, 1, hidden), lmap),                     # b2
                pl.BlockSpec((1, 1, hidden), lmap),                     # ln2_g
                pl.BlockSpec((1, 1, hidden), lmap),                     # ln2_b
                pl.BlockSpec((hidden, 2 * out_channels), smap),         # proj_w
                pl.BlockSpec((1, 2 * out_channels), smap),              # proj_b
            ],
            out_specs=[
                pl.BlockSpec((1, T, hidden), cmap),                     # encoder out
                pl.BlockSpec((1, T, 2 * out_channels), cmap),           # stats
            ],
            scratch_shapes=[pltpu.VMEM((T, hidden), jnp.float32)],      # resident x
        ),
        out_shape=(
            jax.ShapeDtypeStruct((B, T, hidden), jnp.float32),
            jax.ShapeDtypeStruct((B, T, 2 * out_channels), jnp.float32),
        ),
        compiler_params=pltpu.CompilerParams(
            dimension_semantics=("parallel", "arbitrary")),
    )(lens, x_emb,
      params["rel_k"], params["rel_v"],
      params["wqkv"], params["bqkv"], params["wo"], params["bo"],
      params["ln1_g"], params["ln1_b"],
      params["w1"], params["b1"], params["w2"], params["b2"],
      params["ln2_g"], params["ln2_b"],
      params["proj_w"], params["proj_b"])

    m_stats, logs = jnp.split(stats, 2, axis=-1)
    mask = (jnp.arange(T)[None, :] < lens[:, None]).astype(jnp.float32)

    # return in PyTorch layout: (B, C, T) and mask (B, 1, T)
    return (jnp.transpose(x_out, (0, 2, 1)),
            jnp.transpose(m_stats, (0, 2, 1)),
            jnp.transpose(logs, (0, 2, 1)),
            mask[:, None, :])


# ------------------------------- main ---------------------------------------

if __name__ == "__main__":
    # small, consistent config
    N_VOCAB = 64
    HIDDEN = 32
    FILTER = 64
    N_HEADS = 2
    N_LAYERS = 2
    WINDOW = 4
    OUT_CH = 16
    B, T = 2, 16

    key = jax.random.PRNGKey(0)
    kp, kt = jax.random.split(key)
    params = init_params(kp, n_vocab=N_VOCAB, hidden=HIDDEN,
                         filter_channels=FILTER, n_heads=N_HEADS,
                         n_layers=N_LAYERS, window_size=WINDOW,
                         out_channels=OUT_CH)

    tokens = jax.random.randint(kt, (B, T), 0, N_VOCAB, dtype=jnp.int32)
    x_lengths = jnp.array([T, 11], dtype=jnp.int32)

    x_out, m_out, logs_out, x_mask = text_encoder_forward(
        params, tokens, x_lengths, hidden=HIDDEN, filter_channels=FILTER,
        n_heads=N_HEADS, n_layers=N_LAYERS, out_channels=OUT_CH,
        window_size=WINDOW)

    jax.block_until_ready((x_out, m_out, logs_out, x_mask))
    assert x_out.shape == (B, HIDDEN, T)
    assert m_out.shape == (B, OUT_CH, T)
    assert logs_out.shape == (B, OUT_CH, T)
    assert x_mask.shape == (B, 1, T)
    assert bool(jnp.all(jnp.isfinite(x_out)))
    print("KERNEL_OK")
</pallas_src>

<mosaic_0001>
module attributes {stable_mosaic.version = 11 : i64} {
  func.func @_encoder_kernel(%arg0: i32, %arg1: i32, %arg2: memref<2xi32, #tpu.memory_space<smem>>, %arg3: memref<1x16x32xf32, #tpu.memory_space<vmem>>, %arg4: memref<9x16xf32, #tpu.memory_space<vmem>>, %arg5: memref<9x16xf32, #tpu.memory_space<vmem>>, %arg6: memref<1x32x96xf32, #tpu.memory_space<vmem>>, %arg7: memref<1x1x96xf32, #tpu.memory_space<vmem>>, %arg8: memref<1x32x32xf32, #tpu.memory_space<vmem>>, %arg9: memref<1x1x32xf32, #tpu.memory_space<vmem>>, %arg10: memref<1x1x32xf32, #tpu.memory_space<vmem>>, %arg11: memref<1x1x32xf32, #tpu.memory_space<vmem>>, %arg12: memref<1x96x64xf32, #tpu.memory_space<vmem>>, %arg13: memref<1x1x64xf32, #tpu.memory_space<vmem>>, %arg14: memref<1x192x32xf32, #tpu.memory_space<vmem>>, %arg15: memref<1x1x32xf32, #tpu.memory_space<vmem>>, %arg16: memref<1x1x32xf32, #tpu.memory_space<vmem>>, %arg17: memref<1x1x32xf32, #tpu.memory_space<vmem>>, %arg18: memref<32x32xf32, #tpu.memory_space<vmem>>, %arg19: memref<1x32xf32, #tpu.memory_space<vmem>>, %arg20: memref<1x16x32xf32, #tpu.memory_space<vmem>>, %arg21: memref<1x16x32xf32, #tpu.memory_space<vmem>>, %arg22: memref<16x32xf32, #tpu.memory_space<vmem>>) attributes {dimension_semantics = [#tpu.dimension_semantics<parallel>, #tpu.dimension_semantics<arbitrary>], iteration_bounds = array<i64: 2, 2>, scalar_prefetch = 1 : i64, scratch_operands = 1 : i64, tpu.core_type = #tpu.core_type<tc>, window_params = [{transform_indices = @transform_0, window_bounds = array<i64: 1, 16, 32>}, {pipeline_mode = #tpu.pipeline_mode<synchronous>, transform_indices = @transform_1, window_bounds = array<i64: 9, 16>}, {pipeline_mode = #tpu.pipeline_mode<synchronous>, transform_indices = @transform_2, window_bounds = array<i64: 9, 16>}, {transform_indices = @transform_3, window_bounds = array<i64: 1, 32, 96>}, {transform_indices = @transform_4, window_bounds = array<i64: 1, 1, 96>}, {transform_indices = @transform_5, window_bounds = array<i64: 1, 32, 32>}, {transform_indices = @transform_6, window_bounds = array<i64: 1, 1, 32>}, {transform_indices = @transform_7, window_bounds = array<i64: 1, 1, 32>}, {transform_indices = @transform_8, window_bounds = array<i64: 1, 1, 32>}, {transform_indices = @transform_9, window_bounds = array<i64: 1, 96, 64>}, {transform_indices = @transform_10, window_bounds = array<i64: 1, 1, 64>}, {transform_indices = @transform_11, window_bounds = array<i64: 1, 192, 32>}, {transform_indices = @transform_12, window_bounds = array<i64: 1, 1, 32>}, {transform_indices = @transform_13, window_bounds = array<i64: 1, 1, 32>}, {transform_indices = @transform_14, window_bounds = array<i64: 1, 1, 32>}, {pipeline_mode = #tpu.pipeline_mode<synchronous>, transform_indices = @transform_15, window_bounds = array<i64: 32, 32>}, {pipeline_mode = #tpu.pipeline_mode<synchronous>, transform_indices = @transform_16, window_bounds = array<i64: 1, 32>}, {transform_indices = @transform_17, window_bounds = array<i64: 1, 16, 32>}, {transform_indices = @transform_18, window_bounds = array<i64: 1, 16, 32>}]} {
    %0 = arith.index_cast %arg0 : i32 to index
    %1 = memref.load %arg2[%0] : memref<2xi32, #tpu.memory_space<smem>>
    %2 = tpu.iota {dimensions = array<i32: 0>} : vector<16x1xi32>
    %3 = vector.broadcast %1 : i32 to vector<16x1xi32>
    %4 = arith.cmpi slt, %2, %3 : vector<16x1xi32>
    %5 = arith.extui %4 : vector<16x1xi1> to vector<16x1xi32>
    %6 = arith.sitofp %5 : vector<16x1xi32> to vector<16x1xf32>
    %c0_i32 = arith.constant 0 : i32
    %7 = arith.cmpi eq, %arg1, %c0_i32 : i32
    %8 = arith.extui %7 : i1 to i32
    %c0_i32_0 = arith.constant 0 : i32
    %9 = arith.cmpi ne, %8, %c0_i32_0 : i32
    scf.if %9 {
      %c0_160 = arith.constant 0 : index
      %c0_161 = arith.constant 0 : index
      %c0_162 = arith.constant 0 : index
      %426 = vector.load %arg3[%c0_160, %c0_161, %c0_162] : memref<1x16x32xf32, #tpu.memory_space<vmem>>, vector<1x16x32xf32>
      %427 = vector.shape_cast %426 : vector<1x16x32xf32> to vector<16x32xf32>
      %428 = vector.broadcast %6 : vector<16x1xf32> to vector<16x32xf32>
      %429 = arith.mulf %427, %428 : vector<16x32xf32>
      %c0_163 = arith.constant 0 : index
      %c0_164 = arith.constant 0 : index
      %430 = vector.load %arg22[%c0_163, %c0_164] : memref<16x32xf32, #tpu.memory_space<vmem>>, vector<16x32xf32>
      tpu.vector_store %arg22[%c0_163, %c0_164], %429 {strides = array<i32>} : memref<16x32xf32, #tpu.memory_space<vmem>>, vector<16x32xf32>,
    } else {
    }
    %c0 = arith.constant 0 : index
    %c0_1 = arith.constant 0 : index
    %10 = vector.load %arg22[%c0, %c0_1] : memref<16x32xf32, #tpu.memory_space<vmem>>, vector<16x32xf32>
    %c0_2 = arith.constant 0 : index
    %c0_3 = arith.constant 0 : index
    %c0_4 = arith.constant 0 : index
    %11 = vector.load %arg6[%c0_2, %c0_3, %c0_4] : memref<1x32x96xf32, #tpu.memory_space<vmem>>, vector<1x32x96xf32>
    %12 = vector.shape_cast %11 : vector<1x32x96xf32> to vector<32x96xf32>
    %cst = arith.constant dense<0.000000e+00> : vector<16x96xf32>
    %13 = tpu.matmul %10, %12, %cst {dimension_numbers = #tpu.dot_dimension_numbers<[1], [0], [0], [1], [0, 0, 1, 1], [], []>} : vector<16x32xf32>, vector<32x96xf32>, vector<16x96xf32> -> vector<16x96xf32>
    %c0_5 = arith.constant 0 : index
    %c0_6 = arith.constant 0 : index
    %c0_7 = arith.constant 0 : index
    %14 = vector.load %arg7[%c0_5, %c0_6, %c0_7] : memref<1x1x96xf32, #tpu.memory_space<vmem>>, vector<1x1x96xf32>
    %15 = vector.shape_cast %14 : vector<1x1x96xf32> to vector<1x96xf32>
    %16 = vector.broadcast %15 : vector<1x96xf32> to vector<16x96xf32>
    %17 = arith.addf %13, %16 : vector<16x96xf32>
    %18 = tpu.iota {dimensions = array<i32: 0>} : vector<16x16xi32>
    %19 = tpu.iota {dimensions = array<i32: 1>} : vector<16x16xi32>
    %20 = arith.subi %19, %18 : vector<16x16xi32>
    %21 = vector.broadcast %1 : i32 to vector<16x16xi32>
    %22 = arith.cmpi slt, %18, %21 : vector<16x16xi32>
    %23 = vector.broadcast %1 : i32 to vector<16x16xi32>
    %24 = arith.cmpi slt, %19, %23 : vector<16x16xi32>
    %25 = arith.andi %22, %24 : vector<16x16xi1>
    %c0_8 = arith.constant 0 : index
    %c0_9 = arith.constant 0 : index
    %26 = vector.load %arg4[%c0_8, %c0_9] : memref<9x16xf32, #tpu.memory_space<vmem>>, vector<9x16xf32>
    %c0_10 = arith.constant 0 : index
    %c0_11 = arith.constant 0 : index
    %27 = vector.load %arg5[%c0_10, %c0_11] : memref<9x16xf32, #tpu.memory_space<vmem>>, vector<9x16xf32>
    %28 = vector.extract_strided_slice %17 {offsets = [0, 0], sizes = [16, 16], strides = [1, 1]} : vector<16x96xf32> to vector<16x16xf32>
    %cst_12 = arith.constant 2.500000e-01 : f32
    %29 = vector.broadcast %cst_12 : f32 to vector<16x16xf32>
    %30 = arith.mulf %28, %29 : vector<16x16xf32>
    %31 = vector.extract_strided_slice %17 {offsets = [0, 32], sizes = [16, 16], strides = [1, 1]} : vector<16x96xf32> to vector<16x16xf32>
    %32 = vector.extract_strided_slice %17 {offsets = [0, 64], sizes = [16, 16], strides = [1, 1]} : vector<16x96xf32> to vector<16x16xf32>
    %cst_13 = arith.constant dense<0.000000e+00> : vector<16x16xf32>
    %33 = tpu.matmul %30, %31, %cst_13 {dimension_numbers = #tpu.dot_dimension_numbers<[1], [1], [0], [0], [0, 0, 1, 0], [], []>} : vector<16x16xf32>, vector<16x16xf32>, vector<16x16xf32> -> vector<16x16xf32>
    %cst_14 = arith.constant dense<0.000000e+00> : vector<16x9xf32>
    %34 = tpu.matmul %30, %26, %cst_14 {dimension_numbers = #tpu.dot_dimension_numbers<[1], [1], [0], [0], [0, 0, 1, 0], [], []>} : vector<16x16xf32>, vector<9x16xf32>, vector<16x9xf32> -> vector<16x9xf32>
    %c-4_i32 = arith.constant -4 : i32
    %35 = vector.broadcast %c-4_i32 : i32 to vector<16x16xi32>
    %36 = arith.cmpi eq, %20, %35 : vector<16x16xi32>
    %37 = vector.extract_strided_slice %34 {offsets = [0, 0], sizes = [16, 1], strides = [1, 1]} : vector<16x9xf32> to vector<16x1xf32>
    %cst_15 = arith.constant 0.000000e+00 : f32
    %38 = vector.shape_cast %37 : vector<16x1xf32> to vector<16x1xf32>
    %39 = vector.broadcast %38 : vector<16x1xf32> to vector<16x16xf32>
    %40 = vector.broadcast %cst_15 : f32 to vector<16x16xf32>
    %41 = arith.select %36, %39, %40 : vector<16x16xi1>, vector<16x16xf32>
    %42 = arith.addf %33, %41 : vector<16x16xf32>
    %c-3_i32 = arith.constant -3 : i32
    %43 = vector.broadcast %c-3_i32 : i32 to vector<16x16xi32>
    %44 = arith.cmpi eq, %20, %43 : vector<16x16xi32>
    %45 = vector.extract_strided_slice %34 {offsets = [0, 1], sizes = [16, 1], strides = [1, 1]} : vector<16x9xf32> to vector<16x1xf32>
    %cst_16 = arith.constant 0.000000e+00 : f32
    %46 = vector.shape_cast %45 : vector<16x1xf32> to vector<16x1xf32>
    %47 = vector.broadcast %46 : vector<16x1xf32> to vector<16x16xf32>
    %48 = vector.broadcast %cst_16 : f32 to vector<16x16xf32>
    %49 = arith.select %44, %47, %48 : vector<16x16xi1>, vector<16x16xf32>
    %50 = arith.addf %42, %49 : vector<16x16xf32>
    %c-2_i32 = arith.constant -2 : i32
    %51 = vector.broadcast %c-2_i32 : i32 to vector<16x16xi32>
    %52 = arith.cmpi eq, %20, %51 : vector<16x16xi32>
    %53 = vector.extract_strided_slice %34 {offsets = [0, 2], sizes = [16, 1], strides = [1, 1]} : vector<16x9xf32> to vector<16x1xf32>
    %cst_17 = arith.constant 0.000000e+00 : f32
    %54 = vector.shape_cast %53 : vector<16x1xf32> to vector<16x1xf32>
    %55 = vector.broadcast %54 : vector<16x1xf32> to vector<16x16xf32>
    %56 = vector.broadcast %cst_17 : f32 to vector<16x16xf32>
    %57 = arith.select %52, %55, %56 : vector<16x16xi1>, vector<16x16xf32>
    %58 = arith.addf %50, %57 : vector<16x16xf32>
    %c-1_i32 = arith.constant -1 : i32
    %59 = vector.broadcast %c-1_i32 : i32 to vector<16x16xi32>
    %60 = arith.cmpi eq, %20, %59 : vector<16x16xi32>
    %61 = vector.extract_strided_slice %34 {offsets = [0, 3], sizes = [16, 1], strides = [1, 1]} : vector<16x9xf32> to vector<16x1xf32>
    %cst_18 = arith.constant 0.000000e+00 : f32
    %62 = vector.shape_cast %61 : vector<16x1xf32> to vector<16x1xf32>
    %63 = vector.broadcast %62 : vector<16x1xf32> to vector<16x16xf32>
    %64 = vector.broadcast %cst_18 : f32 to vector<16x16xf32>
    %65 = arith.select %60, %63, %64 : vector<16x16xi1>, vector<16x16xf32>
    %66 = arith.addf %58, %65 : vector<16x16xf32>
    %c0_i32_19 = arith.constant 0 : i32
    %67 = vector.broadcast %c0_i32_19 : i32 to vector<16x16xi32>
    %68 = arith.cmpi eq, %20, %67 : vector<16x16xi32>
    %69 = vector.extract_strided_slice %34 {offsets = [0, 4], sizes = [16, 1], strides = [1, 1]} : vector<16x9xf32> to vector<16x1xf32>
    %cst_20 = arith.constant 0.000000e+00 : f32
    %70 = vector.shape_cast %69 : vector<16x1xf32> to vector<16x1xf32>
    %71 = vector.broadcast %70 : vector<16x1xf32> to vector<16x16xf32>
    %72 = vector.broadcast %cst_20 : f32 to vector<16x16xf32>
    %73 = arith.select %68, %71, %72 : vector<16x16xi1>, vector<16x16xf32>
    %74 = arith.addf %66, %73 : vector<16x16xf32>
    %c1_i32 = arith.constant 1 : i32
    %75 = vector.broadcast %c1_i32 : i32 to vector<16x16xi32>
    %76 = arith.cmpi eq, %20, %75 : vector<16x16xi32>
    %77 = vector.extract_strided_slice %34 {offsets = [0, 5], sizes = [16, 1], strides = [1, 1]} : vector<16x9xf32> to vector<16x1xf32>
    %cst_21 = arith.constant 0.000000e+00 : f32
    %78 = vector.shape_cast %77 : vector<16x1xf32> to vector<16x1xf32>
    %79 = vector.broadcast %78 : vector<16x1xf32> to vector<16x16xf32>
    %80 = vector.broadcast %cst_21 : f32 to vector<16x16xf32>
    %81 = arith.select %76, %79, %80 : vector<16x16xi1>, vector<16x16xf32>
    %82 = arith.addf %74, %81 : vector<16x16xf32>
    %c2_i32 = arith.constant 2 : i32
    %83 = vector.broadcast %c2_i32 : i32 to vector<16x16xi32>
    %84 = arith.cmpi eq, %20, %83 : vector<16x16xi32>
    %85 = vector.extract_strided_slice %34 {offsets = [0, 6], sizes = [16, 1], strides = [1, 1]} : vector<16x9xf32> to vector<16x1xf32>
    %cst_22 = arith.constant 0.000000e+00 : f32
    %86 = vector.shape_cast %85 : vector<16x1xf32> to vector<16x1xf32>
    %87 = vector.broadcast %86 : vector<16x1xf32> to vector<16x16xf32>
    %88 = vector.broadcast %cst_22 : f32 to vector<16x16xf32>
    %89 = arith.select %84, %87, %88 : vector<16x16xi1>, vector<16x16xf32>
    %90 = arith.addf %82, %89 : vector<16x16xf32>
    %c3_i32 = arith.constant 3 : i32
    %91 = vector.broadcast %c3_i32 : i32 to vector<16x16xi32>
    %92 = arith.cmpi eq, %20, %91 : vector<16x16xi32>
    %93 = vector.extract_strided_slice %34 {offsets = [0, 7], sizes = [16, 1], strides = [1, 1]} : vector<16x9xf32> to vector<16x1xf32>
    %cst_23 = arith.constant 0.000000e+00 : f32
    %94 = vector.shape_cast %93 : vector<16x1xf32> to vector<16x1xf32>
    %95 = vector.broadcast %94 : vector<16x1xf32> to vector<16x16xf32>
    %96 = vector.broadcast %cst_23 : f32 to vector<16x16xf32>
    %97 = arith.select %92, %95, %96 : vector<16x16xi1>, vector<16x16xf32>
    %98 = arith.addf %90, %97 : vector<16x16xf32>
    %c4_i32 = arith.constant 4 : i32
    %99 = vector.broadcast %c4_i32 : i32 to vector<16x16xi32>
    %100 = arith.cmpi eq, %20, %99 : vector<16x16xi32>
    %101 = vector.extract_strided_slice %34 {offsets = [0, 8], sizes = [16, 1], strides = [1, 1]} : vector<16x9xf32> to vector<16x1xf32>
    %cst_24 = arith.constant 0.000000e+00 : f32
    %102 = vector.shape_cast %101 : vector<16x1xf32> to vector<16x1xf32>
    %103 = vector.broadcast %102 : vector<16x1xf32> to vector<16x16xf32>
    %104 = vector.broadcast %cst_24 : f32 to vector<16x16xf32>
    %105 = arith.select %100, %103, %104 : vector<16x16xi1>, vector<16x16xf32>
    %106 = arith.addf %98, %105 : vector<16x16xf32>
    %cst_25 = arith.constant -1.000000e+04 : f32
    %107 = vector.broadcast %cst_25 : f32 to vector<16x16xf32>
    %108 = arith.select %25, %106, %107 : vector<16x16xi1>, vector<16x16xf32>
    %cst_26 = arith.constant dense<0xFF800000> : vector<16xf32>
    %109 = vector.multi_reduction <maximumf>, %108, %cst_26 [1] : vector<16x16xf32> to vector<16xf32>
    %110 = vector.shape_cast %109 : vector<16xf32> to vector<16x1xf32>
    %111 = vector.broadcast %110 : vector<16x1xf32> to vector<16x16xf32>
    %112 = arith.subf %108, %111 : vector<16x16xf32>
    %113 = math.exp %112 : vector<16x16xf32>
    %cst_27 = arith.constant dense<0.000000e+00> : vector<16xf32>
    %114 = vector.multi_reduction <add>, %113, %cst_27 [1] : vector<16x16xf32> to vector<16xf32>
    %115 = vector.shape_cast %114 : vector<16xf32> to vector<16x1xf32>
    %116 = tpu.reciprocal %115 {approx = true} : vector<16x1xf32> -> vector<16x1xf32>
    %117 = vector.broadcast %116 : vector<16x1xf32> to vector<16x16xf32>
    %118 = arith.mulf %113, %117 : vector<16x16xf32>
    %cst_28 = arith.constant dense<0.000000e+00> : vector<16x16xf32>
    %119 = tpu.matmul %118, %32, %cst_28 {dimension_numbers = #tpu.dot_dimension_numbers<[1], [0], [0], [1], [0, 0, 1, 1], [], []>} : vector<16x16xf32>, vector<16x16xf32>, vector<16x16xf32> -> vector<16x16xf32>
    %c-4_i32_29 = arith.constant -4 : i32
    %120 = vector.broadcast %c-4_i32_29 : i32 to vector<16x16xi32>
    %121 = arith.cmpi eq, %20, %120 : vector<16x16xi32>
    %cst_30 = arith.constant 0.000000e+00 : f32
    %122 = vector.broadcast %cst_30 : f32 to vector<16x16xf32>
    %123 = arith.select %121, %118, %122 : vector<16x16xi1>, vector<16x16xf32>
    %cst_31 = arith.constant dense<0.000000e+00> : vector<16xf32>
    %124 = vector.multi_reduction <add>, %123, %cst_31 [1] : vector<16x16xf32> to vector<16xf32>
    %125 = vector.shape_cast %124 : vector<16xf32> to vector<16x1xf32>
    %c-3_i32_32 = arith.constant -3 : i32
    %126 = vector.broadcast %c-3_i32_32 : i32 to vector<16x16xi32>
    %127 = arith.cmpi eq, %20, %126 : vector<16x16xi32>
    %cst_33 = arith.constant 0.000000e+00 : f32
    %128 = vector.broadcast %cst_33 : f32 to vector<16x16xf32>
    %129 = arith.select %127, %118, %128 : vector<16x16xi1>, vector<16x16xf32>
    %cst_34 = arith.constant dense<0.000000e+00> : vector<16xf32>
    %130 = vector.multi_reduction <add>, %129, %cst_34 [1] : vector<16x16xf32> to vector<16xf32>
    %131 = vector.shape_cast %130 : vector<16xf32> to vector<16x1xf32>
    %c-2_i32_35 = arith.constant -2 : i32
    %132 = vector.broadcast %c-2_i32_35 : i32 to vector<16x16xi32>
    %133 = arith.cmpi eq, %20, %132 : vector<16x16xi32>
    %cst_36 = arith.constant 0.000000e+00 : f32
    %134 = vector.broadcast %cst_36 : f32 to vector<16x16xf32>
    %135 = arith.select %133, %118, %134 : vector<16x16xi1>, vector<16x16xf32>
    %cst_37 = arith.constant dense<0.000000e+00> : vector<16xf32>
    %136 = vector.multi_reduction <add>, %135, %cst_37 [1] : vector<16x16xf32> to vector<16xf32>
    %137 = vector.shape_cast %136 : vector<16xf32> to vector<16x1xf32>
    %c-1_i32_38 = arith.constant -1 : i32
    %138 = vector.broadcast %c-1_i32_38 : i32 to vector<16x16xi32>
    %139 = arith.cmpi eq, %20, %138 : vector<16x16xi32>
    %cst_39 = arith.constant 0.000000e+00 : f32
    %140 = vector.broadcast %cst_39 : f32 to vector<16x16xf32>
    %141 = arith.select %139, %118, %140 : vector<16x16xi1>, vector<16x16xf32>
    %cst_40 = arith.constant dense<0.000000e+00> : vector<16xf32>
    %142 = vector.multi_reduction <add>, %141, %cst_40 [1] : vector<16x16xf32> to vector<16xf32>
    %143 = vector.shape_cast %142 : vector<16xf32> to vector<16x1xf32>
    %c0_i32_41 = arith.constant 0 : i32
    %144 = vector.broadcast %c0_i32_41 : i32 to vector<16x16xi32>
    %145 = arith.cmpi eq, %20, %144 : vector<16x16xi32>
    %cst_42 = arith.constant 0.000000e+00 : f32
    %146 = vector.broadcast %cst_42 : f32 to vector<16x16xf32>
    %147 = arith.select %145, %118, %146 : vector<16x16xi1>, vector<16x16xf32>
    %cst_43 = arith.constant dense<0.000000e+00> : vector<16xf32>
    %148 = vector.multi_reduction <add>, %147, %cst_43 [1] : vector<16x16xf32> to vector<16xf32>
    %149 = vector.shape_cast %148 : vector<16xf32> to vector<16x1xf32>
    %c1_i32_44 = arith.constant 1 : i32
    %150 = vector.broadcast %c1_i32_44 : i32 to vector<16x16xi32>
    %151 = arith.cmpi eq, %20, %150 : vector<16x16xi32>
    %cst_45 = arith.constant 0.000000e+00 : f32
    %152 = vector.broadcast %cst_45 : f32 to vector<16x16xf32>
    %153 = arith.select %151, %118, %152 : vector<16x16xi1>, vector<16x16xf32>
    %cst_46 = arith.constant dense<0.000000e+00> : vector<16xf32>
    %154 = vector.multi_reduction <add>, %153, %cst_46 [1] : vector<16x16xf32> to vector<16xf32>
    %155 = vector.shape_cast %154 : vector<16xf32> to vector<16x1xf32>
    %c2_i32_47 = arith.constant 2 : i32
    %156 = vector.broadcast %c2_i32_47 : i32 to vector<16x16xi32>
    %157 = arith.cmpi eq, %20, %156 : vector<16x16xi32>
    %cst_48 = arith.constant 0.000000e+00 : f32
    %158 = vector.broadcast %cst_48 : f32 to vector<16x16xf32>
    %159 = arith.select %157, %118, %158 : vector<16x16xi1>, vector<16x16xf32>
    %cst_49 = arith.constant dense<0.000000e+00> : vector<16xf32>
    %160 = vector.multi_reduction <add>, %159, %cst_49 [1] : vector<16x16xf32> to vector<16xf32>
    %161 = vector.shape_cast %160 : vector<16xf32> to vector<16x1xf32>
    %c3_i32_50 = arith.constant 3 : i32
    %162 = vector.broadcast %c3_i32_50 : i32 to vector<16x16xi32>
    %163 = arith.cmpi eq, %20, %162 : vector<16x16xi32>
    %cst_51 = arith.constant 0.000000e+00 : f32
    %164 = vector.broadcast %cst_51 : f32 to vector<16x16xf32>
    %165 = arith.select %163, %118, %164 : vector<16x16xi1>, vector<16x16xf32>
    %cst_52 = arith.constant dense<0.000000e+00> : vector<16xf32>
    %166 = vector.multi_reduction <add>, %165, %cst_52 [1] : vector<16x16xf32> to vector<16xf32>
    %167 = vector.shape_cast %166 : vector<16xf32> to vector<16x1xf32>
    %c4_i32_53 = arith.constant 4 : i32
    %168 = vector.broadcast %c4_i32_53 : i32 to vector<16x16xi32>
    %169 = arith.cmpi eq, %20, %168 : vector<16x16xi32>
    %cst_54 = arith.constant 0.000000e+00 : f32
    %170 = vector.broadcast %cst_54 : f32 to vector<16x16xf32>
    %171 = arith.select %169, %118, %170 : vector<16x16xi1>, vector<16x16xf32>
    %cst_55 = arith.constant dense<0.000000e+00> : vector<16xf32>
    %172 = vector.multi_reduction <add>, %171, %cst_55 [1] : vector<16x16xf32> to vector<16xf32>
    %173 = vector.shape_cast %172 : vector<16xf32> to vector<16x1xf32>
    %174 = tpu.concatenate %125, %131, %137, %143, %149, %155, %161, %167, %173 in 1 : vector<16x1xf32>, vector<16x1xf32>, vector<16x1xf32>, vector<16x1xf32>, vector<16x1xf32>, vector<16x1xf32>, vector<16x1xf32>, vector<16x1xf32>, vector<16x1xf32> -> vector<16x9xf32>
    %cst_56 = arith.constant dense<0.000000e+00> : vector<16x16xf32>
    %175 = tpu.matmul %174, %27, %cst_56 {dimension_numbers = #tpu.dot_dimension_numbers<[1], [0], [0], [1], [0, 0, 1, 1], [], []>} : vector<16x9xf32>, vector<9x16xf32>, vector<16x16xf32> -> vector<16x16xf32>
    %176 = arith.addf %119, %175 : vector<16x16xf32>
    %177 = vector.extract_strided_slice %17 {offsets = [0, 16], sizes = [16, 16], strides = [1, 1]} : vector<16x96xf32> to vector<16x16xf32>
    %cst_57 = arith.constant 2.500000e-01 : f32
    %178 = vector.broadcast %cst_57 : f32 to vector<16x16xf32>
    %179 = arith.mulf %177, %178 : vector<16x16xf32>
    %180 = vector.extract_strided_slice %17 {offsets = [0, 48], sizes = [16, 16], strides = [1, 1]} : vector<16x96xf32> to vector<16x16xf32>
    %181 = vector.extract_strided_slice %17 {offsets = [0, 80], sizes = [16, 16], strides = [1, 1]} : vector<16x96xf32> to vector<16x16xf32>
    %cst_58 = arith.constant dense<0.000000e+00> : vector<16x16xf32>
    %182 = tpu.matmul %179, %180, %cst_58 {dimension_numbers = #tpu.dot_dimension_numbers<[1], [1], [0], [0], [0, 0, 1, 0], [], []>} : vector<16x16xf32>, vector<16x16xf32>, vector<16x16xf32> -> vector<16x16xf32>
    %cst_59 = arith.constant dense<0.000000e+00> : vector<16x9xf32>
    %183 = tpu.matmul %179, %26, %cst_59 {dimension_numbers = #tpu.dot_dimension_numbers<[1], [1], [0], [0], [0, 0, 1, 0], [], []>} : vector<16x16xf32>, vector<9x16xf32>, vector<16x9xf32> -> vector<16x9xf32>
    %c-4_i32_60 = arith.constant -4 : i32
    %184 = vector.broadcast %c-4_i32_60 : i32 to vector<16x16xi32>
    %185 = arith.cmpi eq, %20, %184 : vector<16x16xi32>
    %186 = vector.extract_strided_slice %183 {offsets = [0, 0], sizes = [16, 1], strides = [1, 1]} : vector<16x9xf32> to vector<16x1xf32>
    %cst_61 = arith.constant 0.000000e+00 : f32
    %187 = vector.shape_cast %186 : vector<16x1xf32> to vector<16x1xf32>
    %188 = vector.broadcast %187 : vector<16x1xf32> to vector<16x16xf32>
    %189 = vector.broadcast %cst_61 : f32 to vector<16x16xf32>
    %190 = arith.select %185, %188, %189 : vector<16x16xi1>, vector<16x16xf32>
    %191 = arith.addf %182, %190 : vector<16x16xf32>
    %c-3_i32_62 = arith.constant -3 : i32
    %192 = vector.broadcast %c-3_i32_62 : i32 to vector<16x16xi32>
    %193 = arith.cmpi eq, %20, %192 : vector<16x16xi32>
    %194 = vector.extract_strided_slice %183 {offsets = [0, 1], sizes = [16, 1], strides = [1, 1]} : vector<16x9xf32> to vector<16x1xf32>
    %cst_63 = arith.constant 0.000000e+00 : f32
    %195 = vector.shape_cast %194 : vector<16x1xf32> to vector<16x1xf32>
    %196 = vector.broadcast %195 : vector<16x1xf32> to vector<16x16xf32>
    %197 = vector.broadcast %cst_63 : f32 to vector<16x16xf32>
    %198 = arith.select %193, %196, %197 : vector<16x16xi1>, vector<16x16xf32>
    %199 = arith.addf %191, %198 : vector<16x16xf32>
    %c-2_i32_64 = arith.constant -2 : i32
    %200 = vector.broadcast %c-2_i32_64 : i32 to vector<16x16xi32>
    %201 = arith.cmpi eq, %20, %200 : vector<16x16xi32>
    %202 = vector.extract_strided_slice %183 {offsets = [0, 2], sizes = [16, 1], strides = [1, 1]} : vector<16x9xf32> to vector<16x1xf32>
    %cst_65 = arith.constant 0.000000e+00 : f32
    %203 = vector.shape_cast %202 : vector<16x1xf32> to vector<16x1xf32>
    %204 = vector.broadcast %203 : vector<16x1xf32> to vector<16x16xf32>
    %205 = vector.broadcast %cst_65 : f32 to vector<16x16xf32>
    %206 = arith.select %201, %204, %205 : vector<16x16xi1>, vector<16x16xf32>
    %207 = arith.addf %199, %206 : vector<16x16xf32>
    %c-1_i32_66 = arith.constant -1 : i32
    %208 = vector.broadcast %c-1_i32_66 : i32 to vector<16x16xi32>
    %209 = arith.cmpi eq, %20, %208 : vector<16x16xi32>
    %210 = vector.extract_strided_slice %183 {offsets = [0, 3], sizes = [16, 1], strides = [1, 1]} : vector<16x9xf32> to vector<16x1xf32>
    %cst_67 = arith.constant 0.000000e+00 : f32
    %211 = vector.shape_cast %210 : vector<16x1xf32> to vector<16x1xf32>
    %212 = vector.broadcast %211 : vector<16x1xf32> to vector<16x16xf32>
    %213 = vector.broadcast %cst_67 : f32 to vector<16x16xf32>
    %214 = arith.select %209, %212, %213 : vector<16x16xi1>, vector<16x16xf32>
    %215 = arith.addf %207, %214 : vector<16x16xf32>
    %c0_i32_68 = arith.constant 0 : i32
    %216 = vector.broadcast %c0_i32_68 : i32 to vector<16x16xi32>
    %217 = arith.cmpi eq, %20, %216 : vector<16x16xi32>
    %218 = vector.extract_strided_slice %183 {offsets = [0, 4], sizes = [16, 1], strides = [1, 1]} : vector<16x9xf32> to vector<16x1xf32>
    %cst_69 = arith.constant 0.000000e+00 : f32
    %219 = vector.shape_cast %218 : vector<16x1xf32> to vector<16x1xf32>
    %220 = vector.broadcast %219 : vector<16x1xf32> to vector<16x16xf32>
    %221 = vector.broadcast %cst_69 : f32 to vector<16x16xf32>
    %222 = arith.select %217, %220, %221 : vector<16x16xi1>, vector<16x16xf32>
    %223 = arith.addf %215, %222 : vector<16x16xf32>
    %c1_i32_70 = arith.constant 1 : i32
    %224 = vector.broadcast %c1_i32_70 : i32 to vector<16x16xi32>
    %225 = arith.cmpi eq, %20, %224 : vector<16x16xi32>
    %226 = vector.extract_strided_slice %183 {offsets = [0, 5], sizes = [16, 1], strides = [1, 1]} : vector<16x9xf32> to vector<16x1xf32>
    %cst_71 = arith.constant 0.000000e+00 : f32
    %227 = vector.shape_cast %226 : vector<16x1xf32> to vector<16x1xf32>
    %228 = vector.broadcast %227 : vector<16x1xf32> to vector<16x16xf32>
    %229 = vector.broadcast %cst_71 : f32 to vector<16x16xf32>
    %230 = arith.select %225, %228, %229 : vector<16x16xi1>, vector<16x16xf32>
    %231 = arith.addf %223, %230 : vector<16x16xf32>
    %c2_i32_72 = arith.constant 2 : i32
    %232 = vector.broadcast %c2_i32_72 : i32 to vector<16x16xi32>
    %233 = arith.cmpi eq, %20, %232 : vector<16x16xi32>
    %234 = vector.extract_strided_slice %183 {offsets = [0, 6], sizes = [16, 1], strides = [1, 1]} : vector<16x9xf32> to vector<16x1xf32>
    %cst_73 = arith.constant 0.000000e+00 : f32
    %235 = vector.shape_cast %234 : vector<16x1xf32> to vector<16x1xf32>
    %236 = vector.broadcast %235 : vector<16x1xf32> to vector<16x16xf32>
    %237 = vector.broadcast %cst_73 : f32 to vector<16x16xf32>
    %238 = arith.select %233, %236, %237 : vector<16x16xi1>, vector<16x16xf32>
    %239 = arith.addf %231, %238 : vector<16x16xf32>
    %c3_i32_74 = arith.constant 3 : i32
    %240 = vector.broadcast %c3_i32_74 : i32 to vector<16x16xi32>
    %241 = arith.cmpi eq, %20, %240 : vector<16x16xi32>
    %242 = vector.extract_strided_slice %183 {offsets = [0, 7], sizes = [16, 1], strides = [1, 1]} : vector<16x9xf32> to vector<16x1xf32>
    %cst_75 = arith.constant 0.000000e+00 : f32
    %243 = vector.shape_cast %242 : vector<16x1xf32> to vector<16x1xf32>
    %244 = vector.broadcast %243 : vector<16x1xf32> to vector<16x16xf32>
    %245 = vector.broadcast %cst_75 : f32 to vector<16x16xf32>
    %246 = arith.select %241, %244, %245 : vector<16x16xi1>, vector<16x16xf32>
    %247 = arith.addf %239, %246 : vector<16x16xf32>
    %c4_i32_76 = arith.constant 4 : i32
    %248 = vector.broadcast %c4_i32_76 : i32 to vector<16x16xi32>
    %249 = arith.cmpi eq, %20, %248 : vector<16x16xi32>
    %250 = vector.extract_strided_slice %183 {offsets = [0, 8], sizes = [16, 1], strides = [1, 1]} : vector<16x9xf32> to vector<16x1xf32>
    %cst_77 = arith.constant 0.000000e+00 : f32
    %251 = vector.shape_cast %250 : vector<16x1xf32> to vector<16x1xf32>
    %252 = vector.broadcast %251 : vector<16x1xf32> to vector<16x16xf32>
    %253 = vector.broadcast %cst_77 : f32 to vector<16x16xf32>
    %254 = arith.select %249, %252, %253 : vector<16x16xi1>, vector<16x16xf32>
    %255 = arith.addf %247, %254 : vector<16x16xf32>
    %cst_78 = arith.constant -1.000000e+04 : f32
    %256 = vector.broadcast %cst_78 : f32 to vector<16x16xf32>
    %257 = arith.select %25, %255, %256 : vector<16x16xi1>, vector<16x16xf32>
    %cst_79 = arith.constant dense<0xFF800000> : vector<16xf32>
    %258 = vector.multi_reduction <maximumf>, %257, %cst_79 [1] : vector<16x16xf32> to vector<16xf32>
    %259 = vector.shape_cast %258 : vector<16xf32> to vector<16x1xf32>
    %260 = vector.broadcast %259 : vector<16x1xf32> to vector<16x16xf32>
    %261 = arith.subf %257, %260 : vector<16x16xf32>
    %262 = math.exp %261 : vector<16x16xf32>
    %cst_80 = arith.constant dense<0.000000e+00> : vector<16xf32>
    %263 = vector.multi_reduction <add>, %262, %cst_80 [1] : vector<16x16xf32> to vector<16xf32>
    %264 = vector.shape_cast %263 : vector<16xf32> to vector<16x1xf32>
    %265 = tpu.reciprocal %264 {approx = true} : vector<16x1xf32> -> vector<16x1xf32>
    %266 = vector.broadcast %265 : vector<16x1xf32> to vector<16x16xf32>
    %267 = arith.mulf %262, %266 : vector<16x16xf32>
    %cst_81 = arith.constant dense<0.000000e+00> : vector<16x16xf32>
    %268 = tpu.matmul %267, %181, %cst_81 {dimension_numbers = #tpu.dot_dimension_numbers<[1], [0], [0], [1], [0, 0, 1, 1], [], []>} : vector<16x16xf32>, vector<16x16xf32>, vector<16x16xf32> -> vector<16x16xf32>
    %c-4_i32_82 = arith.constant -4 : i32
    %269 = vector.broadcast %c-4_i32_82 : i32 to vector<16x16xi32>
    %270 = arith.cmpi eq, %20, %269 : vector<16x16xi32>
    %cst_83 = arith.constant 0.000000e+00 : f32
    %271 = vector.broadcast %cst_83 : f32 to vector<16x16xf32>
    %272 = arith.select %270, %267, %271 : vector<16x16xi1>, vector<16x16xf32>
    %cst_84 = arith.constant dense<0.000000e+00> : vector<16xf32>
    %273 = vector.multi_reduction <add>, %272, %cst_84 [1] : vector<16x16xf32> to vector<16xf32>
    %274 = vector.shape_cast %273 : vector<16xf32> to vector<16x1xf32>
    %c-3_i32_85 = arith.constant -3 : i32
    %275 = vector.broadcast %c-3_i32_85 : i32 to vector<16x16xi32>
    %276 = arith.cmpi eq, %20, %275 : vector<16x16xi32>
    %cst_86 = arith.constant 0.000000e+00 : f32
    %277 = vector.broadcast %cst_86 : f32 to vector<16x16xf32>
    %278 = arith.select %276, %267, %277 : vector<16x16xi1>, vector<16x16xf32>
    %cst_87 = arith.constant dense<0.000000e+00> : vector<16xf32>
    %279 = vector.multi_reduction <add>, %278, %cst_87 [1] : vector<16x16xf32> to vector<16xf32>
    %280 = vector.shape_cast %279 : vector<16xf32> to vector<16x1xf32>
    %c-2_i32_88 = arith.constant -2 : i32
    %281 = vector.broadcast %c-2_i32_88 : i32 to vector<16x16xi32>
    %282 = arith.cmpi eq, %20, %281 : vector<16x16xi32>
    %cst_89 = arith.constant 0.000000e+00 : f32
    %283 = vector.broadcast %cst_89 : f32 to vector<16x16xf32>
    %284 = arith.select %282, %267, %283 : vector<16x16xi1>, vector<16x16xf32>
    %cst_90 = arith.constant dense<0.000000e+00> : vector<16xf32>
    %285 = vector.multi_reduction <add>, %284, %cst_90 [1] : vector<16x16xf32> to vector<16xf32>
    %286 = vector.shape_cast %285 : vector<16xf32> to vector<16x1xf32>
    %c-1_i32_91 = arith.constant -1 : i32
    %287 = vector.broadcast %c-1_i32_91 : i32 to vector<16x16xi32>
    %288 = arith.cmpi eq, %20, %287 : vector<16x16xi32>
    %cst_92 = arith.constant 0.000000e+00 : f32
    %289 = vector.broadcast %cst_92 : f32 to vector<16x16xf32>
    %290 = arith.select %288, %267, %289 : vector<16x16xi1>, vector<16x16xf32>
    %cst_93 = arith.constant dense<0.000000e+00> : vector<16xf32>
    %291 = vector.multi_reduction <add>, %290, %cst_93 [1] : vector<16x16xf32> to vector<16xf32>
    %292 = vector.shape_cast %291 : vector<16xf32> to vector<16x1xf32>
    %c0_i32_94 = arith.constant 0 : i32
    %293 = vector.broadcast %c0_i32_94 : i32 to vector<16x16xi32>
    %294 = arith.cmpi eq, %20, %293 : vector<16x16xi32>
    %cst_95 = arith.constant 0.000000e+00 : f32
    %295 = vector.broadcast %cst_95 : f32 to vector<16x16xf32>
    %296 = arith.select %294, %267, %295 : vector<16x16xi1>, vector<16x16xf32>
    %cst_96 = arith.constant dense<0.000000e+00> : vector<16xf32>
    %297 = vector.multi_reduction <add>, %296, %cst_96 [1] : vector<16x16xf32> to vector<16xf32>
    %298 = vector.shape_cast %297 : vector<16xf32> to vector<16x1xf32>
    %c1_i32_97 = arith.constant 1 : i32
    %299 = vector.broadcast %c1_i32_97 : i32 to vector<16x16xi32>
    %300 = arith.cmpi eq, %20, %299 : vector<16x16xi32>
    %cst_98 = arith.constant 0.000000e+00 : f32
    %301 = vector.broadcast %cst_98 : f32 to vector<16x16xf32>
    %302 = arith.select %300, %267, %301 : vector<16x16xi1>, vector<16x16xf32>
    %cst_99 = arith.constant dense<0.000000e+00> : vector<16xf32>
    %303 = vector.multi_reduction <add>, %302, %cst_99 [1] : vector<16x16xf32> to vector<16xf32>
    %304 = vector.shape_cast %303 : vector<16xf32> to vector<16x1xf32>
    %c2_i32_100 = arith.constant 2 : i32
    %305 = vector.broadcast %c2_i32_100 : i32 to vector<16x16xi32>
    %306 = arith.cmpi eq, %20, %305 : vector<16x16xi32>
    %cst_101 = arith.constant 0.000000e+00 : f32
    %307 = vector.broadcast %cst_101 : f32 to vector<16x16xf32>
    %308 = arith.select %306, %267, %307 : vector<16x16xi1>, vector<16x16xf32>
    %cst_102 = arith.constant dense<0.000000e+00> : vector<16xf32>
    %309 = vector.multi_reduction <add>, %308, %cst_102 [1] : vector<16x16xf32> to vector<16xf32>
    %310 = vector.shape_cast %309 : vector<16xf32> to vector<16x1xf32>
    %c3_i32_103 = arith.constant 3 : i32
    %311 = vector.broadcast %c3_i32_103 : i32 to vector<16x16xi32>
    %312 = arith.cmpi eq, %20, %311 : vector<16x16xi32>
    %cst_104 = arith.constant 0.000000e+00 : f32
    %313 = vector.broadcast %cst_104 : f32 to vector<16x16xf32>
    %314 = arith.select %312, %267, %313 : vector<16x16xi1>, vector<16x16xf32>
    %cst_105 = arith.constant dense<0.000000e+00> : vector<16xf32>
    %315 = vector.multi_reduction <add>, %314, %cst_105 [1] : vector<16x16xf32> to vector<16xf32>
    %316 = vector.shape_cast %315 : vector<16xf32> to vector<16x1xf32>
    %c4_i32_106 = arith.constant 4 : i32
    %317 = vector.broadcast %c4_i32_106 : i32 to vector<16x16xi32>
    %318 = arith.cmpi eq, %20, %317 : vector<16x16xi32>
    %cst_107 = arith.constant 0.000000e+00 : f32
    %319 = vector.broadcast %cst_107 : f32 to vector<16x16xf32>
    %320 = arith.select %318, %267, %319 : vector<16x16xi1>, vector<16x16xf32>
    %cst_108 = arith.constant dense<0.000000e+00> : vector<16xf32>
    %321 = vector.multi_reduction <add>, %320, %cst_108 [1] : vector<16x16xf32> to vector<16xf32>
    %322 = vector.shape_cast %321 : vector<16xf32> to vector<16x1xf32>
    %323 = tpu.concatenate %274, %280, %286, %292, %298, %304, %310, %316, %322 in 1 : vector<16x1xf32>, vector<16x1xf32>, vector<16x1xf32>, vector<16x1xf32>, vector<16x1xf32>, vector<16x1xf32>, vector<16x1xf32>, vector<16x1xf32>, vector<16x1xf32> -> vector<16x9xf32>
    %cst_109 = arith.constant dense<0.000000e+00> : vector<16x16xf32>
    %324 = tpu.matmul %323, %27, %cst_109 {dimension_numbers = #tpu.dot_dimension_numbers<[1], [0], [0], [1], [0, 0, 1, 1], [], []>} : vector<16x9xf32>, vector<9x16xf32>, vector<16x16xf32> -> vector<16x16xf32>
    %325 = arith.addf %268, %324 : vector<16x16xf32>
    %326 = tpu.concatenate %176, %325 in 1 : vector<16x16xf32>, vector<16x16xf32> -> vector<16x32xf32>
    %c0_110 = arith.constant 0 : index
    %c0_111 = arith.constant 0 : index
    %c0_112 = arith.constant 0 : index
    %327 = vector.load %arg8[%c0_110, %c0_111, %c0_112] : memref<1x32x32xf32, #tpu.memory_space<vmem>>, vector<1x32x32xf32>
    %328 = vector.shape_cast %327 : vector<1x32x32xf32> to vector<32x32xf32>
    %cst_113 = arith.constant dense<0.000000e+00> : vector<16x32xf32>
    %329 = tpu.matmul %326, %328, %cst_113 {dimension_numbers = #tpu.dot_dimension_numbers<[1], [0], [0], [1], [0, 0, 1, 1], [], []>} : vector<16x32xf32>, vector<32x32xf32>, vector<16x32xf32> -> vector<16x32xf32>
    %c0_114 = arith.constant 0 : index
    %c0_115 = arith.constant 0 : index
    %c0_116 = arith.constant 0 : index
    %330 = vector.load %arg9[%c0_114, %c0_115, %c0_116] : memref<1x1x32xf32, #tpu.memory_space<vmem>>, vector<1x1x32xf32>
    %331 = vector.shape_cast %330 : vector<1x1x32xf32> to vector<1x32xf32>
    %332 = vector.broadcast %331 : vector<1x32xf32> to vector<16x32xf32>
    %333 = arith.addf %329, %332 : vector<16x32xf32>
    %334 = arith.addf %10, %333 : vector<16x32xf32>
    %c0_117 = arith.constant 0 : index
    %c0_118 = arith.constant 0 : index
    %c0_119 = arith.constant 0 : index
    %335 = vector.load %arg10[%c0_117, %c0_118, %c0_119] : memref<1x1x32xf32, #tpu.memory_space<vmem>>, vector<1x1x32xf32>
    %336 = vector.shape_cast %335 : vector<1x1x32xf32> to vector<1x32xf32>
    %c0_120 = arith.constant 0 : index
    %c0_121 = arith.constant 0 : index
    %c0_122 = arith.constant 0 : index
    %337 = vector.load %arg11[%c0_120, %c0_121, %c0_122] : memref<1x1x32xf32, #tpu.memory_space<vmem>>, vector<1x1x32xf32>
    %338 = vector.shape_cast %337 : vector<1x1x32xf32> to vector<1x32xf32>
    %cst_123 = arith.constant dense<0.000000e+00> : vector<16xf32>
    %339 = vector.multi_reduction <add>, %334, %cst_123 [1] : vector<16x32xf32> to vector<16xf32>
    %340 = vector.shape_cast %339 : vector<16xf32> to vector<16x1xf32>
    %cst_124 = arith.constant 3.200000e+01 : f32
    %341 = vector.broadcast %cst_124 : f32 to vector<16x1xf32>
    %342 = arith.divf %340, %341 : vector<16x1xf32>
    %343 = vector.broadcast %342 : vector<16x1xf32> to vector<16x32xf32>
    %344 = arith.subf %334, %343 : vector<16x32xf32>
    %345 = arith.mulf %344, %344 : vector<16x32xf32>
    %cst_125 = arith.constant dense<0.000000e+00> : vector<16xf32>
    %346 = vector.multi_reduction <add>, %345, %cst_125 [1] : vector<16x32xf32> to vector<16xf32>
    %347 = vector.shape_cast %346 : vector<16xf32> to vector<16x1xf32>
    %cst_126 = arith.constant 3.200000e+01 : f32
    %348 = vector.broadcast %cst_126 : f32 to vector<16x1xf32>
    %349 = arith.divf %347, %348 : vector<16x1xf32>
    %350 = vector.broadcast %342 : vector<16x1xf32> to vector<16x32xf32>
    %351 = arith.subf %334, %350 : vector<16x32xf32>
    %cst_127 = arith.constant 9.99999974E-6 : f32
    %352 = vector.broadcast %cst_127 : f32 to vector<16x1xf32>
    %353 = arith.addf %349, %352 : vector<16x1xf32>
    %354 = math.rsqrt %353 : vector<16x1xf32>
    %355 = vector.broadcast %354 : vector<16x1xf32> to vector<16x32xf32>
    %356 = arith.mulf %351, %355 : vector<16x32xf32>
    %357 = vector.broadcast %336 : vector<1x32xf32> to vector<16x32xf32>
    %358 = arith.mulf %356, %357 : vector<16x32xf32>
    %359 = vector.broadcast %338 : vector<1x32xf32> to vector<16x32xf32>
    %360 = arith.addf %358, %359 : vector<16x32xf32>
    %361 = vector.broadcast %6 : vector<16x1xf32> to vector<16x32xf32>
    %362 = arith.mulf %360, %361 : vector<16x32xf32>
    %cst_128 = arith.constant 0.000000e+00 : f32
    %363 = vector.broadcast %cst_128 : f32 to vector<1x32xf32>
    %364 = vector.extract_strided_slice %362 {offsets = [0, 0], sizes = [15, 32], strides = [1, 1]} : vector<16x32xf32> to vector<15x32xf32>
    %365 = tpu.concatenate %363, %364 in 0 : vector<1x32xf32>, vector<15x32xf32> -> vector<16x32xf32>
    %366 = vector.extract_strided_slice %362 {offsets = [1, 0], sizes = [15, 32], strides = [1, 1]} : vector<16x32xf32> to vector<15x32xf32>
    %367 = tpu.concatenate %366, %363 in 0 : vector<15x32xf32>, vector<1x32xf32> -> vector<16x32xf32>
    %368 = tpu.concatenate %365, %362, %367 in 1 : vector<16x32xf32>, vector<16x32xf32>, vector<16x32xf32> -> vector<16x96xf32>
    %c0_129 = arith.constant 0 : index
    %c0_130 = arith.constant 0 : index
    %c0_131 = arith.constant 0 : index
    %369 = vector.load %arg12[%c0_129, %c0_130, %c0_131] : memref<1x96x64xf32, #tpu.memory_space<vmem>>, vector<1x96x64xf32>
    %370 = vector.shape_cast %369 : vector<1x96x64xf32> to vector<96x64xf32>
    %cst_132 = arith.constant dense<0.000000e+00> : vector<16x64xf32>
    %371 = tpu.matmul %368, %370, %cst_132 {dimension_numbers = #tpu.dot_dimension_numbers<[1], [0], [0], [1], [0, 0, 1, 1], [], []>} : vector<16x96xf32>, vector<96x64xf32>, vector<16x64xf32> -> vector<16x64xf32>
    %c0_133 = arith.constant 0 : index
    %c0_134 = arith.constant 0 : index
    %c0_135 = arith.constant 0 : index
    %372 = vector.load %arg13[%c0_133, %c0_134, %c0_135] : memref<1x1x64xf32, #tpu.memory_space<vmem>>, vector<1x1x64xf32>
    %373 = vector.shape_cast %372 : vector<1x1x64xf32> to vector<1x64xf32>
    %374 = vector.broadcast %373 : vector<1x64xf32> to vector<16x64xf32>
    %375 = arith.addf %371, %374 : vector<16x64xf32>
    %cst_136 = arith.constant 0.000000e+00 : f32
    %376 = vector.broadcast %cst_136 : f32 to vector<16x64xf32>
    %377 = arith.maximumf %375, %376 : vector<16x64xf32>
    %378 = vector.broadcast %6 : vector<16x1xf32> to vector<16x64xf32>
    %379 = arith.mulf %377, %378 : vector<16x64xf32>
    %cst_137 = arith.constant 0.000000e+00 : f32
    %380 = vector.broadcast %cst_137 : f32 to vector<1x64xf32>
    %381 = vector.extract_strided_slice %379 {offsets = [0, 0], sizes = [15, 64], strides = [1, 1]} : vector<16x64xf32> to vector<15x64xf32>
    %382 = tpu.concatenate %380, %381 in 0 : vector<1x64xf32>, vector<15x64xf32> -> vector<16x64xf32>
    %383 = vector.extract_strided_slice %379 {offsets = [1, 0], sizes = [15, 64], strides = [1, 1]} : vector<16x64xf32> to vector<15x64xf32>
    %384 = tpu.concatenate %383, %380 in 0 : vector<15x64xf32>, vector<1x64xf32> -> vector<16x64xf32>
    %385 = tpu.concatenate %382, %379, %384 in 1 : vector<16x64xf32>, vector<16x64xf32>, vector<16x64xf32> -> vector<16x192xf32>
    %c0_138 = arith.constant 0 : index
    %c0_139 = arith.constant 0 : index
    %c0_140 = arith.constant 0 : index
    %386 = vector.load %arg14[%c0_138, %c0_139, %c0_140] : memref<1x192x32xf32, #tpu.memory_space<vmem>>, vector<1x192x32xf32>
    %387 = vector.shape_cast %386 : vector<1x192x32xf32> to vector<192x32xf32>
    %cst_141 = arith.constant dense<0.000000e+00> : vector<16x32xf32>
    %388 = tpu.matmul %385, %387, %cst_141 {dimension_numbers = #tpu.dot_dimension_numbers<[1], [0], [0], [1], [0, 0, 1, 1], [], []>} : vector<16x192xf32>, vector<192x32xf32>, vector<16x32xf32> -> vector<16x32xf32>
    %c0_142 = arith.constant 0 : index
    %c0_143 = arith.constant 0 : index
    %c0_144 = arith.constant 0 : index
    %389 = vector.load %arg15[%c0_142, %c0_143, %c0_144] : memref<1x1x32xf32, #tpu.memory_space<vmem>>, vector<1x1x32xf32>
    %390 = vector.shape_cast %389 : vector<1x1x32xf32> to vector<1x32xf32>
    %391 = vector.broadcast %390 : vector<1x32xf32> to vector<16x32xf32>
    %392 = arith.addf %388, %391 : vector<16x32xf32>
    %393 = vector.broadcast %6 : vector<16x1xf32> to vector<16x32xf32>
    %394 = arith.mulf %392, %393 : vector<16x32xf32>
    %395 = arith.addf %360, %394 : vector<16x32xf32>
    %c0_145 = arith.constant 0 : index
    %c0_146 = arith.constant 0 : index
    %c0_147 = arith.constant 0 : index
    %396 = vector.load %arg16[%c0_145, %c0_146, %c0_147] : memref<1x1x32xf32, #tpu.memory_space<vmem>>, vector<1x1x32xf32>
    %397 = vector.shape_cast %396 : vector<1x1x32xf32> to vector<1x32xf32>
    %c0_148 = arith.constant 0 : index
    %c0_149 = arith.constant 0 : index
    %c0_150 = arith.constant 0 : index
    %398 = vector.load %arg17[%c0_148, %c0_149, %c0_150] : memref<1x1x32xf32, #tpu.memory_space<vmem>>, vector<1x1x32xf32>
    %399 = vector.shape_cast %398 : vector<1x1x32xf32> to vector<1x32xf32>
    %cst_151 = arith.constant dense<0.000000e+00> : vector<16xf32>
    %400 = vector.multi_reduction <add>, %395, %cst_151 [1] : vector<16x32xf32> to vector<16xf32>
    %401 = vector.shape_cast %400 : vector<16xf32> to vector<16x1xf32>
    %cst_152 = arith.constant 3.200000e+01 : f32
    %402 = vector.broadcast %cst_152 : f32 to vector<16x1xf32>
    %403 = arith.divf %401, %402 : vector<16x1xf32>
    %404 = vector.broadcast %403 : vector<16x1xf32> to vector<16x32xf32>
    %405 = arith.subf %395, %404 : vector<16x32xf32>
    %406 = arith.mulf %405, %405 : vector<16x32xf32>
    %cst_153 = arith.constant dense<0.000000e+00> : vector<16xf32>
    %407 = vector.multi_reduction <add>, %406, %cst_153 [1] : vector<16x32xf32> to vector<16xf32>
    %408 = vector.shape_cast %407 : vector<16xf32> to vector<16x1xf32>
    %cst_154 = arith.constant 3.200000e+01 : f32
    %409 = vector.broadcast %cst_154 : f32 to vector<16x1xf32>
    %410 = arith.divf %408, %409 : vector<16x1xf32>
    %411 = vector.broadcast %403 : vector<16x1xf32> to vector<16x32xf32>
    %412 = arith.subf %395, %411 : vector<16x32xf32>
    %cst_155 = arith.constant 9.99999974E-6 : f32
    %413 = vector.broadcast %cst_155 : f32 to vector<16x1xf32>
    %414 = arith.addf %410, %413 : vector<16x1xf32>
    %415 = math.rsqrt %414 : vector<16x1xf32>
    %416 = vector.broadcast %415 : vector<16x1xf32> to vector<16x32xf32>
    %417 = arith.mulf %412, %416 : vector<16x32xf32>
    %418 = vector.broadcast %397 : vector<1x32xf32> to vector<16x32xf32>
    %419 = arith.mulf %417, %418 : vector<16x32xf32>
    %420 = vector.broadcast %399 : vector<1x32xf32> to vector<16x32xf32>
    %421 = arith.addf %419, %420 : vector<16x32xf32>
    %c0_156 = arith.constant 0 : index
    %c0_157 = arith.constant 0 : index
    %422 = vector.load %arg22[%c0_156, %c0_157] : memref<16x32xf32, #tpu.memory_space<vmem>>, vector<16x32xf32>
    tpu.vector_store %arg22[%c0_156, %c0_157], %421 {strides = array<i32>} : memref<16x32xf32, #tpu.memory_space<vmem>>, vector<16x32xf32>,
    %c1_i32_158 = arith.constant 1 : i32
    %423 = arith.cmpi eq, %arg1, %c1_i32_158 : i32
    %424 = arith.extui %423 : i1 to i32
    %c0_i32_159 = arith.constant 0 : i32
    %425 = arith.cmpi ne, %424, %c0_i32_159 : i32
    scf.if %425 {
      %426 = vector.broadcast %6 : vector<16x1xf32> to vector<16x32xf32>
      %427 = arith.mulf %421, %426 : vector<16x32xf32>
      %c0_160 = arith.constant 0 : index
      %c0_161 = arith.constant 0 : index
      %c0_162 = arith.constant 0 : index
      %428 = vector.load %arg20[%c0_160, %c0_161, %c0_162] : memref<1x16x32xf32, #tpu.memory_space<vmem>>, vector<1x16x32xf32>
      %429 = vector.shape_cast %428 : vector<1x16x32xf32> to vector<16x32xf32>
      %430 = vector.shape_cast %427 : vector<16x32xf32> to vector<1x16x32xf32>
      tpu.vector_store %arg20[%c0_160, %c0_161, %c0_162], %430 {strides = array<i32>} : memref<1x16x32xf32, #tpu.memory_space<vmem>>, vector<1x16x32xf32>,
      %c0_163 = arith.constant 0 : index
      %c0_164 = arith.constant 0 : index
      %431 = vector.load %arg18[%c0_163, %c0_164] : memref<32x32xf32, #tpu.memory_space<vmem>>, vector<32x32xf32>
      %cst_165 = arith.constant dense<0.000000e+00> : vector<16x32xf32>
      %432 = tpu.matmul %427, %431, %cst_165 {dimension_numbers = #tpu.dot_dimension_numbers<[1], [0], [0], [1], [0, 0, 1, 1], [], []>} : vector<16x32xf32>, vector<32x32xf32>, vector<16x32xf32> -> vector<16x32xf32>
      %c0_166 = arith.constant 0 : index
      %c0_167 = arith.constant 0 : index
      %433 = vector.load %arg19[%c0_166, %c0_167] : memref<1x32xf32, #tpu.memory_space<vmem>>, vector<1x32xf32>
      %434 = vector.broadcast %433 : vector<1x32xf32> to vector<16x32xf32>
      %435 = arith.addf %432, %434 : vector<16x32xf32>
      %436 = vector.broadcast %6 : vector<16x1xf32> to vector<16x32xf32>
      %437 = arith.mulf %435, %436 : vector<16x32xf32>
      %c0_168 = arith.constant 0 : index
      %c0_169 = arith.constant 0 : index
      %c0_170 = arith.constant 0 : index
      %438 = vector.load %arg21[%c0_168, %c0_169, %c0_170] : memref<1x16x32xf32, #tpu.memory_space<vmem>>, vector<1x16x32xf32>
      %439 = vector.shape_cast %438 : vector<1x16x32xf32> to vector<16x32xf32>
      %440 = vector.shape_cast %437 : vector<16x32xf32> to vector<1x16x32xf32>
      tpu.vector_store %arg21[%c0_168, %c0_169, %c0_170], %440 {strides = array<i32>} : memref<1x16x32xf32, #tpu.memory_space<vmem>>, vector<1x16x32xf32>,
    } else {
    }
    return
  }
  func.func @transform_0(%arg0: i32, %arg1: i32, %arg2: memref<2xi32, #tpu.memory_space<smem>>) -> (i32, i32, i32) {
    %c0_i32 = arith.constant 0 : i32
    %c0_i32_0 = arith.constant 0 : i32
    %c0_i32_1 = arith.constant 0 : i32
    return %arg0, %c0_i32, %c0_i32_0 : i32, i32, i32
  }
  func.func @transform_1(%arg0: i32, %arg1: i32, %arg2: memref<2xi32, #tpu.memory_space<smem>>) -> (i32, i32) {
    %c0_i32 = arith.constant 0 : i32
    %c0_i32_0 = arith.constant 0 : i32
    %c0_i32_1 = arith.constant 0 : i32
    return %c0_i32, %c0_i32_0 : i32, i32
  }
  func.func @transform_2(%arg0: i32, %arg1: i32, %arg2: memref<2xi32, #tpu.memory_space<smem>>) -> (i32, i32) {
    %c0_i32 = arith.constant 0 : i32
    %c0_i32_0 = arith.constant 0 : i32
    %c0_i32_1 = arith.constant 0 : i32
    return %c0_i32, %c0_i32_0 : i32, i32
  }
  func.func @transform_3(%arg0: i32, %arg1: i32, %arg2: memref<2xi32, #tpu.memory_space<smem>>) -> (i32, i32, i32) {
    %c0_i32 = arith.constant 0 : i32
    %c0_i32_0 = arith.constant 0 : i32
    %c0_i32_1 = arith.constant 0 : i32
    return %arg1, %c0_i32, %c0_i32_0 : i32, i32, i32
  }
  func.func @transform_4(%arg0: i32, %arg1: i32, %arg2: memref<2xi32, #tpu.memory_space<smem>>) -> (i32, i32, i32) {
    %c0_i32 = arith.constant 0 : i32
    %c0_i32_0 = arith.constant 0 : i32
    %c0_i32_1 = arith.constant 0 : i32
    return %arg1, %c0_i32, %c0_i32_0 : i32, i32, i32
  }
  func.func @transform_5(%arg0: i32, %arg1: i32, %arg2: memref<2xi32, #tpu.memory_space<smem>>) -> (i32, i32, i32) {
    %c0_i32 = arith.constant 0 : i32
    %c0_i32_0 = arith.constant 0 : i32
    %c0_i32_1 = arith.constant 0 : i32
    return %arg1, %c0_i32, %c0_i32_0 : i32, i32, i32
  }
  func.func @transform_6(%arg0: i32, %arg1: i32, %arg2: memref<2xi32, #tpu.memory_space<smem>>) -> (i32, i32, i32) {
    %c0_i32 = arith.constant 0 : i32
    %c0_i32_0 = arith.constant 0 : i32
    %c0_i32_1 = arith.constant 0 : i32
    return %arg1, %c0_i32, %c0_i32_0 : i32, i32, i32
  }
  func.func @transform_7(%arg0: i32, %arg1: i32, %arg2: memref<2xi32, #tpu.memory_space<smem>>) -> (i32, i32, i32) {
    %c0_i32 = arith.constant 0 : i32
    %c0_i32_0 = arith.constant 0 : i32
    %c0_i32_1 = arith.constant 0 : i32
    return %arg1, %c0_i32, %c0_i32_0 : i32, i32, i32
  }
  func.func @transform_8(%arg0: i32, %arg1: i32, %arg2: memref<2xi32, #tpu.memory_space<smem>>) -> (i32, i32, i32) {
    %c0_i32 = arith.constant 0 : i32
    %c0_i32_0 = arith.constant 0 : i32
    %c0_i32_1 = arith.constant 0 : i32
    return %arg1, %c0_i32, %c0_i32_0 : i32, i32, i32
  }
  func.func @transform_9(%arg0: i32, %arg1: i32, %arg2: memref<2xi32, #tpu.memory_space<smem>>) -> (i32, i32, i32) {
    %c0_i32 = arith.constant 0 : i32
    %c0_i32_0 = arith.constant 0 : i32
    %c0_i32_1 = arith.constant 0 : i32
    return %arg1, %c0_i32, %c0_i32_0 : i32, i32, i32
  }
  func.func @transform_10(%arg0: i32, %arg1: i32, %arg2: memref<2xi32, #tpu.memory_space<smem>>) -> (i32, i32, i32) {
    %c0_i32 = arith.constant 0 : i32
    %c0_i32_0 = arith.constant 0 : i32
    %c0_i32_1 = arith.constant 0 : i32
    return %arg1, %c0_i32, %c0_i32_0 : i32, i32, i32
  }
  func.func @transform_11(%arg0: i32, %arg1: i32, %arg2: memref<2xi32, #tpu.memory_space<smem>>) -> (i32, i32, i32) {
    %c0_i32 = arith.constant 0 : i32
    %c0_i32_0 = arith.constant 0 : i32
    %c0_i32_1 = arith.constant 0 : i32
    return %arg1, %c0_i32, %c0_i32_0 : i32, i32, i32
  }
  func.func @transform_12(%arg0: i32, %arg1: i32, %arg2: memref<2xi32, #tpu.memory_space<smem>>) -> (i32, i32, i32) {
    %c0_i32 = arith.constant 0 : i32
    %c0_i32_0 = arith.constant 0 : i32
    %c0_i32_1 = arith.constant 0 : i32
    return %arg1, %c0_i32, %c0_i32_0 : i32, i32, i32
  }
  func.func @transform_13(%arg0: i32, %arg1: i32, %arg2: memref<2xi32, #tpu.memory_space<smem>>) -> (i32, i32, i32) {
    %c0_i32 = arith.constant 0 : i32
    %c0_i32_0 = arith.constant 0 : i32
    %c0_i32_1 = arith.constant 0 : i32
    return %arg1, %c0_i32, %c0_i32_0 : i32, i32, i32
  }
  func.func @transform_14(%arg0: i32, %arg1: i32, %arg2: memref<2xi32, #tpu.memory_space<smem>>) -> (i32, i32, i32) {
    %c0_i32 = arith.constant 0 : i32
    %c0_i32_0 = arith.constant 0 : i32
    %c0_i32_1 = arith.constant 0 : i32
    return %arg1, %c0_i32, %c0_i32_0 : i32, i32, i32
  }
  func.func @transform_15(%arg0: i32, %arg1: i32, %arg2: memref<2xi32, #tpu.memory_space<smem>>) -> (i32, i32) {
    %c0_i32 = arith.constant 0 : i32
    %c0_i32_0 = arith.constant 0 : i32
    %c0_i32_1 = arith.constant 0 : i32
    return %c0_i32, %c0_i32_0 : i32, i32
  }
  func.func @transform_16(%arg0: i32, %arg1: i32, %arg2: memref<2xi32, #tpu.memory_space<smem>>) -> (i32, i32) {
    %c0_i32 = arith.constant 0 : i32
    %c0_i32_0 = arith.constant 0 : i32
    %c0_i32_1 = arith.constant 0 : i32
    return %c0_i32, %c0_i32_0 : i32, i32
  }
  func.func @transform_17(%arg0: i32, %arg1: i32, %arg2: memref<2xi32, #tpu.memory_space<smem>>) -> (i32, i32, i32) {
    %c0_i32 = arith.constant 0 : i32
    %c0_i32_0 = arith.constant 0 : i32
    %c0_i32_1 = arith.constant 0 : i32
    return %arg0, %c0_i32, %c0_i32_0 : i32, i32, i32
  }
  func.func @transform_18(%arg0: i32, %arg1: i32, %arg2: memref<2xi32, #tpu.memory_space<smem>>) -> (i32, i32, i32) {
    %c0_i32 = arith.constant 0 : i32
    %c0_i32_0 = arith.constant 0 : i32
    %c0_i32_1 = arith.constant 0 : i32
    return %arg0, %c0_i32, %c0_i32_0 : i32, i32, i32
  }
}

</mosaic_0001>

<llo_original>
// kernel: tpu_custom_call.1
$region0: #{tpu_custom_call.1}
  #allocation0 [shape = 'u32[]', space=smem, size = 0x4, offset = 0x4, fixed_abs, tag = 'smem constant byte address 0x4 - core index']
  #allocation1 [shape = 'u32[144,128]{1,0:T(1,128)}', space=vmem, size = 0x12000, scoped, tag = 'internal scratch']
  #allocation2 [shape = 'f32[16,32]{1,0:T(8,128)}', space=vmem, size = 0x2000, scoped, tag = 'scratch operand']
  #allocation3 [shape = 's32[1]{0}', space=sflag, size = 0x4, scoped, tag = 'scoped memory for tpu_custom_call.1']
  #allocation4 [shape = 'u8[512]{0}', space=smem, size = 0x200, scoped, tag = 'prefetched SMEM operand 0']
  %s0 = inlined_call_operand.vmem [shape: s32[2], index: 0, kind: input, shape index: {}]
  %s1 = inlined_call_operand.vmem [shape: f32[2,16,32], index: 1, kind: input, shape index: {}]
  %s2 = inlined_call_operand.vmem [shape: f32[9,16], index: 2, kind: input, shape index: {}]
  %s3 = inlined_call_operand.vmem [shape: f32[9,16], index: 3, kind: input, shape index: {}]
  %s4 = inlined_call_operand.vmem [shape: f32[2,32,96], index: 4, kind: input, shape index: {}]
  %s5 = inlined_call_operand.vmem [shape: f32[2,1,96], index: 5, kind: input, shape index: {}]
  %s6 = inlined_call_operand.vmem [shape: f32[2,32,32], index: 6, kind: input, shape index: {}]
  %s7 = inlined_call_operand.vmem [shape: f32[2,1,32], index: 7, kind: input, shape index: {}]
  %s8 = inlined_call_operand.vmem [shape: f32[2,1,32], index: 8, kind: input, shape index: {}]
  %s9 = inlined_call_operand.vmem [shape: f32[2,1,32], index: 9, kind: input, shape index: {}]
  %s10 = inlined_call_operand.vmem [shape: f32[2,96,64], index: 10, kind: input, shape index: {}]
  %s11 = inlined_call_operand.vmem [shape: f32[2,1,64], index: 11, kind: input, shape index: {}]
  %s12 = inlined_call_operand.vmem [shape: f32[2,192,32], index: 12, kind: input, shape index: {}]
  %s13 = inlined_call_operand.vmem [shape: f32[2,1,32], index: 13, kind: input, shape index: {}]
  %s14 = inlined_call_operand.vmem [shape: f32[2,1,32], index: 14, kind: input, shape index: {}]
  %s15 = inlined_call_operand.vmem [shape: f32[2,1,32], index: 15, kind: input, shape index: {}]
  %s16 = inlined_call_operand.vmem [shape: f32[32,32], index: 16, kind: input, shape index: {}]
  %s17 = inlined_call_operand.vmem [shape: f32[1,32], index: 17, kind: input, shape index: {}]
  %s18 = inlined_call_operand.hbm [shape: f32[2,16,32], index: 18, kind: output, shape index: {0}]
  %s19 = inlined_call_operand.hbm [shape: f32[2,16,32], index: 19, kind: output, shape index: {1}]
  %20 = xla_tuple %s18, %s19
  %s21 = sld [smem:[#allocation0]]
  $region117: #{tpu_custom_call.1} parent=0
    _
  %s23 = ssub.s32 1, %s21
  %s24 = scalar_select 0, %s23, %s21
  %s25 = sshll.u32 %s0, 4
  %s26 = int_to_ptr.vmem [resolvable:$true] %s25
  %28 = dma.vmem_to_smem %s26, 16, [#allocation4], [#allocation3]
  %29 = dma.done [#allocation3], 16
  %30 = sfence
  $region1: #{tpu_custom_call.1} parent=0
    #allocation5 [shape = 'u8[16384]{0}', space=vmem, size = 0x4000, scoped, tag = 'output window, operand 0']
    #allocation6 [shape = 's32[2]{0}', space=sflag, size = 0x8, scoped, tag = 'scoped memory for tpu_custom_call.1']
    #allocation7 [shape = 'u8[16384]{0}', space=vmem, size = 0x4000, scoped, tag = 'output window, operand 1']
    #allocation8 [shape = 's32[2]{0}', space=sflag, size = 0x8, scoped, tag = 'scoped memory for tpu_custom_call.1']
    %31 = vsyncpa [#allocation6], 0
    %s32 = scalar_lea.sflag [#allocation6], 1
    %33 = vsyncpa %s32, 0
    %34 = vsyncpa [#allocation8], 0
    %s35 = scalar_lea.sflag [#allocation8], 1
    %36 = vsyncpa %s35, 0
    loop: start=0, step=1, limit=6
    $region2: #{tpu_custom_call.1} parent=1 // loop_pre_header
      _
    $region3: #{tpu_custom_call.1} parent=1 // loop_header
      %s38 = sphi 0, %s42
      %p39 = scmp.ge.s32.totalorder %s38, 6
      %s45 = sphi 0, %s57
      %s46 = sphi 0, %s53
      %s47 = sphi 0, %s45
      %s48 = sphi 0, %s46
      %s49 = sphi 0, %s47
      %s50 = sphi 0, %s48
      %s60 = sphi 0, %s62
      %s63 = sphi 0, %s60
      %s64 = sphi 0, %s63
      %s80 = sphi 0, %s64
      %s84 = sphi 0, %s84
      %s86 = sphi 0, %s84
      %s87 = sphi 0, %s86
      %s101 = sphi 0, %s87
      %s105 = sphi 0, %s105
      %s107 = sphi 0, %s105
      %s108 = sphi 0, %s107
      %s122 = sphi 0, %s108
      %s128 = sphi 0, %s130
      %s131 = sphi 0, %s128
      %s132 = sphi 0, %s131
      %s148 = sphi 0, %s132
      %s154 = sphi 0, %s156
      %s157 = sphi 0, %s154
      %s158 = sphi 0, %s157
      %s174 = sphi 0, %s158
      %s180 = sphi 0, %s182
      %s183 = sphi 0, %s180
      %s184 = sphi 0, %s183
      %s200 = sphi 0, %s184
      %s206 = sphi 0, %s208
      %s209 = sphi 0, %s206
      %s210 = sphi 0, %s209
      %s226 = sphi 0, %s210
      %s232 = sphi 0, %s234
      %s235 = sphi 0, %s232
      %s236 = sphi 0, %s235
      %s252 = sphi 0, %s236
      %s258 = sphi 0, %s260
      %s261 = sphi 0, %s258
      %s262 = sphi 0, %s261
      %s278 = sphi 0, %s262
      %s284 = sphi 0, %s286
      %s287 = sphi 0, %s284
      %s288 = sphi 0, %s287
      %s304 = sphi 0, %s288
      %s310 = sphi 0, %s312
      %s313 = sphi 0, %s310
      %s314 = sphi 0, %s313
      %s330 = sphi 0, %s314
      %s336 = sphi 0, %s338
      %s339 = sphi 0, %s336
      %s340 = sphi 0, %s339
      %s356 = sphi 0, %s340
      %s362 = sphi 0, %s364
      %s365 = sphi 0, %s362
      %s366 = sphi 0, %s365
      %s382 = sphi 0, %s366
      %s388 = sphi 0, %s390
      %s391 = sphi 0, %s388
      %s392 = sphi 0, %s391
      %s408 = sphi 0, %s392
      %s414 = sphi 0, %s416
      %s417 = sphi 0, %s414
      %s418 = sphi 0, %s417
      %s434 = sphi 0, %s418
      %s438 = sphi 0, %s438
      %s440 = sphi 0, %s438
      %s441 = sphi 0, %s440
      %s455 = sphi 0, %s441
      %s459 = sphi 0, %s459
      %s461 = sphi 0, %s459
      %s462 = sphi 0, %s461
      %s476 = sphi 0, %s462
      %s482 = sphi 0, %s484
      %s485 = sphi 0, %s482
      %s486 = sphi 0, %s485
      %s502 = sphi 0, %s486
      %s508 = sphi 0, %s510
      %s511 = sphi 0, %s508
      %s512 = sphi 0, %s511
      %s528 = sphi 0, %s512
    $region4: #{tpu_custom_call.1} parent=1 // loop_header_branch
      %41 = sbr.rel (%p39) target = $region8
    $region5: #{tpu_custom_call.1} parent=1 // loop_body
      %s43 = ssub.s32 %s38, 1
      %s44 = ssub.s32 %s38, 2
      %s51 = sadd.s32 1, %s46
      %p52 = scmp.ge.s32.totalorder %s51, 2
      %s53 = scalar_select %p52, 0, %s51
      %s54 = sadd.s32 1, %s45
      %s55 = scalar_select %p52, %s54, %s45
      %p56 = scmp.ge.s32.totalorder %s55, 2
      %s57 = scalar_select %p56, 0, %s55
      %s58 = ssub.s32 %s45, %s57
      %p59 = scmp.eq.s32.totalorder %s58, 0
      %s61 = sadd.s32 %s60, 1
      %s62 = scalar_select %p59, %s60, %s61
      %p65 = pneg %p59
      %p66 = scmp.eq.s32.totalorder %s38, 3
      %p67 = por %p65, %p66
      %p68 = scmp.ne.s32.totalorder %s60, %s63
      %p69 = scmp.eq.s32.totalorder %s38, 0
      %p70 = por %p68, %p69
      %p71 = scmp.ne.s32.totalorder %s60, %s63
      %p72 = scmp.eq.s32.totalorder %s43, 3
      %p73 = por %p71, %p72
      %p74 = scmp.ne.s32.totalorder %s63, %s64
      %p75 = scmp.eq.s32.totalorder %s43, 0
      %p76 = por %p74, %p75
      %p77 = scmp.ne.s32.totalorder %s63, %s64
      %p78 = scmp.eq.s32.totalorder %s44, 3
      %p79 = por %p77, %p78
      %p81 = scmp.ne.s32.totalorder %s64, %s80
      %p82 = scmp.eq.s32.totalorder %s44, 0
      %p83 = por %p81, %p82
      %s85 = sadd.s32 %s84, 1
      %p88 = scmp.eq.s32.totalorder %s38, 3
      %p89 = scmp.ne.s32.totalorder %s84, %s86
      %p90 = scmp.eq.s32.totalorder %s38, 0
      %p91 = por %p89, %p90
      %p92 = scmp.ne.s32.totalorder %s84, %s86
      %p93 = scmp.eq.s32.totalorder %s43, 3
      %p94 = por %p92, %p93
      %p95 = scmp.ne.s32.totalorder %s86, %s87
      %p96 = scmp.eq.s32.totalorder %s43, 0
      %p97 = por %p95, %p96
      %p98 = scmp.ne.s32.totalorder %s86, %s87
      %p99 = scmp.eq.s32.totalorder %s44, 3
      %p100 = por %p98, %p99
      %p102 = scmp.ne.s32.totalorder %s87, %s101
      %p103 = scmp.eq.s32.totalorder %s44, 0
      %p104 = por %p102, %p103
      %s106 = sadd.s32 %s105, 1
      %p109 = scmp.eq.s32.totalorder %s38, 3
      %p110 = scmp.ne.s32.totalorder %s105, %s107
      %p111 = scmp.eq.s32.totalorder %s38, 0
      %p112 = por %p110, %p111
      %p113 = scmp.ne.s32.totalorder %s105, %s107
      %p114 = scmp.eq.s32.totalorder %s43, 3
      %p115 = por %p113, %p114
      %p116 = scmp.ne.s32.totalorder %s107, %s108
      %p117 = scmp.eq.s32.totalorder %s43, 0
      %p118 = por %p116, %p117
      %p119 = scmp.ne.s32.totalorder %s107, %s108
      %p120 = scmp.eq.s32.totalorder %s44, 3
      %p121 = por %p119, %p120
      %p123 = scmp.ne.s32.totalorder %s108, %s122
      %p124 = scmp.eq.s32.totalorder %s44, 0
      %p125 = por %p123, %p124
      %s126 = ssub.s32 %s46, %s53
      %p127 = scmp.eq.s32.totalorder %s126, 0
      %s129 = sadd.s32 %s128, 1
      %s130 = scalar_select %p127, %s128, %s129
      %p133 = pneg %p127
      %p134 = scmp.eq.s32.totalorder %s38, 3
      %p135 = por %p133, %p134
      %p136 = scmp.ne.s32.totalorder %s128, %s131
      %p137 = scmp.eq.s32.totalorder %s38, 0
      %p138 = por %p136, %p137
      %p139 = scmp.ne.s32.totalorder %s128, %s131
      %p140 = scmp.eq.s32.totalorder %s43, 3
      %p141 = por %p139, %p140
      %p142 = scmp.ne.s32.totalorder %s131, %s132
      %p143 = scmp.eq.s32.totalorder %s43, 0
      %p144 = por %p142, %p143
      %p145 = scmp.ne.s32.totalorder %s131, %s132
      %p146 = scmp.eq.s32.totalorder %s44, 3
      %p147 = por %p145, %p146
      %p149 = scmp.ne.s32.totalorder %s132, %s148
      %p150 = scmp.eq.s32.totalorder %s44, 0
      %p151 = por %p149, %p150
      %s152 = ssub.s32 %s46, %s53
      %p153 = scmp.eq.s32.totalorder %s152, 0
      %s155 = sadd.s32 %s154, 1
      %s156 = scalar_select %p153, %s154, %s155
      %p159 = pneg %p153
      %p160 = scmp.eq.s32.totalorder %s38, 3
      %p161 = por %p159, %p160
      %p162 = scmp.ne.s32.totalorder %s154, %s157
      %p163 = scmp.eq.s32.totalorder %s38, 0
      %p164 = por %p162, %p163
      %p165 = scmp.ne.s32.totalorder %s154, %s157
      %p166 = scmp.eq.s32.totalorder %s43, 3
      %p167 = por %p165, %p166
      %p168 = scmp.ne.s32.totalorder %s157, %s158
      %p169 = scmp.eq.s32.totalorder %s43, 0
      %p170 = por %p168, %p169
      %p171 = scmp.ne.s32.totalorder %s157, %s158
      %p172 = scmp.eq.s32.totalorder %s44, 3
      %p173 = por %p171, %p172
      %p175 = scmp.ne.s32.totalorder %s158, %s174
      %p176 = scmp.eq.s32.totalorder %s44, 0
      %p177 = por %p175, %p176
      %s178 = ssub.s32 %s46, %s53
      %p179 = scmp.eq.s32.totalorder %s178, 0
      %s181 = sadd.s32 %s180, 1
      %s182 = scalar_select %p179, %s180, %s181
      %p185 = pneg %p179
      %p186 = scmp.eq.s32.totalorder %s38, 3
      %p187 = por %p185, %p186
      %p188 = scmp.ne.s32.totalorder %s180, %s183
      %p189 = scmp.eq.s32.totalorder %s38, 0
      %p190 = por %p188, %p189
      %p191 = scmp.ne.s32.totalorder %s180, %s183
      %p192 = scmp.eq.s32.totalorder %s43, 3
      %p193 = por %p191, %p192
      %p194 = scmp.ne.s32.totalorder %s183, %s184
      %p195 = scmp.eq.s32.totalorder %s43, 0
      %p196 = por %p194, %p195
      %p197 = scmp.ne.s32.totalorder %s183, %s184
      %p198 = scmp.eq.s32.totalorder %s44, 3
      %p199 = por %p197, %p198
      %p201 = scmp.ne.s32.totalorder %s184, %s200
      %p202 = scmp.eq.s32.totalorder %s44, 0
      %p203 = por %p201, %p202
      %s204 = ssub.s32 %s46, %s53
      %p205 = scmp.eq.s32.totalorder %s204, 0
      %s207 = sadd.s32 %s206, 1
      %s208 = scalar_select %p205, %s206, %s207
      %p211 = pneg %p205
      %p212 = scmp.eq.s32.totalorder %s38, 3
      %p213 = por %p211, %p212
      %p214 = scmp.ne.s32.totalorder %s206, %s209
      %p215 = scmp.eq.s32.totalorder %s38, 0
      %p216 = por %p214, %p215
      %p217 = scmp.ne.s32.totalorder %s206, %s209
      %p218 = scmp.eq.s32.totalorder %s43, 3
      %p219 = por %p217, %p218
      %p220 = scmp.ne.s32.totalorder %s209, %s210
      %p221 = scmp.eq.s32.totalorder %s43, 0
      %p222 = por %p220, %p221
      %p223 = scmp.ne.s32.totalorder %s209, %s210
      %p224 = scmp.eq.s32.totalorder %s44, 3
      %p225 = por %p223, %p224
      %p227 = scmp.ne.s32.totalorder %s210, %s226
      %p228 = scmp.eq.s32.totalorder %s44, 0
      %p229 = por %p227, %p228
      %s230 = ssub.s32 %s46, %s53
      %p231 = scmp.eq.s32.totalorder %s230, 0
      %s233 = sadd.s32 %s232, 1
      %s234 = scalar_select %p231, %s232, %s233
      %p237 = pneg %p231
      %p238 = scmp.eq.s32.totalorder %s38, 3
      %p239 = por %p237, %p238
      %p240 = scmp.ne.s32.totalorder %s232, %s235
      %p241 = scmp.eq.s32.totalorder %s38, 0
      %p242 = por %p240, %p241
      %p243 = scmp.ne.s32.totalorder %s232, %s235
      %p244 = scmp.eq.s32.totalorder %s43, 3
      %p245 = por %p243, %p244
      %p246 = scmp.ne.s32.totalorder %s235, %s236
      %p247 = scmp.eq.s32.totalorder %s43, 0
      %p248 = por %p246, %p247
      %p249 = scmp.ne.s32.totalorder %s235, %s236
      %p250 = scmp.eq.s32.totalorder %s44, 3
      %p251 = por %p249, %p250
      %p253 = scmp.ne.s32.totalorder %s236, %s252
      %p254 = scmp.eq.s32.totalorder %s44, 0
      %p255 = por %p253, %p254
      %s256 = ssub.s32 %s46, %s53
      %p257 = scmp.eq.s32.totalorder %s256, 0
      %s259 = sadd.s32 %s258, 1
      %s260 = scalar_select %p257, %s258, %s259
      %p263 = pneg %p257
      %p264 = scmp.eq.s32.totalorder %s38, 3
      %p265 = por %p263, %p264
      %p266 = scmp.ne.s32.totalorder %s258, %s261
      %p267 = scmp.eq.s32.totalorder %s38, 0
      %p268 = por %p266, %p267
      %p269 = scmp.ne.s32.totalorder %s258, %s261
      %p270 = scmp.eq.s32.totalorder %s43, 3
      %p271 = por %p269, %p270
      %p272 = scmp.ne.s32.totalorder %s261, %s262
      %p273 = scmp.eq.s32.totalorder %s43, 0
      %p274 = por %p272, %p273
      %p275 = scmp.ne.s32.totalorder %s261, %s262
      %p276 = scmp.eq.s32.totalorder %s44, 3
      %p277 = por %p275, %p276
      %p279 = scmp.ne.s32.totalorder %s262, %s278
      %p280 = scmp.eq.s32.totalorder %s44, 0
      %p281 = por %p279, %p280
      %s282 = ssub.s32 %s46, %s53
      %p283 = scmp.eq.s32.totalorder %s282, 0
      %s285 = sadd.s32 %s284, 1
      %s286 = scalar_select %p283, %s284, %s285
      %p289 = pneg %p283
      %p290 = scmp.eq.s32.totalorder %s38, 3
      %p291 = por %p289, %p290
      %p292 = scmp.ne.s32.totalorder %s284, %s287
      %p293 = scmp.eq.s32.totalorder %s38, 0
      %p294 = por %p292, %p293
      %p295 = scmp.ne.s32.totalorder %s284, %s287
      %p296 = scmp.eq.s32.totalorder %s43, 3
      %p297 = por %p295, %p296
      %p298 = scmp.ne.s32.totalorder %s287, %s288
      %p299 = scmp.eq.s32.totalorder %s43, 0
      %p300 = por %p298, %p299
      %p301 = scmp.ne.s32.totalorder %s287, %s288
      %p302 = scmp.eq.s32.totalorder %s44, 3
      %p303 = por %p301, %p302
      %p305 = scmp.ne.s32.totalorder %s288, %s304
      %p306 = scmp.eq.s32.totalorder %s44, 0
      %p307 = por %p305, %p306
      %s308 = ssub.s32 %s46, %s53
      %p309 = scmp.eq.s32.totalorder %s308, 0
      %s311 = sadd.s32 %s310, 1
      %s312 = scalar_select %p309, %s310, %s311
      %p315 = pneg %p309
      %p316 = scmp.eq.s32.totalorder %s38, 3
      %p317 = por %p315, %p316
      %p318 = scmp.ne.s32.totalorder %s310, %s313
      %p319 = scmp.eq.s32.totalorder %s38, 0
      %p320 = por %p318, %p319
      %p321 = scmp.ne.s32.totalorder %s310, %s313
      %p322 = scmp.eq.s32.totalorder %s43, 3
      %p323 = por %p321, %p322
      %p324 = scmp.ne.s32.totalorder %s313, %s314
      %p325 = scmp.eq.s32.totalorder %s43, 0
      %p326 = por %p324, %p325
      %p327 = scmp.ne.s32.totalorder %s313, %s314
      %p328 = scmp.eq.s32.totalorder %s44, 3
      %p329 = por %p327, %p328
      %p331 = scmp.ne.s32.totalorder %s314, %s330
      %p332 = scmp.eq.s32.totalorder %s44, 0
      %p333 = por %p331, %p332
      %s334 = ssub.s32 %s46, %s53
      %p335 = scmp.eq.s32.totalorder %s334, 0
      %s337 = sadd.s32 %s336, 1
      %s338 = scalar_select %p335, %s336, %s337
      %p341 = pneg %p335
      %p342 = scmp.eq.s32.totalorder %s38, 3
      %p343 = por %p341, %p342
      %p344 = scmp.ne.s32.totalorder %s336, %s339
      %p345 = scmp.eq.s32.totalorder %s38, 0
      %p346 = por %p344, %p345
      %p347 = scmp.ne.s32.totalorder %s336, %s339
      %p348 = scmp.eq.s32.totalorder %s43, 3
      %p349 = por %p347, %p348
      %p350 = scmp.ne.s32.totalorder %s339, %s340
      %p351 = scmp.eq.s32.totalorder %s43, 0
      %p352 = por %p350, %p351
      %p353 = scmp.ne.s32.totalorder %s339, %s340
      %p354 = scmp.eq.s32.totalorder %s44, 3
      %p355 = por %p353, %p354
      %p357 = scmp.ne.s32.totalorder %s340, %s356
      %p358 = scmp.eq.s32.totalorder %s44, 0
      %p359 = por %p357, %p358
      %s360 = ssub.s32 %s46, %s53
      %p361 = scmp.eq.s32.totalorder %s360, 0
      %s363 = sadd.s32 %s362, 1
      %s364 = scalar_select %p361, %s362, %s363
      %p367 = pneg %p361
      %p368 = scmp.eq.s32.totalorder %s38, 3
      %p369 = por %p367, %p368
      %p370 = scmp.ne.s32.totalorder %s362, %s365
      %p371 = scmp.eq.s32.totalorder %s38, 0
      %p372 = por %p370, %p371
      %p373 = scmp.ne.s32.totalorder %s362, %s365
      %p374 = scmp.eq.s32.totalorder %s43, 3
      %p375 = por %p373, %p374
      %p376 = scmp.ne.s32.totalorder %s365, %s366
      %p377 = scmp.eq.s32.totalorder %s43, 0
      %p378 = por %p376, %p377
      %p379 = scmp.ne.s32.totalorder %s365, %s366
      %p380 = scmp.eq.s32.totalorder %s44, 3
      %p381 = por %p379, %p380
      %p383 = scmp.ne.s32.totalorder %s366, %s382
      %p384 = scmp.eq.s32.totalorder %s44, 0
      %p385 = por %p383, %p384
      %s386 = ssub.s32 %s46, %s53
      %p387 = scmp.eq.s32.totalorder %s386, 0
      %s389 = sadd.s32 %s388, 1
      %s390 = scalar_select %p387, %s388, %s389
      %p393 = pneg %p387
      %p394 = scmp.eq.s32.totalorder %s38, 3
      %p395 = por %p393, %p394
      %p396 = scmp.ne.s32.totalorder %s388, %s391
      %p397 = scmp.eq.s32.totalorder %s38, 0
      %p398 = por %p396, %p397
      %p399 = scmp.ne.s32.totalorder %s388, %s391
      %p400 = scmp.eq.s32.totalorder %s43, 3
      %p401 = por %p399, %p400
      %p402 = scmp.ne.s32.totalorder %s391, %s392
      %p403 = scmp.eq.s32.totalorder %s43, 0
      %p404 = por %p402, %p403
      %p405 = scmp.ne.s32.totalorder %s391, %s392
      %p406 = scmp.eq.s32.totalorder %s44, 3
      %p407 = por %p405, %p406
      %p409 = scmp.ne.s32.totalorder %s392, %s408
      %p410 = scmp.eq.s32.totalorder %s44, 0
      %p411 = por %p409, %p410
      %s412 = ssub.s32 %s46, %s53
      %p413 = scmp.eq.s32.totalorder %s412, 0
      %s415 = sadd.s32 %s414, 1
      %s416 = scalar_select %p413, %s414, %s415
      %p419 = pneg %p413
      %p420 = scmp.eq.s32.totalorder %s38, 3
      %p421 = por %p419, %p420
      %p422 = scmp.ne.s32.totalorder %s414, %s417
      %p423 = scmp.eq.s32.totalorder %s38, 0
      %p424 = por %p422, %p423
      %p425 = scmp.ne.s32.totalorder %s414, %s417
      %p426 = scmp.eq.s32.totalorder %s43, 3
      %p427 = por %p425, %p426
      %p428 = scmp.ne.s32.totalorder %s417, %s418
      %p429 = scmp.eq.s32.totalorder %s43, 0
      %p430 = por %p428, %p429
      %p431 = scmp.ne.s32.totalorder %s417, %s418
      %p432 = scmp.eq.s32.totalorder %s44, 3
      %p433 = por %p431, %p432
      %p435 = scmp.ne.s32.totalorder %s418, %s434
      %p436 = scmp.eq.s32.totalorder %s44, 0
      %p437 = por %p435, %p436
      %s439 = sadd.s32 %s438, 1
      %p442 = scmp.eq.s32.totalorder %s38, 3
      %p443 = scmp.ne.s32.totalorder %s438, %s440
      %p444 = scmp.eq.s32.totalorder %s38, 0
      %p445 = por %p443, %p444
      %p446 = scmp.ne.s32.totalorder %s438, %s440
      %p447 = scmp.eq.s32.totalorder %s43, 3
      %p448 = por %p446, %p447
      %p449 = scmp.ne.s32.totalorder %s440, %s441
      %p450 = scmp.eq.s32.totalorder %s43, 0
      %p451 = por %p449, %p450
      %p452 = scmp.ne.s32.totalorder %s440, %s441
      %p453 = scmp.eq.s32.totalorder %s44, 3
      %p454 = por %p452, %p453
      %p456 = scmp.ne.s32.totalorder %s441, %s455
      %p457 = scmp.eq.s32.totalorder %s44, 0
      %p458 = por %p456, %p457
      %s460 = sadd.s32 %s459, 1
      %p463 = scmp.eq.s32.totalorder %s38, 3
      %p464 = scmp.ne.s32.totalorder %s459, %s461
      %p465 = scmp.eq.s32.totalorder %s38, 0
      %p466 = por %p464, %p465
      %p467 = scmp.ne.s32.totalorder %s459, %s461
      %p468 = scmp.eq.s32.totalorder %s43, 3
      %p469 = por %p467, %p468
      %p470 = scmp.ne.s32.totalorder %s461, %s462
      %p471 = scmp.eq.s32.totalorder %s43, 0
      %p472 = por %p470, %p471
      %p473 = scmp.ne.s32.totalorder %s461, %s462
      %p474 = scmp.eq.s32.totalorder %s44, 3
      %p475 = por %p473, %p474
      %p477 = scmp.ne.s32.totalorder %s462, %s476
      %p478 = scmp.eq.s32.totalorder %s44, 0
      %p479 = por %p477, %p478
      %s480 = ssub.s32 %s45, %s57
      %p481 = scmp.eq.s32.totalorder %s480, 0
      %s483 = sadd.s32 %s482, 1
      %s484 = scalar_select %p481, %s482, %s483
      %p487 = pneg %p481
      %p488 = scmp.eq.s32.totalorder %s38, 3
      %p489 = por %p487, %p488
      %p490 = scmp.ne.s32.totalorder %s482, %s485
      %p491 = scmp.eq.s32.totalorder %s38, 0
      %p492 = por %p490, %p491
      %p493 = scmp.ne.s32.totalorder %s482, %s485
      %p494 = scmp.eq.s32.totalorder %s43, 3
      %p495 = por %p493, %p494
      %p496 = scmp.ne.s32.totalorder %s485, %s486
      %p497 = scmp.eq.s32.totalorder %s43, 0
      %p498 = por %p496, %p497
      %p499 = scmp.ne.s32.totalorder %s485, %s486
      %p500 = scmp.eq.s32.totalorder %s44, 3
      %p501 = por %p499, %p500
      %p503 = scmp.ne.s32.totalorder %s486, %s502
      %p504 = scmp.eq.s32.totalorder %s44, 0
      %p505 = por %p503, %p504
      %s506 = ssub.s32 %s45, %s57
      %p507 = scmp.eq.s32.totalorder %s506, 0
      %s509 = sadd.s32 %s508, 1
      %s510 = scalar_select %p507, %s508, %s509
      %p513 = pneg %p507
      %p514 = scmp.eq.s32.totalorder %s38, 3
      %p515 = por %p513, %p514
      %p516 = scmp.ne.s32.totalorder %s508, %s511
      %p517 = scmp.eq.s32.totalorder %s38, 0
      %p518 = por %p516, %p517
      %p519 = scmp.ne.s32.totalorder %s508, %s511
      %p520 = scmp.eq.s32.totalorder %s43, 3
      %p521 = por %p519, %p520
      %p522 = scmp.ne.s32.totalorder %s511, %s512
      %p523 = scmp.eq.s32.totalorder %s43, 0
      %p524 = por %p522, %p523
      %p525 = scmp.ne.s32.totalorder %s511, %s512
      %p526 = scmp.eq.s32.totalorder %s44, 3
      %p527 = por %p525, %p526
      %p529 = scmp.ne.s32.totalorder %s512, %s528
      %p530 = scmp.eq.s32.totalorder %s44, 0
      %p531 = por %p529, %p530
      %p532 = scmp.le.s32.totalorder 1, %s38
      %p533 = scmp.lt.s32.totalorder %s38, 5
      %p534 = pnand %p532, %p533
      %p535 = pneg %p534
      // Predicated region
      $region9: #{tpu_custom_call.1} parent=5 // pred_check
        _
      $region10: #{tpu_custom_call.1} parent=5 // pred_check_branch
        %537 = sbr.rel (%p534) target = $region12
      $region11: #{tpu_custom_call.1} parent=5 // pred_region
        %s538 = ssub.s32 %s38, 1
        // Predicated region
        $region13: #{tpu_custom_call.1} parent=11 // pred_check
          %p539 = pneg %p97
        $region14: #{tpu_custom_call.1} parent=11 // pred_check_branch
          %541 = sbr.rel (%p539) target = $region16
        $region15: #{tpu_custom_call.1} parent=11 // pred_region
          _
        $region16: #{tpu_custom_call.1} parent=11 // pred_fallthru
          _
        // Predicated region
        $region17: #{tpu_custom_call.1} parent=11 // pred_check
          %p542 = pneg %p118
        $region18: #{tpu_custom_call.1} parent=11 // pred_check_branch
          %544 = sbr.rel (%p542) target = $region20
        $region19: #{tpu_custom_call.1} parent=11 // pred_region
          _
        $region20: #{tpu_custom_call.1} parent=11 // pred_fallthru
          _
        // Predicated region
        $region21: #{tpu_custom_call.1} parent=11 // pred_check
          %p545 = pneg %p451
        $region22: #{tpu_custom_call.1} parent=11 // pred_check_branch
          %547 = sbr.rel (%p545) target = $region24
        $region23: #{tpu_custom_call.1} parent=11 // pred_region
          _
        $region24: #{tpu_custom_call.1} parent=11 // pred_fallthru
          _
        // Predicated region
        $region25: #{tpu_custom_call.1} parent=11 // pred_check
          %p548 = pneg %p472
        $region26: #{tpu_custom_call.1} parent=11 // pred_check_branch
          %550 = sbr.rel (%p548) target = $region28
        $region27: #{tpu_custom_call.1} parent=11 // pred_region
          _
        $region28: #{tpu_custom_call.1} parent=11 // pred_fallthru
          _
      $region12: #{tpu_custom_call.1} parent=5 // pred_fallthru
        _
      %p551 = scmp.lt.s32.totalorder %s38, 4
      // Predicated region
      $region29: #{tpu_custom_call.1} parent=5 // pred_check
        %p552 = pneg %p551
      $region30: #{tpu_custom_call.1} parent=5 // pred_check_branch
        %554 = sbr.rel (%p552) target = $region32
      $region31: #{tpu_custom_call.1} parent=5 // pred_region
        // Predicated region
        $region33: #{tpu_custom_call.1} parent=31 // pred_check
          %p555 = pneg %p70
        $region34: #{tpu_custom_call.1} parent=31 // pred_check_branch
          %557 = sbr.rel (%p555) target = $region36
        $region35: #{tpu_custom_call.1} parent=31 // pred_region
          %p558 = scmp.lt.s32.totalorder %s45, 1
          %s559 = scalar_select %p558, %s45, 1
          %s560 = smul.addr %s559, 2
          %s561 = smul.addr %s560, 8
          %s562 = scalar_lea.vmem %s1, %s561
        $region36: #{tpu_custom_call.1} parent=31 // pred_fallthru
          _
        // Predicated region
        $region37: #{tpu_custom_call.1} parent=31 // pred_check
          %p563 = pneg %p138
        $region38: #{tpu_custom_call.1} parent=31 // pred_check_branch
          %565 = sbr.rel (%p563) target = $region40
        $region39: #{tpu_custom_call.1} parent=31 // pred_region
          %p566 = scmp.lt.s32.totalorder %s46, 1
          %s567 = scalar_select %p566, %s46, 1
          %s568 = smul.addr %s567, 4
          %s569 = smul.addr %s568, 8
          %s570 = scalar_lea.vmem %s4, %s569
        $region40: #{tpu_custom_call.1} parent=31 // pred_fallthru
          _
        // Predicated region
        $region41: #{tpu_custom_call.1} parent=31 // pred_check
          %p571 = pneg %p164
        $region42: #{tpu_custom_call.1} parent=31 // pred_check_branch
          %573 = sbr.rel (%p571) target = $region44
        $region43: #{tpu_custom_call.1} parent=31 // pred_region
          %p574 = scmp.lt.s32.totalorder %s46, 1
          %s575 = scalar_select %p574, %s46, 1
          %s576 = scalar_lea.vmem %s5, %s575
        $region44: #{tpu_custom_call.1} parent=31 // pred_fallthru
          _
        // Predicated region
        $region45: #{tpu_custom_call.1} parent=31 // pred_check
          %p577 = pneg %p190
        $region46: #{tpu_custom_call.1} parent=31 // pred_check_branch
          %579 = sbr.rel (%p577) target = $region48
        $region47: #{tpu_custom_call.1} parent=31 // pred_region
          %p580 = scmp.lt.s32.totalorder %s46, 1
          %s581 = scalar_select %p580, %s46, 1
          %s582 = smul.addr %s581, 4
          %s583 = smul.addr %s582, 8
          %s584 = scalar_lea.vmem %s6, %s583
        $region48: #{tpu_custom_call.1} parent=31 // pred_fallthru
          _
        // Predicated region
        $region49: #{tpu_custom_call.1} parent=31 // pred_check
          %p585 = pneg %p216
        $region50: #{tpu_custom_call.1} parent=31 // pred_check_branch
          %587 = sbr.rel (%p585) target = $region52
        $region51: #{tpu_custom_call.1} parent=31 // pred_region
          %p588 = scmp.lt.s32.totalorder %s46, 1
          %s589 = scalar_select %p588, %s46, 1
          %s590 = scalar_lea.vmem %s7, %s589
        $region52: #{tpu_custom_call.1} parent=31 // pred_fallthru
          _
        // Predicated region
        $region53: #{tpu_custom_call.1} parent=31 // pred_check
          %p591 = pneg %p242
        $region54: #{tpu_custom_call.1} parent=31 // pred_check_branch
          %593 = sbr.rel (%p591) target = $region56
        $region55: #{tpu_custom_call.1} parent=31 // pred_region
          %p594 = scmp.lt.s32.totalorder %s46, 1
          %s595 = scalar_select %p594, %s46, 1
          %s596 = scalar_lea.vmem %s8, %s595
        $region56: #{tpu_custom_call.1} parent=31 // pred_fallthru
          _
        // Predicated region
        $region57: #{tpu_custom_call.1} parent=31 // pred_check
          %p597 = pneg %p268
        $region58: #{tpu_custom_call.1} parent=31 // pred_check_branch
          %599 = sbr.rel (%p597) target = $region60
        $region59: #{tpu_custom_call.1} parent=31 // pred_region
          %p600 = scmp.lt.s32.totalorder %s46, 1
          %s601 = scalar_select %p600, %s46, 1
          %s602 = scalar_lea.vmem %s9, %s601
        $region60: #{tpu_custom_call.1} parent=31 // pred_fallthru
          _
        // Predicated region
        $region61: #{tpu_custom_call.1} parent=31 // pred_check
          %p603 = pneg %p294
        $region62: #{tpu_custom_call.1} parent=31 // pred_check_branch
          %605 = sbr.rel (%p603) target = $region64
        $region63: #{tpu_custom_call.1} parent=31 // pred_region
          %p606 = scmp.lt.s32.totalorder %s46, 1
          %s607 = scalar_select %p606, %s46, 1
          %s608 = smul.addr %s607, 12
          %s609 = smul.addr %s608, 8
          %s610 = scalar_lea.vmem %s10, %s609
        $region64: #{tpu_custom_call.1} parent=31 // pred_fallthru
          _
        // Predicated region
        $region65: #{tpu_custom_call.1} parent=31 // pred_check
          %p611 = pneg %p320
        $region66: #{tpu_custom_call.1} parent=31 // pred_check_branch
          %613 = sbr.rel (%p611) target = $region68
        $region67: #{tpu_custom_call.1} parent=31 // pred_region
          %p614 = scmp.lt.s32.totalorder %s46, 1
          %s615 = scalar_select %p614, %s46, 1
          %s616 = scalar_lea.vmem %s11, %s615
        $region68: #{tpu_custom_call.1} parent=31 // pred_fallthru
          _
        // Predicated region
        $region69: #{tpu_custom_call.1} parent=31 // pred_check
          %p617 = pneg %p346
        $region70: #{tpu_custom_call.1} parent=31 // pred_check_branch
          %619 = sbr.rel (%p617) target = $region72
        $region71: #{tpu_custom_call.1} parent=31 // pred_region
          %p620 = scmp.lt.s32.totalorder %s46, 1
          %s621 = scalar_select %p620, %s46, 1
          %s622 = smul.addr %s621, 24
          %s623 = smul.addr %s622, 8
          %s624 = scalar_lea.vmem %s12, %s623
        $region72: #{tpu_custom_call.1} parent=31 // pred_fallthru
          _
        // Predicated region
        $region73: #{tpu_custom_call.1} parent=31 // pred_check
          %p625 = pneg %p372
        $region74: #{tpu_custom_call.1} parent=31 // pred_check_branch
          %627 = sbr.rel (%p625) target = $region76
        $region75: #{tpu_custom_call.1} parent=31 // pred_region
          %p628 = scmp.lt.s32.totalorder %s46, 1
          %s629 = scalar_select %p628, %s46, 1
          %s630 = scalar_lea.vmem %s13, %s629
        $region76: #{tpu_custom_call.1} parent=31 // pred_fallthru
          _
        // Predicated region
        $region77: #{tpu_custom_call.1} parent=31 // pred_check
          %p631 = pneg %p398
        $region78: #{tpu_custom_call.1} parent=31 // pred_check_branch
          %633 = sbr.rel (%p631) target = $region80
        $region79: #{tpu_custom_call.1} parent=31 // pred_region
          %p634 = scmp.lt.s32.totalorder %s46, 1
          %s635 = scalar_select %p634, %s46, 1
          %s636 = scalar_lea.vmem %s14, %s635
        $region80: #{tpu_custom_call.1} parent=31 // pred_fallthru
          _
        // Predicated region
        $region81: #{tpu_custom_call.1} parent=31 // pred_check
          %p637 = pneg %p424
        $region82: #{tpu_custom_call.1} parent=31 // pred_check_branch
          %639 = sbr.rel (%p637) target = $region84
        $region83: #{tpu_custom_call.1} parent=31 // pred_region
          %p640 = scmp.lt.s32.totalorder %s46, 1
          %s641 = scalar_select %p640, %s46, 1
          %s642 = scalar_lea.vmem %s15, %s641
        $region84: #{tpu_custom_call.1} parent=31 // pred_fallthru
          _
      $region32: #{tpu_custom_call.1} parent=5 // pred_fallthru
        _
      %p643 = scmp.le.s32.totalorder 1, %s38
      %p644 = scmp.lt.s32.totalorder %s38, 5
      %p645 = pnand %p643, %p644
      %p646 = pneg %p645
      // Predicated region
      $region85: #{tpu_custom_call.1} parent=5 // pred_check
        _
      $region86: #{tpu_custom_call.1} parent=5 // pred_check_branch
        %648 = sbr.rel (%p645) target = $region88
      $region87: #{tpu_custom_call.1} parent=5 // pred_region
        %s649 = ssub.s32 %s38, 1
        %p650 = scmp.lt.s32.totalorder %s47, 1
        %s651 = scalar_select %p650, %s47, 1
        %s652 = smul.addr %s651, 2
        %s653 = smul.addr %s652, 8
        %s654 = scalar_lea.vmem %s1, %s653
        %p655 = pneg %p76
        %p656 = pneg %p73
        %p657 = pneg %p97
        %p658 = pneg %p94
        %p659 = pneg %p118
        %p660 = pneg %p115
        %p661 = scmp.lt.s32.totalorder %s48, 1
        %s662 = scalar_select %p661, %s48, 1
        %s663 = smul.addr %s662, 4
        %s664 = smul.addr %s663, 8
        %s665 = scalar_lea.vmem %s4, %s664
        %p666 = pneg %p144
        %p667 = pneg %p141
        %p668 = scmp.lt.s32.totalorder %s48, 1
        %s669 = scalar_select %p668, %s48, 1
        %s670 = scalar_lea.vmem %s5, %s669
        %p671 = pneg %p170
        %p672 = pneg %p167
        %p673 = scmp.lt.s32.totalorder %s48, 1
        %s674 = scalar_select %p673, %s48, 1
        %s675 = smul.addr %s674, 4
        %s676 = smul.addr %s675, 8
        %s677 = scalar_lea.vmem %s6, %s676
        %p678 = pneg %p196
        %p679 = pneg %p193
        %p680 = scmp.lt.s32.totalorder %s48, 1
        %s681 = scalar_select %p680, %s48, 1
        %s682 = scalar_lea.vmem %s7, %s681
        %p683 = pneg %p222
        %p684 = pneg %p219
        %p685 = scmp.lt.s32.totalorder %s48, 1
        %s686 = scalar_select %p685, %s48, 1
        %s687 = scalar_lea.vmem %s8, %s686
        %p688 = pneg %p248
        %p689 = pneg %p245
        %p690 = scmp.lt.s32.totalorder %s48, 1
        %s691 = scalar_select %p690, %s48, 1
        %s692 = scalar_lea.vmem %s9, %s691
        %p693 = pneg %p274
        %p694 = pneg %p271
        %p695 = scmp.lt.s32.totalorder %s48, 1
        %s696 = scalar_select %p695, %s48, 1
        %s697 = smul.addr %s696, 12
        %s698 = smul.addr %s697, 8
        %s699 = scalar_lea.vmem %s10, %s698
        %p700 = pneg %p300
        %p701 = pneg %p297
        %p702 = scmp.lt.s32.totalorder %s48, 1
        %s703 = scalar_select %p702, %s48, 1
        %s704 = scalar_lea.vmem %s11, %s703
        %p705 = pneg %p326
        %p706 = pneg %p323
        %p707 = scmp.lt.s32.totalorder %s48, 1
        %s708 = scalar_select %p707, %s48, 1
        %s709 = smul.addr %s708, 24
        %s710 = smul.addr %s709, 8
        %s711 = scalar_lea.vmem %s12, %s710
        %p712 = pneg %p352
        %p713 = pneg %p349
        %p714 = scmp.lt.s32.totalorder %s48, 1
        %s715 = scalar_select %p714, %s48, 1
        %s716 = scalar_lea.vmem %s13, %s715
        %p717 = pneg %p378
        %p718 = pneg %p375
        %p719 = scmp.lt.s32.totalorder %s48, 1
        %s720 = scalar_select %p719, %s48, 1
        %s721 = scalar_lea.vmem %s14, %s720
        %p722 = pneg %p404
        %p723 = pneg %p401
        %p724 = scmp.lt.s32.totalorder %s48, 1
        %s725 = scalar_select %p724, %s48, 1
        %s726 = scalar_lea.vmem %s15, %s725
        %p727 = pneg %p430
        %p728 = pneg %p427
        %p729 = pneg %p451
        %p730 = pneg %p448
        %p731 = pneg %p472
        %p732 = pneg %p469
        %p733 = pneg %p498
        %p734 = pneg %p495
        %s735 = sand.u32 %s485, 1
        %s736 = scalar_lea.sflag [#allocation6], %s735
        %s737 = sand.u32 %s485, 1
        %s738 = smul.addr %s737, 16
        %s739 = scalar_lea.vmem [#allocation5], %s738
        %p740 = pneg %p524
        %p741 = pneg %p521
        %s742 = sand.u32 %s511, 1
        %s743 = scalar_lea.sflag [#allocation8], %s742
        %s744 = sand.u32 %s511, 1
        %s745 = smul.addr %s744, 16
        %s746 = scalar_lea.vmem [#allocation7], %s745
        %p747 = scmp.lt.s32.totalorder %s47, 1
        %s748 = scalar_select %p747, %s47, 1
        %s749 = smul.addr %s748, 2
        %s750 = smul.addr %s749, 8
        %s751 = scalar_lea.vmem %s1, %s750
        %p752 = scmp.lt.s32.totalorder %s48, 1
        %s753 = scalar_select %p752, %s48, 1
        %s754 = smul.addr %s753, 4
        %s755 = smul.addr %s754, 8
        %s756 = scalar_lea.vmem %s4, %s755
        %p757 = scmp.lt.s32.totalorder %s48, 1
        %s758 = scalar_select %p757, %s48, 1
        %s759 = scalar_lea.vmem %s5, %s758
        %p760 = scmp.lt.s32.totalorder %s48, 1
        %s761 = scalar_select %p760, %s48, 1
        %s762 = smul.addr %s761, 4
        %s763 = smul.addr %s762, 8
        %s764 = scalar_lea.vmem %s6, %s763
        %p765 = scmp.lt.s32.totalorder %s48, 1
        %s766 = scalar_select %p765, %s48, 1
        %s767 = scalar_lea.vmem %s7, %s766
        %p768 = scmp.lt.s32.totalorder %s48, 1
        %s769 = scalar_select %p768, %s48, 1
        %s770 = scalar_lea.vmem %s8, %s769
        %p771 = scmp.lt.s32.totalorder %s48, 1
        %s772 = scalar_select %p771, %s48, 1
        %s773 = scalar_lea.vmem %s9, %s772
        %p774 = scmp.lt.s32.totalorder %s48, 1
        %s775 = scalar_select %p774, %s48, 1
        %s776 = smul.addr %s775, 12
        %s777 = smul.addr %s776, 8
        %s778 = scalar_lea.vmem %s10, %s777
        %p779 = scmp.lt.s32.totalorder %s48, 1
        %s780 = scalar_select %p779, %s48, 1
        %s781 = scalar_lea.vmem %s11, %s780
        %p782 = scmp.lt.s32.totalorder %s48, 1
        %s783 = scalar_select %p782, %s48, 1
        %s784 = smul.addr %s783, 24
        %s785 = smul.addr %s784, 8
        %s786 = scalar_lea.vmem %s12, %s785
        %p787 = scmp.lt.s32.totalorder %s48, 1
        %s788 = scalar_select %p787, %s48, 1
        %s789 = scalar_lea.vmem %s13, %s788
        %p790 = scmp.lt.s32.totalorder %s48, 1
        %s791 = scalar_select %p790, %s48, 1
        %s792 = scalar_lea.vmem %s14, %s791
        %p793 = scmp.lt.s32.totalorder %s48, 1
        %s794 = scalar_select %p793, %s48, 1
        %s795 = scalar_lea.vmem %s15, %s794
        %s796 = sld [smem:[#allocation4 + %s47]]
        %v797 = vlaneseq
        %v798 = vshrl.u32 %v797, 7
        %v799 = vadd.s32 %v798, 8
        %v800 = vstv %s796
        %vm801 = vcmp.lt.s32.totalorder %v798, %v800
        %vm802 = vcmp.lt.s32.totalorder %v799, %v800
        %v803 = vsel %vm801, 1, 0
        %v804 = vsel %vm802, 1, 0
        %v805 = vcvt.s32.f32 %v803
        %v806 = vcvt.s32.f32 %v804
        %p807 = scmp.eq.s32.totalorder %s48, 0
        // Predicated region
        $region89: #{tpu_custom_call.1} parent=87 // pred_check
          %p808 = pneg %p807
        $region90: #{tpu_custom_call.1} parent=87 // pred_check_branch
          %810 = sbr.rel (%p808) target = $region92
        $region91: #{tpu_custom_call.1} parent=87 // pred_region
          %v811 = vld [vmem:[%s751] sm:$0xff]
          %v812 = vld [vmem:[%s751 + $0x8] sm:$0xff]
          %v813 = vmul.f32 %v811, %v805
          %v814 = vmul.f32 %v812, %v806
          %vm815 = vcmask 261120
          %816 = vst.msk [vmem:[#allocation2] sm:$0xff] %vm815, %v813
          %817 = vst.msk [vmem:[#allocation2 + $0x8] sm:$0xff] %vm815, %v814
        $region92: #{tpu_custom_call.1} parent=87 // pred_fallthru
          _
        %v818 = vld [vmem:[#allocation2] sm:$0xff]
        %v819 = vld [vmem:[#allocation2 + $0x8] sm:$0xff]
        %v820 = vld [vmem:[%s756] sm:$0xff]
        %v821 = vld [vmem:[%s756 + $0x8] sm:$0xff]
        %v822 = vld [vmem:[%s756 + $0x10] sm:$0xff]
        %v823 = vld [vmem:[%s756 + $0x18] sm:$0xff]
        %v824 = vld [vmem:[%s759] sm:$0x1]
        %v826 = vlaneseq
        %v827 = vshrl.u32 %v826, 7
        %v828 = vsub.s32 0, %v827
        %v829 = vrot.slane %v824, %v828
        %vm831 = vcmask 261120
        %v833 = vsel %vm831, %v818, 0
        %v836 = vsel %vm831, %v819, 0
        %838 = vmatprep.subr.mxu0 0.0
        %839 = vmatpush1.msra.mxu0 0.0
        %840 = vmatprep.subr.mxu0 0.0
        %841 = vmatpush1.msra.mxu0 0.0
        %842 = vmatprep.subr.mxu0 0.0
        %843 = vmatpush1.msra.mxu0 0.0
        %844 = vmatprep.subr.mxu0 0.0
        %845 = vmatpush1.msra.mxu0 0.0
        %846 = vmatprep.subr.mxu0 0.0
        %847 = vmatpush1.msra.mxu0 0.0
        %848 = vmatprep.subr.mxu0 0.0
        %849 = vmatpush1.msra.mxu0 0.0
        %850 = vmatprep.subr.mxu0 0.0
        %851 = vmatpush1.msra.mxu0 0.0
        %852 = vmatprep.subr.mxu0 0.0
        %853 = vmatpush1.msra.mxu0 0.0
        %854 = vmatprep.subr.mxu0 0.0
        %855 = vmatpush1.msra.mxu0 0.0
        %856 = vmatprep.subr.mxu0 0.0
        %857 = vmatpush1.msra.mxu0 0.0
        %858 = vmatprep.subr.mxu0 0.0
        %859 = vmatpush1.msra.mxu0 0.0
        %860 = vmatprep.subr.mxu0 0.0
        %861 = vmatpush1.msra.mxu0 0.0
        %862 = vmatprep.subr.mxu0 0.0
        %863 = vmatpush1.msra.mxu0 %v823
        %864 = vmatprep.subr.mxu0 0.0
        %865 = vmatpush1.msra.mxu0 %v822
        %866 = vmatprep.subr.mxu0 0.0
        %867 = vmatpush1.msra.mxu0 %v821
        %868 = vmatprep.subr.mxu0 0.0
        %869 = vmatpush1.msra.mxu0 %v820
        %870 = vmatprep.subr.mxu0 0.0
        %871 = vmatpush2.msra.mxu0 0.0
        %872 = vmatprep.subr.mxu0 0.0
        %873 = vmatpush2.msra.mxu0 0.0
        %874 = vmatprep.subr.mxu0 0.0
        %875 = vmatpush2.msra.mxu0 0.0
        %876 = vmatprep.subr.mxu0 0.0
        %877 = vmatpush2.msra.mxu0 0.0
        %878 = vmatprep.subr.mxu0 0.0
        %879 = vmatpush2.msra.mxu0 0.0
        %880 = vmatprep.subr.mxu0 0.0
        %881 = vmatpush2.msra.mxu0 0.0
        %882 = vmatprep.subr.mxu0 0.0
        %883 = vmatpush2.msra.mxu0 0.0
        %884 = vmatprep.subr.mxu0 0.0
        %885 = vmatpush2.msra.mxu0 0.0
        %886 = vmatprep.subr.mxu0 0.0
        %887 = vmatpush2.msra.mxu0 0.0
        %888 = vmatprep.subr.mxu0 0.0
        %889 = vmatpush2.msra.mxu0 0.0
        %890 = vmatprep.subr.mxu0 0.0
        %891 = vmatpush2.msra.mxu0 0.0
        %892 = vmatprep.subr.mxu0 0.0
        %893 = vmatpush2.msra.mxu0 0.0
        %894 = vmatprep.subr.mxu0 0.0
        %895 = vmatpush2.msra.mxu0 0.0
        %896 = vmatprep.subr.mxu0 0.0
        %897 = vmatpush2.msra.mxu0 0.0
        %898 = vmatprep.subr.mxu0 0.0
        %899 = vmatpush2.msra.mxu0 0.0
        %900 = vmatprep.subr.mxu0 0.0
        %901 = vmatpush2.msra.mxu0 0.0
        %902 = vmatprep.mubr.f32.mxu0 0.0
        %903 = vmatmul.mubr.f32.gmra.mxu0 %v833
        %v904 = vpop.f32.mrf.mxu0
        %v905 = vadd.f32 %v829, %v904
        %v906 = vpop.f32.mrf.mxu0
        %907 = vmatprep.mubr.f32.mxu0 0.0
        %908 = vmatmul.mubr.f32.gmra.mxu0 %v836
        %v909 = vpop.f32.mrf.mxu0
        %v910 = vadd.f32 %v829, %v909
        %v911 = vpop.f32.mrf.mxu0
        %912 = vdwg.mxu0
        %v913 = vlaneseq
        %v914 = vand.u32 %v913, 127
        %v915 = vsub.s32 %v914, %v798
        %v916 = vsub.s32 %v914, %v799
        %vm917 = vcmp.lt.s32.totalorder %v914, %v800
        %vm918 = vmand %vm801, %vm917
        %vm919 = vmand %vm802, %vm917
        %v920 = vld [vmem:[%s2] sm:$0xff]
        %v921 = vld [vmem:[%s2 + $0x8] sm:$0x1]
        %v922 = vld [vmem:[%s3] sm:$0xff]
        %v923 = vld [vmem:[%s3 + $0x8] sm:$0x1]
        %v924 = vmul.f32 %v905, 0.25
        %v925 = vmul.f32 %v910, 0.25
        %vm926 = vcmask 130048
        %v928 = vsel %vm926, %v924, 0
        %v931 = vsel %vm926, %v925, 0
        %v934 = vsel %vm926, %v920, 0
        %v937 = vsel %vm926, %v921, 0
        %939 = vmatprep.subr.mxu0 0.0
        %940 = vmatpush1.xpose.msra.mxu0 0.0
        %941 = vmatprep.subr.mxu0 0.0
        %942 = vmatpush1.xpose.msra.mxu0 0.0
        %943 = vmatprep.subr.mxu0 0.0
        %944 = vmatpush1.xpose.msra.mxu0 0.0
        %945 = vmatprep.subr.mxu0 0.0
        %946 = vmatpush1.xpose.msra.mxu0 0.0
        %947 = vmatprep.subr.mxu0 0.0
        %948 = vmatpush1.xpose.msra.mxu0 0.0
        %949 = vmatprep.subr.mxu0 0.0
        %950 = vmatpush1.xpose.msra.mxu0 0.0
        %951 = vmatprep.subr.mxu0 0.0
        %952 = vmatpush1.xpose.msra.mxu0 0.0
        %953 = vmatprep.subr.mxu0 0.0
        %954 = vmatpush1.xpose.msra.mxu0 0.0
        %955 = vmatprep.subr.mxu0 0.0
        %956 = vmatpush1.xpose.msra.mxu0 0.0
        %957 = vmatprep.subr.mxu0 0.0
        %958 = vmatpush1.xpose.msra.mxu0 0.0
        %959 = vmatprep.subr.mxu0 0.0
        %960 = vmatpush1.xpose.msra.mxu0 0.0
        %961 = vmatprep.subr.mxu0 0.0
        %962 = vmatpush1.xpose.msra.mxu0 0.0
        %963 = vmatprep.subr.mxu0 0.0
        %964 = vmatpush1.xpose.msra.mxu0 0.0
        %965 = vmatprep.subr.mxu0 0.0
        %966 = vmatpush1.xpose.msra.mxu0 0.0
        %967 = vmatprep.subr.mxu0 0.0
        %968 = vmatpush1.xpose.msra.mxu0 %v937
        %969 = vmatprep.subr.mxu0 0.0
        %970 = vmatpush1.xpose.msra.mxu0 %v934
        %971 = vmatprep.subr.mxu0 0.0
        %972 = vmatpush2.xpose.msra.mxu0 0.0
        %973 = vmatprep.subr.mxu0 0.0
        %974 = vmatpush2.xpose.msra.mxu0 0.0
        %975 = vmatprep.subr.mxu0 0.0
        %976 = vmatpush2.xpose.msra.mxu0 0.0
        %977 = vmatprep.subr.mxu0 0.0
        %978 = vmatpush2.xpose.msra.mxu0 0.0
        %979 = vmatprep.subr.mxu0 0.0
        %980 = vmatpush2.xpose.msra.mxu0 0.0
        %981 = vmatprep.subr.mxu0 0.0
        %982 = vmatpush2.xpose.msra.mxu0 0.0
        %983 = vmatprep.subr.mxu0 0.0
        %984 = vmatpush2.xpose.msra.mxu0 0.0
        %985 = vmatprep.subr.mxu0 0.0
        %986 = vmatpush2.xpose.msra.mxu0 0.0
        %987 = vmatprep.subr.mxu0 0.0
        %988 = vmatpush2.xpose.msra.mxu0 0.0
        %989 = vmatprep.subr.mxu0 0.0
        %990 = vmatpush2.xpose.msra.mxu0 0.0
        %991 = vmatprep.subr.mxu0 0.0
        %992 = vmatpush2.xpose.msra.mxu0 0.0
        %993 = vmatprep.subr.mxu0 0.0
        %994 = vmatpush2.xpose.msra.mxu0 0.0
        %995 = vmatprep.subr.mxu0 0.0
        %996 = vmatpush2.xpose.msra.mxu0 0.0
        %997 = vmatprep.subr.mxu0 0.0
        %998 = vmatpush2.xpose.msra.mxu0 0.0
        %999 = vmatprep.subr.mxu0 0.0
        %1000 = vmatpush2.xpose.msra.mxu0 0.0
        %1001 = vmatprep.subr.mxu0 0.0
        %1002 = vmatpush2.xpose.msra.mxu0 0.0
        %1003 = vmatprep.mubr.f32.mxu0 0.0
        %1004 = vmatmul.mubr.f32.gmra.mxu0 %v928
        %v1005 = vpop.f32.mrf.mxu0
        %v1006 = vadd.f32 0.0, %v1005
        %v1007 = vpop.f32.mrf.mxu0
        %1008 = vmatprep.mubr.f32.mxu0 0.0
        %1009 = vmatmul.mubr.f32.gmra.mxu0 %v931
        %v1010 = vpop.f32.mrf.mxu0
        %v1011 = vadd.f32 0.0, %v1010
        %v1012 = vpop.f32.mrf.mxu0
        %1013 = vdwg.mxu0
        %vm1014 = vcmp.eq.s32.totalorder %v915, 4294967292
        %vm1015 = vcmp.eq.s32.totalorder %v916, 4294967292
        %1017 = vset.pattern.permute.xlu0 0
        %1018 = vperm.xlu0 %1017, %v1006
        %v1019 = vpop.permute.xlu0 %1018
        %1022 = vset.pattern.permute.xlu0 0
        %1023 = vperm.xlu0 %1022, %v1011
        %v1024 = vpop.permute.xlu0 %1023
        %v1026 = vsel %vm1014, %v1019, 0.0
        %v1027 = vsel %vm1015, %v1024, 0.0
        %1030 = vrot.lane.b32.xlu0 %v905, 96
        %v1031 = vpop.permute.xlu0 %1030
        %1032 = vrot.lane.b32.xlu0 %v910, 96
        %v1033 = vpop.permute.xlu0 %1032
        %v1034 = vsel %vm926, %v1031, 0
        %v1036 = vsel %vm926, %v1033, 0
        %1038 = vmatprep.subr.mxu0 0.0
        %1039 = vmatpush1.xpose.msra.mxu0 0.0
        %1040 = vmatprep.subr.mxu0 0.0
        %1041 = vmatpush1.xpose.msra.mxu0 0.0
        %1042 = vmatprep.subr.mxu0 0.0
        %1043 = vmatpush1.xpose.msra.mxu0 0.0
        %1044 = vmatprep.subr.mxu0 0.0
        %1045 = vmatpush1.xpose.msra.mxu0 0.0
        %1046 = vmatprep.subr.mxu0 0.0
        %1047 = vmatpush1.xpose.msra.mxu0 0.0
        %1048 = vmatprep.subr.mxu0 0.0
        %1049 = vmatpush1.xpose.msra.mxu0 0.0
        %1050 = vmatprep.subr.mxu0 0.0
        %1051 = vmatpush1.xpose.msra.mxu0 0.0
        %1052 = vmatprep.subr.mxu0 0.0
        %1053 = vmatpush1.xpose.msra.mxu0 0.0
        %1054 = vmatprep.subr.mxu0 0.0
        %1055 = vmatpush1.xpose.msra.mxu0 0.0
        %1056 = vmatprep.subr.mxu0 0.0
        %1057 = vmatpush1.xpose.msra.mxu0 0.0
        %1058 = vmatprep.subr.mxu0 0.0
        %1059 = vmatpush1.xpose.msra.mxu0 0.0
        %1060 = vmatprep.subr.mxu0 0.0
        %1061 = vmatpush1.xpose.msra.mxu0 0.0
        %1062 = vmatprep.subr.mxu0 0.0
        %1063 = vmatpush1.xpose.msra.mxu0 0.0
        %1064 = vmatprep.subr.mxu0 0.0
        %1065 = vmatpush1.xpose.msra.mxu0 0.0
        %1066 = vmatprep.subr.mxu0 0.0
        %1067 = vmatpush1.xpose.msra.mxu0 %v1036
        %1068 = vmatprep.subr.mxu0 0.0
        %1069 = vmatpush1.xpose.msra.mxu0 %v1034
        %1070 = vmatprep.subr.mxu0 0.0
        %1071 = vmatpush2.xpose.msra.mxu0 0.0
        %1072 = vmatprep.subr.mxu0 0.0
        %1073 = vmatpush2.xpose.msra.mxu0 0.0
        %1074 = vmatprep.subr.mxu0 0.0
        %1075 = vmatpush2.xpose.msra.mxu0 0.0
        %1076 = vmatprep.subr.mxu0 0.0
        %1077 = vmatpush2.xpose.msra.mxu0 0.0
        %1078 = vmatprep.subr.mxu0 0.0
        %1079 = vmatpush2.xpose.msra.mxu0 0.0
        %1080 = vmatprep.subr.mxu0 0.0
        %1081 = vmatpush2.xpose.msra.mxu0 0.0
        %1082 = vmatprep.subr.mxu0 0.0
        %1083 = vmatpush2.xpose.msra.mxu0 0.0
        %1084 = vmatprep.subr.mxu0 0.0
        %1085 = vmatpush2.xpose.msra.mxu0 0.0
        %1086 = vmatprep.subr.mxu0 0.0
        %1087 = vmatpush2.xpose.msra.mxu0 0.0
        %1088 = vmatprep.subr.mxu0 0.0
        %1089 = vmatpush2.xpose.msra.mxu0 0.0
        %1090 = vmatprep.subr.mxu0 0.0
        %1091 = vmatpush2.xpose.msra.mxu0 0.0
        %1092 = vmatprep.subr.mxu0 0.0
        %1093 = vmatpush2.xpose.msra.mxu0 0.0
        %1094 = vmatprep.subr.mxu0 0.0
        %1095 = vmatpush2.xpose.msra.mxu0 0.0
        %1096 = vmatprep.subr.mxu0 0.0
        %1097 = vmatpush2.xpose.msra.mxu0 0.0
        %1098 = vmatprep.subr.mxu0 0.0
        %1099 = vmatpush2.xpose.msra.mxu0 0.0
        %1100 = vmatprep.subr.mxu0 0.0
        %1101 = vmatpush2.xpose.msra.mxu0 0.0
        %1102 = vmatprep.mubr.f32.mxu0 0.0
        %1103 = vmatmul.mubr.f32.gmra.mxu0 %v928
        %v1104 = vpop.f32.mrf.mxu0
        %v1105 = vadd.f32 %v1026, %v1104
        %v1106 = vpop.f32.mrf.mxu0
        %1107 = vmatprep.mubr.f32.mxu0 0.0
        %1108 = vmatmul.mubr.f32.gmra.mxu0 %v931
        %v1109 = vpop.f32.mrf.mxu0
        %v1110 = vadd.f32 %v1027, %v1109
        %v1111 = vpop.f32.mrf.mxu0
        %1112 = vdwg.mxu0
        %vm1113 = vcmp.eq.s32.totalorder %v915, 4294967293
        %vm1114 = vcmp.eq.s32.totalorder %v916, 4294967293
        %1115 = vset.pattern.permute.xlu0 1
        %1116 = vperm.xlu0 %1115, %v1006
        %v1117 = vpop.permute.xlu0 %1116
        %1119 = vset.pattern.permute.xlu0 1
        %1120 = vperm.xlu0 %1119, %v1011
        %v1121 = vpop.permute.xlu0 %1120
        %v1123 = vsel %vm1113, %v1117, 0.0
        %v1124 = vsel %vm1114, %v1121, 0.0
        %v1125 = vadd.f32 %v1105, %v1123
        %v1126 = vadd.f32 %v1110, %v1124
        %vm1127 = vcmp.eq.s32.totalorder %v915, 4294967294
        %vm1128 = vcmp.eq.s32.totalorder %v916, 4294967294
        %1129 = vset.pattern.permute.xlu0 2
        %1130 = vperm.xlu0 %1129, %v1006
        %v1131 = vpop.permute.xlu0 %1130
        %1133 = vset.pattern.permute.xlu0 2
        %1134 = vperm.xlu0 %1133, %v1011
        %v1135 = vpop.permute.xlu0 %1134
        %v1137 = vsel %vm1127, %v1131, 0.0
        %v1138 = vsel %vm1128, %v1135, 0.0
        %v1139 = vadd.f32 %v1125, %v1137
        %v1140 = vadd.f32 %v1126, %v1138
        %vm1141 = vcmp.eq.s32.totalorder %v915, 4294967295
        %vm1142 = vcmp.eq.s32.totalorder %v916, 4294967295
        %1143 = vset.pattern.permute.xlu0 3
        %1144 = vperm.xlu0 %1143, %v1006
        %v1145 = vpop.permute.xlu0 %1144
        %1147 = vset.pattern.permute.xlu0 3
        %1148 = vperm.xlu0 %1147, %v1011
        %v1149 = vpop.permute.xlu0 %1148
        %v1151 = vsel %vm1141, %v1145, 0.0
        %v1152 = vsel %vm1142, %v1149, 0.0
        %v1153 = vadd.f32 %v1139, %v1151
        %v1154 = vadd.f32 %v1140, %v1152
        %vm1155 = vcmp.eq.s32.totalorder %v915, 0
        %vm1156 = vcmp.eq.s32.totalorder %v916, 0
        %1157 = vset.pattern.permute.xlu0 4
        %1158 = vperm.xlu0 %1157, %v1006
        %v1159 = vpop.permute.xlu0 %1158
        %1161 = vset.pattern.permute.xlu0 4
        %1162 = vperm.xlu0 %1161, %v1011
        %v1163 = vpop.permute.xlu0 %1162
        %v1165 = vsel %vm1155, %v1159, 0.0
        %v1166 = vsel %vm1156, %v1163, 0.0
        %v1167 = vadd.f32 %v1153, %v1165
        %v1168 = vadd.f32 %v1154, %v1166
        %vm1169 = vcmp.eq.s32.totalorder %v915, 1
        %vm1170 = vcmp.eq.s32.totalorder %v916, 1
        %1171 = vset.pattern.permute.xlu0 5
        %1172 = vperm.xlu0 %1171, %v1006
        %v1173 = vpop.permute.xlu0 %1172
        %1175 = vset.pattern.permute.xlu0 5
        %1176 = vperm.xlu0 %1175, %v1011
        %v1177 = vpop.permute.xlu0 %1176
        %v1179 = vsel %vm1169, %v1173, 0.0
        %v1180 = vsel %vm1170, %v1177, 0.0
        %v1181 = vadd.f32 %v1167, %v1179
        %v1182 = vadd.f32 %v1168, %v1180
        %vm1183 = vcmp.eq.s32.totalorder %v915, 2
        %vm1184 = vcmp.eq.s32.totalorder %v916, 2
        %1185 = vset.pattern.permute.xlu0 6
        %1186 = vperm.xlu0 %1185, %v1006
        %v1187 = vpop.permute.xlu0 %1186
        %1189 = vset.pattern.permute.xlu0 6
        %1190 = vperm.xlu0 %1189, %v1011
        %v1191 = vpop.permute.xlu0 %1190
        %v1193 = vsel %vm1183, %v1187, 0.0
        %v1194 = vsel %vm1184, %v1191, 0.0
        %v1195 = vadd.f32 %v1181, %v1193
        %v1196 = vadd.f32 %v1182, %v1194
        %vm1197 = vcmp.eq.s32.totalorder %v915, 3
        %vm1198 = vcmp.eq.s32.totalorder %v916, 3
        %1199 = vset.pattern.permute.xlu0 7
        %1200 = vperm.xlu0 %1199, %v1006
        %v1201 = vpop.permute.xlu0 %1200
        %1203 = vset.pattern.permute.xlu0 7
        %1204 = vperm.xlu0 %1203, %v1011
        %v1205 = vpop.permute.xlu0 %1204
        %v1207 = vsel %vm1197, %v1201, 0.0
        %v1208 = vsel %vm1198, %v1205, 0.0
        %v1209 = vadd.f32 %v1195, %v1207
        %v1210 = vadd.f32 %v1196, %v1208
        %vm1211 = vcmp.eq.s32.totalorder %v915, 4
        %vm1212 = vcmp.eq.s32.totalorder %v916, 4
        %1213 = vset.pattern.permute.xlu0 8
        %1214 = vperm.xlu0 %1213, %v1006
        %v1215 = vpop.permute.xlu0 %1214
        %1217 = vset.pattern.permute.xlu0 8
        %1218 = vperm.xlu0 %1217, %v1011
        %v1219 = vpop.permute.xlu0 %1218
        %v1221 = vsel %vm1211, %v1215, 0.0
        %v1222 = vsel %vm1212, %v1219, 0.0
        %v1223 = vadd.f32 %v1209, %v1221
        %v1224 = vadd.f32 %v1210, %v1222
        %v1225 = vsel %vm918, %v1223, -10000.0
        %v1226 = vsel %vm919, %v1224, -10000.0
        %v1227 = vsel %vm926, %v1225, -inf
        %1228 = vmax.xlane.f32.xlu0 %v1227
        %v1229 = vpop.xlane.xlu0 %1228
        %v1230 = vsel %vm926, %v1226, -inf
        %1231 = vmax.xlane.f32.xlu0 %v1230
        %v1232 = vpop.xlane.xlu0 %1231
        %v1233 = vsub.f32 %v1225, %v1229
        %v1234 = vsub.f32 %v1226, %v1232
        %v1235 = vmul.f32 %v1233, 1.442695
        %v1236 = vpow.pop %v1235
        %v1237 = vmul.f32 %v1234, 1.442695
        %v1238 = vpow.pop %v1237
        %v1239 = vsel %vm926, %v1236, 0.0
        %1240 = vadd.xlane.f32.xlu0 %v1239
        %v1241 = vpop.xlane.xlu0 %1240
        %v1242 = vsel %vm926, %v1238, 0.0
        %1243 = vadd.xlane.f32.xlu0 %v1242
        %v1244 = vpop.xlane.xlu0 %1243
        %v1245 = vrcp.pop %v1241
        %v1246 = vrcp.pop %v1244
        %v1247 = vmul.f32 %v1236, %v1245
        %v1248 = vmul.f32 %v1238, %v1246
        %v1249 = vsel %vm1014, %v1247, 0.0
        %v1250 = vsel %vm1015, %v1248, 0.0
        %v1251 = vsel %vm926, %v1249, 0.0
        %1252 = vadd.xlane.f32.xlu0 %v1251
        %v1253 = vpop.xlane.xlu0 %1252
        %v1254 = vsel %vm926, %v1250, 0.0
        %1255 = vadd.xlane.f32.xlu0 %v1254
        %v1256 = vpop.xlane.xlu0 %1255
        %v1257 = vsel %vm1113, %v1247, 0.0
        %v1258 = vsel %vm1114, %v1248, 0.0
        %v1259 = vsel %vm926, %v1257, 0.0
        %1260 = vadd.xlane.f32.xlu0 %v1259
        %v1261 = vpop.xlane.xlu0 %1260
        %v1262 = vsel %vm926, %v1258, 0.0
        %1263 = vadd.xlane.f32.xlu0 %v1262
        %v1264 = vpop.xlane.xlu0 %1263
        %v1265 = vsel %vm1127, %v1247, 0.0
        %v1266 = vsel %vm1128, %v1248, 0.0
        %v1267 = vsel %vm926, %v1265, 0.0
        %1268 = vadd.xlane.f32.xlu0 %v1267
        %v1269 = vpop.xlane.xlu0 %1268
        %v1270 = vsel %vm926, %v1266, 0.0
        %1271 = vadd.xlane.f32.xlu0 %v1270
        %v1272 = vpop.xlane.xlu0 %1271
        %v1273 = vsel %vm1141, %v1247, 0.0
        %v1274 = vsel %vm1142, %v1248, 0.0
        %v1275 = vsel %vm926, %v1273, 0.0
        %1276 = vadd.xlane.f32.xlu0 %v1275
        %v1277 = vpop.xlane.xlu0 %1276
        %v1278 = vsel %vm926, %v1274, 0.0
        %1279 = vadd.xlane.f32.xlu0 %v1278
        %v1280 = vpop.xlane.xlu0 %1279
        %v1281 = vsel %vm1155, %v1247, 0.0
        %v1282 = vsel %vm1156, %v1248, 0.0
        %v1283 = vsel %vm926, %v1281, 0.0
        %1284 = vadd.xlane.f32.xlu0 %v1283
        %v1285 = vpop.xlane.xlu0 %1284
        %v1286 = vsel %vm926, %v1282, 0.0
        %1287 = vadd.xlane.f32.xlu0 %v1286
        %v1288 = vpop.xlane.xlu0 %1287
        %v1289 = vsel %vm1169, %v1247, 0.0
        %v1290 = vsel %vm1170, %v1248, 0.0
        %v1291 = vsel %vm926, %v1289, 0.0
        %1292 = vadd.xlane.f32.xlu0 %v1291
        %v1293 = vpop.xlane.xlu0 %1292
        %v1294 = vsel %vm926, %v1290, 0.0
        %1295 = vadd.xlane.f32.xlu0 %v1294
        %v1296 = vpop.xlane.xlu0 %1295
        %v1297 = vsel %vm1183, %v1247, 0.0
        %v1298 = vsel %vm1184, %v1248, 0.0
        %v1299 = vsel %vm926, %v1297, 0.0
        %1300 = vadd.xlane.f32.xlu0 %v1299
        %v1301 = vpop.xlane.xlu0 %1300
        %v1302 = vsel %vm926, %v1298, 0.0
        %1303 = vadd.xlane.f32.xlu0 %v1302
        %v1304 = vpop.xlane.xlu0 %1303
        %v1305 = vsel %vm1197, %v1247, 0.0
        %v1306 = vsel %vm1198, %v1248, 0.0
        %v1307 = vsel %vm926, %v1305, 0.0
        %1308 = vadd.xlane.f32.xlu0 %v1307
        %v1309 = vpop.xlane.xlu0 %1308
        %v1310 = vsel %vm926, %v1306, 0.0
        %1311 = vadd.xlane.f32.xlu0 %v1310
        %v1312 = vpop.xlane.xlu0 %1311
        %v1313 = vsel %vm1211, %v1247, 0.0
        %v1314 = vsel %vm1212, %v1248, 0.0
        %v1315 = vsel %vm926, %v1313, 0.0
        %1316 = vadd.xlane.f32.xlu0 %v1315
        %v1317 = vpop.xlane.xlu0 %1316
        %v1318 = vsel %vm926, %v1314, 0.0
        %1319 = vadd.xlane.f32.xlu0 %v1318
        %v1320 = vpop.xlane.xlu0 %1319
        %vm1321 = vcmask 7168
        %v1322 = vsel %vm1321, %v1253, %v1261
        %v1323 = vsel %vm1321, %v1256, %v1264
        %vm1324 = vcmask 15360
        %v1325 = vsel %vm1324, %v1322, %v1269
        %v1326 = vsel %vm1324, %v1323, %v1272
        %vm1327 = vcmask 23552
        %v1328 = vsel %vm1327, %v1325, %v1277
        %v1329 = vsel %vm1327, %v1326, %v1280
        %vm1330 = vcmask 31744
        %v1331 = vsel %vm1330, %v1328, %v1285
        %v1332 = vsel %vm1330, %v1329, %v1288
        %vm1333 = vcmask 39936
        %v1334 = vsel %vm1333, %v1331, %v1293
        %v1335 = vsel %vm1333, %v1332, %v1296
        %vm1336 = vcmask 48128
        %v1337 = vsel %vm1336, %v1334, %v1301
        %v1338 = vsel %vm1336, %v1335, %v1304
        %vm1339 = vcmask 56320
        %v1340 = vsel %vm1339, %v1337, %v1309
        %v1341 = vsel %vm1339, %v1338, %v1312
        %vm1342 = vcmask 64512
        %v1343 = vsel %vm1342, %v1340, %v1317
        %v1344 = vsel %vm1342, %v1341, %v1320
        %vm1345 = vcmask 72704
        %v1347 = vsel %vm1345, %v1343, 0
        %v1350 = vsel %vm1345, %v1344, 0
        %vm1352 = vcmask 1040384
        %v1354 = vsel %vm1352, %v923, 0
        %1356 = vmatprep.subr.mxu0 0.0
        %1357 = vmatpush1.msra.mxu0 0.0
        %1358 = vmatprep.subr.mxu0 0.0
        %1359 = vmatpush1.msra.mxu0 0.0
        %1360 = vmatprep.subr.mxu0 0.0
        %1361 = vmatpush1.msra.mxu0 0.0
        %1362 = vmatprep.subr.mxu0 0.0
        %1363 = vmatpush1.msra.mxu0 0.0
        %1364 = vmatprep.subr.mxu0 0.0
        %1365 = vmatpush1.msra.mxu0 0.0
        %1366 = vmatprep.subr.mxu0 0.0
        %1367 = vmatpush1.msra.mxu0 0.0
        %1368 = vmatprep.subr.mxu0 0.0
        %1369 = vmatpush1.msra.mxu0 0.0
        %1370 = vmatprep.subr.mxu0 0.0
        %1371 = vmatpush1.msra.mxu0 0.0
        %1372 = vmatprep.subr.mxu0 0.0
        %1373 = vmatpush1.msra.mxu0 0.0
        %1374 = vmatprep.subr.mxu0 0.0
        %1375 = vmatpush1.msra.mxu0 0.0
        %1376 = vmatprep.subr.mxu0 0.0
        %1377 = vmatpush1.msra.mxu0 0.0
        %1378 = vmatprep.subr.mxu0 0.0
        %1379 = vmatpush1.msra.mxu0 0.0
        %1380 = vmatprep.subr.mxu0 0.0
        %1381 = vmatpush1.msra.mxu0 0.0
        %1382 = vmatprep.subr.mxu0 0.0
        %1383 = vmatpush1.msra.mxu0 0.0
        %1384 = vmatprep.subr.mxu0 0.0
        %1385 = vmatpush1.msra.mxu0 %v1354
        %1386 = vmatprep.subr.mxu0 0.0
        %1387 = vmatpush1.msra.mxu0 %v922
        %1388 = vmatprep.subr.mxu0 0.0
        %1389 = vmatpush2.msra.mxu0 0.0
        %1390 = vmatprep.subr.mxu0 0.0
        %1391 = vmatpush2.msra.mxu0 0.0
        %1392 = vmatprep.subr.mxu0 0.0
        %1393 = vmatpush2.msra.mxu0 0.0
        %1394 = vmatprep.subr.mxu0 0.0
        %1395 = vmatpush2.msra.mxu0 0.0
        %1396 = vmatprep.subr.mxu0 0.0
        %1397 = vmatpush2.msra.mxu0 0.0
        %1398 = vmatprep.subr.mxu0 0.0
        %1399 = vmatpush2.msra.mxu0 0.0
        %1400 = vmatprep.subr.mxu0 0.0
        %1401 = vmatpush2.msra.mxu0 0.0
        %1402 = vmatprep.subr.mxu0 0.0
        %1403 = vmatpush2.msra.mxu0 0.0
        %1404 = vmatprep.subr.mxu0 0.0
        %1405 = vmatpush2.msra.mxu0 0.0
        %1406 = vmatprep.subr.mxu0 0.0
        %1407 = vmatpush2.msra.mxu0 0.0
        %1408 = vmatprep.subr.mxu0 0.0
        %1409 = vmatpush2.msra.mxu0 0.0
        %1410 = vmatprep.subr.mxu0 0.0
        %1411 = vmatpush2.msra.mxu0 0.0
        %1412 = vmatprep.subr.mxu0 0.0
        %1413 = vmatpush2.msra.mxu0 0.0
        %1414 = vmatprep.subr.mxu0 0.0
        %1415 = vmatpush2.msra.mxu0 0.0
        %1416 = vmatprep.subr.mxu0 0.0
        %1417 = vmatpush2.msra.mxu0 0.0
        %1418 = vmatprep.subr.mxu0 0.0
        %1419 = vmatpush2.msra.mxu0 0.0
        %1420 = vmatprep.mubr.f32.mxu0 0.0
        %1421 = vmatmul.mubr.f32.gmra.mxu0 %v1347
        %v1422 = vpop.f32.mrf.mxu0
        %v1423 = vadd.f32 0.0, %v1422
        %v1424 = vpop.f32.mrf.mxu0
        %1425 = vmatprep.mubr.f32.mxu0 0.0
        %1426 = vmatmul.mubr.f32.gmra.mxu0 %v1350
        %v1427 = vpop.f32.mrf.mxu0
        %v1428 = vadd.f32 0.0, %v1427
        %v1429 = vpop.f32.mrf.mxu0
        %1430 = vdwg.mxu0
        %1431 = vrot.lane.b32.xlu0 %v905, 64
        %v1432 = vpop.permute.xlu0 %1431
        %1433 = vrot.lane.b32.xlu0 %v910, 64
        %v1434 = vpop.permute.xlu0 %1433
        %v1438 = vsel %vm926, %v1247, 0
        %v1441 = vsel %vm926, %v1248, 0
        %1443 = vmatprep.subr.mxu0 0.0
        %1444 = vmatpush1.msra.mxu0 0.0
        %1445 = vmatprep.subr.mxu0 0.0
        %1446 = vmatpush1.msra.mxu0 0.0
        %1447 = vmatprep.subr.mxu0 0.0
        %1448 = vmatpush1.msra.mxu0 0.0
        %1449 = vmatprep.subr.mxu0 0.0
        %1450 = vmatpush1.msra.mxu0 0.0
        %1451 = vmatprep.subr.mxu0 0.0
        %1452 = vmatpush1.msra.mxu0 0.0
        %1453 = vmatprep.subr.mxu0 0.0
        %1454 = vmatpush1.msra.mxu0 0.0
        %1455 = vmatprep.subr.mxu0 0.0
        %1456 = vmatpush1.msra.mxu0 0.0
        %1457 = vmatprep.subr.mxu0 0.0
        %1458 = vmatpush1.msra.mxu0 0.0
        %1459 = vmatprep.subr.mxu0 0.0
        %1460 = vmatpush1.msra.mxu0 0.0
        %1461 = vmatprep.subr.mxu0 0.0
        %1462 = vmatpush1.msra.mxu0 0.0
        %1463 = vmatprep.subr.mxu0 0.0
        %1464 = vmatpush1.msra.mxu0 0.0
        %1465 = vmatprep.subr.mxu0 0.0
        %1466 = vmatpush1.msra.mxu0 0.0
        %1467 = vmatprep.subr.mxu0 0.0
        %1468 = vmatpush1.msra.mxu0 0.0
        %1469 = vmatprep.subr.mxu0 0.0
        %1470 = vmatpush1.msra.mxu0 0.0
        %1471 = vmatprep.subr.mxu0 0.0
        %1472 = vmatpush1.msra.mxu0 %v1434
        %1473 = vmatprep.subr.mxu0 0.0
        %1474 = vmatpush1.msra.mxu0 %v1432
        %1475 = vmatprep.subr.mxu0 0.0
        %1476 = vmatpush2.msra.mxu0 0.0
        %1477 = vmatprep.subr.mxu0 0.0
        %1478 = vmatpush2.msra.mxu0 0.0
        %1479 = vmatprep.subr.mxu0 0.0
        %1480 = vmatpush2.msra.mxu0 0.0
        %1481 = vmatprep.subr.mxu0 0.0
        %1482 = vmatpush2.msra.mxu0 0.0
        %1483 = vmatprep.subr.mxu0 0.0
        %1484 = vmatpush2.msra.mxu0 0.0
        %1485 = vmatprep.subr.mxu0 0.0
        %1486 = vmatpush2.msra.mxu0 0.0
        %1487 = vmatprep.subr.mxu0 0.0
        %1488 = vmatpush2.msra.mxu0 0.0
        %1489 = vmatprep.subr.mxu0 0.0
        %1490 = vmatpush2.msra.mxu0 0.0
        %1491 = vmatprep.subr.mxu0 0.0
        %1492 = vmatpush2.msra.mxu0 0.0
        %1493 = vmatprep.subr.mxu0 0.0
        %1494 = vmatpush2.msra.mxu0 0.0
        %1495 = vmatprep.subr.mxu0 0.0
        %1496 = vmatpush2.msra.mxu0 0.0
        %1497 = vmatprep.subr.mxu0 0.0
        %1498 = vmatpush2.msra.mxu0 0.0
        %1499 = vmatprep.subr.mxu0 0.0
        %1500 = vmatpush2.msra.mxu0 0.0
        %1501 = vmatprep.subr.mxu0 0.0
        %1502 = vmatpush2.msra.mxu0 0.0
        %1503 = vmatprep.subr.mxu0 0.0
        %1504 = vmatpush2.msra.mxu0 0.0
        %1505 = vmatprep.subr.mxu0 0.0
        %1506 = vmatpush2.msra.mxu0 0.0
        %1507 = vmatprep.mubr.f32.mxu0 0.0
        %1508 = vmatmul.mubr.f32.gmra.mxu0 %v1438
        %v1509 = vpop.f32.mrf.mxu0
        %v1510 = vadd.f32 %v1423, %v1509
        %v1511 = vpop.f32.mrf.mxu0
        %1512 = vmatprep.mubr.f32.mxu0 0.0
        %1513 = vmatmul.mubr.f32.gmra.mxu0 %v1441
        %v1514 = vpop.f32.mrf.mxu0
        %v1515 = vadd.f32 %v1428, %v1514
        %v1516 = vpop.f32.mrf.mxu0
        %1517 = vdwg.mxu0
        %1518 = vrot.lane.b32.xlu0 %v924, 112
        %v1519 = vpop.permute.xlu0 %1518
        %1520 = vrot.lane.b32.xlu0 %v925, 112
        %v1521 = vpop.permute.xlu0 %1520
        %v1522 = vsel %vm926, %v1519, 0
        %v1524 = vsel %vm926, %v1521, 0
        %1526 = vmatprep.subr.mxu0 0.0
        %1527 = vmatpush1.xpose.msra.mxu0 0.0
        %1528 = vmatprep.subr.mxu0 0.0
        %1529 = vmatpush1.xpose.msra.mxu0 0.0
        %1530 = vmatprep.subr.mxu0 0.0
        %1531 = vmatpush1.xpose.msra.mxu0 0.0
        %1532 = vmatprep.subr.mxu0 0.0
        %1533 = vmatpush1.xpose.msra.mxu0 0.0
        %1534 = vmatprep.subr.mxu0 0.0
        %1535 = vmatpush1.xpose.msra.mxu0 0.0
        %1536 = vmatprep.subr.mxu0 0.0
        %1537 = vmatpush1.xpose.msra.mxu0 0.0
        %1538 = vmatprep.subr.mxu0 0.0
        %1539 = vmatpush1.xpose.msra.mxu0 0.0
        %1540 = vmatprep.subr.mxu0 0.0
        %1541 = vmatpush1.xpose.msra.mxu0 0.0
        %1542 = vmatprep.subr.mxu0 0.0
        %1543 = vmatpush1.xpose.msra.mxu0 0.0
        %1544 = vmatprep.subr.mxu0 0.0
        %1545 = vmatpush1.xpose.msra.mxu0 0.0
        %1546 = vmatprep.subr.mxu0 0.0
        %1547 = vmatpush1.xpose.msra.mxu0 0.0
        %1548 = vmatprep.subr.mxu0 0.0
        %1549 = vmatpush1.xpose.msra.mxu0 0.0
        %1550 = vmatprep.subr.mxu0 0.0
        %1551 = vmatpush1.xpose.msra.mxu0 0.0
        %1552 = vmatprep.subr.mxu0 0.0
        %1553 = vmatpush1.xpose.msra.mxu0 0.0
        %1554 = vmatprep.subr.mxu0 0.0
        %1555 = vmatpush1.xpose.msra.mxu0 %v937
        %1556 = vmatprep.subr.mxu0 0.0
        %1557 = vmatpush1.xpose.msra.mxu0 %v934
        %1558 = vmatprep.subr.mxu0 0.0
        %1559 = vmatpush2.xpose.msra.mxu0 0.0
        %1560 = vmatprep.subr.mxu0 0.0
        %1561 = vmatpush2.xpose.msra.mxu0 0.0
        %1562 = vmatprep.subr.mxu0 0.0
        %1563 = vmatpush2.xpose.msra.mxu0 0.0
        %1564 = vmatprep.subr.mxu0 0.0
        %1565 = vmatpush2.xpose.msra.mxu0 0.0
        %1566 = vmatprep.subr.mxu0 0.0
        %1567 = vmatpush2.xpose.msra.mxu0 0.0
        %1568 = vmatprep.subr.mxu0 0.0
        %1569 = vmatpush2.xpose.msra.mxu0 0.0
        %1570 = vmatprep.subr.mxu0 0.0
        %1571 = vmatpush2.xpose.msra.mxu0 0.0
        %1572 = vmatprep.subr.mxu0 0.0
        %1573 = vmatpush2.xpose.msra.mxu0 0.0
        %1574 = vmatprep.subr.mxu0 0.0
        %1575 = vmatpush2.xpose.msra.mxu0 0.0
        %1576 = vmatprep.subr.mxu0 0.0
        %1577 = vmatpush2.xpose.msra.mxu0 0.0
        %1578 = vmatprep.subr.mxu0 0.0
        %1579 = vmatpush2.xpose.msra.mxu0 0.0
        %1580 = vmatprep.subr.mxu0 0.0
        %1581 = vmatpush2.xpose.msra.mxu0 0.0
        %1582 = vmatprep.subr.mxu0 0.0
        %1583 = vmatpush2.xpose.msra.mxu0 0.0
        %1584 = vmatprep.subr.mxu0 0.0
        %1585 = vmatpush2.xpose.msra.mxu0 0.0
        %1586 = vmatprep.subr.mxu0 0.0
        %1587 = vmatpush2.xpose.msra.mxu0 0.0
        %1588 = vmatprep.subr.mxu0 0.0
        %1589 = vmatpush2.xpose.msra.mxu0 0.0
        %1590 = vmatprep.mubr.f32.mxu0 0.0
        %1591 = vmatmul.mubr.f32.gmra.mxu0 %v1522
        %v1592 = vpop.f32.mrf.mxu0
        %v1593 = vadd.f32 0.0, %v1592
        %v1594 = vpop.f32.mrf.mxu0
        %1595 = vmatprep.mubr.f32.mxu0 0.0
        %1596 = vmatmul.mubr.f32.gmra.mxu0 %v1524
        %v1597 = vpop.f32.mrf.mxu0
        %v1598 = vadd.f32 0.0, %v1597
        %v1599 = vpop.f32.mrf.mxu0
        %1600 = vdwg.mxu0
        %1602 = vset.pattern.permute.xlu0 0
        %1603 = vperm.xlu0 %1602, %v1593
        %v1604 = vpop.permute.xlu0 %1603
        %1607 = vset.pattern.permute.xlu0 0
        %1608 = vperm.xlu0 %1607, %v1598
        %v1609 = vpop.permute.xlu0 %1608
        %v1611 = vsel %vm1014, %v1604, 0.0
        %v1612 = vsel %vm1015, %v1609, 0.0
        %1613 = vrot.lane.b32.xlu0 %v905, 80
        %v1614 = vpop.permute.xlu0 %1613
        %1615 = vrot.lane.b32.xlu0 %v910, 80
        %v1616 = vpop.permute.xlu0 %1615
        %v1617 = vsel %vm926, %v1614, 0
        %v1619 = vsel %vm926, %v1616, 0
        %1621 = vmatprep.subr.mxu0 0.0
        %1622 = vmatpush1.xpose.msra.mxu0 0.0
        %1623 = vmatprep.subr.mxu0 0.0
        %1624 = vmatpush1.xpose.msra.mxu0 0.0
        %1625 = vmatprep.subr.mxu0 0.0
        %1626 = vmatpush1.xpose.msra.mxu0 0.0
        %1627 = vmatprep.subr.mxu0 0.0
        %1628 = vmatpush1.xpose.msra.mxu0 0.0
        %1629 = vmatprep.subr.mxu0 0.0
        %1630 = vmatpush1.xpose.msra.mxu0 0.0
        %1631 = vmatprep.subr.mxu0 0.0
        %1632 = vmatpush1.xpose.msra.mxu0 0.0
        %1633 = vmatprep.subr.mxu0 0.0
        %1634 = vmatpush1.xpose.msra.mxu0 0.0
        %1635 = vmatprep.subr.mxu0 0.0
        %1636 = vmatpush1.xpose.msra.mxu0 0.0
        %1637 = vmatprep.subr.mxu0 0.0
        %1638 = vmatpush1.xpose.msra.mxu0 0.0
        %1639 = vmatprep.subr.mxu0 0.0
        %1640 = vmatpush1.xpose.msra.mxu0 0.0
        %1641 = vmatprep.subr.mxu0 0.0
        %1642 = vmatpush1.xpose.msra.mxu0 0.0
        %1643 = vmatprep.subr.mxu0 0.0
        %1644 = vmatpush1.xpose.msra.mxu0 0.0
        %1645 = vmatprep.subr.mxu0 0.0
        %1646 = vmatpush1.xpose.msra.mxu0 0.0
        %1647 = vmatprep.subr.mxu0 0.0
        %1648 = vmatpush1.xpose.msra.mxu0 0.0
        %1649 = vmatprep.subr.mxu0 0.0
        %1650 = vmatpush1.xpose.msra.mxu0 %v1619
        %1651 = vmatprep.subr.mxu0 0.0
        %1652 = vmatpush1.xpose.msra.mxu0 %v1617
        %1653 = vmatprep.subr.mxu0 0.0
        %1654 = vmatpush2.xpose.msra.mxu0 0.0
        %1655 = vmatprep.subr.mxu0 0.0
        %1656 = vmatpush2.xpose.msra.mxu0 0.0
        %1657 = vmatprep.subr.mxu0 0.0
        %1658 = vmatpush2.xpose.msra.mxu0 0.0
        %1659 = vmatprep.subr.mxu0 0.0
        %1660 = vmatpush2.xpose.msra.mxu0 0.0
        %1661 = vmatprep.subr.mxu0 0.0
        %1662 = vmatpush2.xpose.msra.mxu0 0.0
        %1663 = vmatprep.subr.mxu0 0.0
        %1664 = vmatpush2.xpose.msra.mxu0 0.0
        %1665 = vmatprep.subr.mxu0 0.0
        %1666 = vmatpush2.xpose.msra.mxu0 0.0
        %1667 = vmatprep.subr.mxu0 0.0
        %1668 = vmatpush2.xpose.msra.mxu0 0.0
        %1669 = vmatprep.subr.mxu0 0.0
        %1670 = vmatpush2.xpose.msra.mxu0 0.0
        %1671 = vmatprep.subr.mxu0 0.0
        %1672 = vmatpush2.xpose.msra.mxu0 0.0
        %1673 = vmatprep.subr.mxu0 0.0
        %1674 = vmatpush2.xpose.msra.mxu0 0.0
        %1675 = vmatprep.subr.mxu0 0.0
        %1676 = vmatpush2.xpose.msra.mxu0 0.0
        %1677 = vmatprep.subr.mxu0 0.0
        %1678 = vmatpush2.xpose.msra.mxu0 0.0
        %1679 = vmatprep.subr.mxu0 0.0
        %1680 = vmatpush2.xpose.msra.mxu0 0.0
        %1681 = vmatprep.subr.mxu0 0.0
        %1682 = vmatpush2.xpose.msra.mxu0 0.0
        %1683 = vmatprep.subr.mxu0 0.0
        %1684 = vmatpush2.xpose.msra.mxu0 0.0
        %1685 = vmatprep.mubr.f32.mxu0 0.0
        %1686 = vmatmul.mubr.f32.gmra.mxu0 %v1522
        %v1687 = vpop.f32.mrf.mxu0
        %v1688 = vadd.f32 %v1611, %v1687
        %v1689 = vpop.f32.mrf.mxu0
        %1690 = vmatprep.mubr.f32.mxu0 0.0
        %1691 = vmatmul.mubr.f32.gmra.mxu0 %v1524
        %v1692 = vpop.f32.mrf.mxu0
        %v1693 = vadd.f32 %v1612, %v1692
        %v1694 = vpop.f32.mrf.mxu0
        %1695 = vdwg.mxu0
        %1696 = vset.pattern.permute.xlu0 1
        %1697 = vperm.xlu0 %1696, %v1593
        %v1698 = vpop.permute.xlu0 %1697
        %1700 = vset.pattern.permute.xlu0 1
        %1701 = vperm.xlu0 %1700, %v1598
        %v1702 = vpop.permute.xlu0 %1701
        %v1704 = vsel %vm1113, %v1698, 0.0
        %v1705 = vsel %vm1114, %v1702, 0.0
        %v1706 = vadd.f32 %v1688, %v1704
        %v1707 = vadd.f32 %v1693, %v1705
        %1708 = vset.pattern.permute.xlu0 2
        %1709 = vperm.xlu0 %1708, %v1593
        %v1710 = vpop.permute.xlu0 %1709
        %1712 = vset.pattern.permute.xlu0 2
        %1713 = vperm.xlu0 %1712, %v1598
        %v1714 = vpop.permute.xlu0 %1713
        %v1716 = vsel %vm1127, %v1710, 0.0
        %v1717 = vsel %vm1128, %v1714, 0.0
        %v1718 = vadd.f32 %v1706, %v1716
        %v1719 = vadd.f32 %v1707, %v1717
        %1720 = vset.pattern.permute.xlu0 3
        %1721 = vperm.xlu0 %1720, %v1593
        %v1722 = vpop.permute.xlu0 %1721
        %1724 = vset.pattern.permute.xlu0 3
        %1725 = vperm.xlu0 %1724, %v1598
        %v1726 = vpop.permute.xlu0 %1725
        %v1728 = vsel %vm1141, %v1722, 0.0
        %v1729 = vsel %vm1142, %v1726, 0.0
        %v1730 = vadd.f32 %v1718, %v1728
        %v1731 = vadd.f32 %v1719, %v1729
        %1732 = vset.pattern.permute.xlu0 4
        %1733 = vperm.xlu0 %1732, %v1593
        %v1734 = vpop.permute.xlu0 %1733
        %1736 = vset.pattern.permute.xlu0 4
        %1737 = vperm.xlu0 %1736, %v1598
        %v1738 = vpop.permute.xlu0 %1737
        %v1740 = vsel %vm1155, %v1734, 0.0
        %v1741 = vsel %vm1156, %v1738, 0.0
        %v1742 = vadd.f32 %v1730, %v1740
        %v1743 = vadd.f32 %v1731, %v1741
        %1744 = vset.pattern.permute.xlu0 5
        %1745 = vperm.xlu0 %1744, %v1593
        %v1746 = vpop.permute.xlu0 %1745
        %1748 = vset.pattern.permute.xlu0 5
        %1749 = vperm.xlu0 %1748, %v1598
        %v1750 = vpop.permute.xlu0 %1749
        %v1752 = vsel %vm1169, %v1746, 0.0
        %v1753 = vsel %vm1170, %v1750, 0.0
        %v1754 = vadd.f32 %v1742, %v1752
        %v1755 = vadd.f32 %v1743, %v1753
        %1756 = vset.pattern.permute.xlu0 6
        %1757 = vperm.xlu0 %1756, %v1593
        %v1758 = vpop.permute.xlu0 %1757
        %1760 = vset.pattern.permute.xlu0 6
        %1761 = vperm.xlu0 %1760, %v1598
        %v1762 = vpop.permute.xlu0 %1761
        %v1764 = vsel %vm1183, %v1758, 0.0
        %v1765 = vsel %vm1184, %v1762, 0.0
        %v1766 = vadd.f32 %v1754, %v1764
        %v1767 = vadd.f32 %v1755, %v1765
        %1768 = vset.pattern.permute.xlu0 7
        %1769 = vperm.xlu0 %1768, %v1593
        %v1770 = vpop.permute.xlu0 %1769
        %1772 = vset.pattern.permute.xlu0 7
        %1773 = vperm.xlu0 %1772, %v1598
        %v1774 = vpop.permute.xlu0 %1773
        %v1776 = vsel %vm1197, %v1770, 0.0
        %v1777 = vsel %vm1198, %v1774, 0.0
        %v1778 = vadd.f32 %v1766, %v1776
        %v1779 = vadd.f32 %v1767, %v1777
        %1780 = vset.pattern.permute.xlu0 8
        %1781 = vperm.xlu0 %1780, %v1593
        %v1782 = vpop.permute.xlu0 %1781
        %1784 = vset.pattern.permute.xlu0 8
        %1785 = vperm.xlu0 %1784, %v1598
        %v1786 = vpop.permute.xlu0 %1785
        %v1788 = vsel %vm1211, %v1782, 0.0
        %v1789 = vsel %vm1212, %v1786, 0.0
        %v1790 = vadd.f32 %v1778, %v1788
        %v1791 = vadd.f32 %v1779, %v1789
        %v1792 = vsel %vm918, %v1790, -10000.0
        %v1793 = vsel %vm919, %v1791, -10000.0
        %v1794 = vsel %vm926, %v1792, -inf
        %1795 = vmax.xlane.f32.xlu0 %v1794
        %v1796 = vpop.xlane.xlu0 %1795
        %v1797 = vsel %vm926, %v1793, -inf
        %1798 = vmax.xlane.f32.xlu0 %v1797
        %v1799 = vpop.xlane.xlu0 %1798
        %v1800 = vsub.f32 %v1792, %v1796
        %v1801 = vsub.f32 %v1793, %v1799
        %v1802 = vmul.f32 %v1800, 1.442695
        %v1803 = vpow.pop %v1802
        %v1804 = vmul.f32 %v1801, 1.442695
        %v1805 = vpow.pop %v1804
        %v1806 = vsel %vm926, %v1803, 0.0
        %1807 = vadd.xlane.f32.xlu0 %v1806
        %v1808 = vpop.xlane.xlu0 %1807
        %v1809 = vsel %vm926, %v1805, 0.0
        %1810 = vadd.xlane.f32.xlu0 %v1809
        %v1811 = vpop.xlane.xlu0 %1810
        %v1812 = vrcp.pop %v1808
        %v1813 = vrcp.pop %v1811
        %v1814 = vmul.f32 %v1803, %v1812
        %v1815 = vmul.f32 %v1805, %v1813
        %v1816 = vsel %vm1014, %v1814, 0.0
        %v1817 = vsel %vm1015, %v1815, 0.0
        %v1818 = vsel %vm926, %v1816, 0.0
        %1819 = vadd.xlane.f32.xlu0 %v1818
        %v1820 = vpop.xlane.xlu0 %1819
        %v1821 = vsel %vm926, %v1817, 0.0
        %1822 = vadd.xlane.f32.xlu0 %v1821
        %v1823 = vpop.xlane.xlu0 %1822
        %v1824 = vsel %vm1113, %v1814, 0.0
        %v1825 = vsel %vm1114, %v1815, 0.0
        %v1826 = vsel %vm926, %v1824, 0.0
        %1827 = vadd.xlane.f32.xlu0 %v1826
        %v1828 = vpop.xlane.xlu0 %1827
        %v1829 = vsel %vm926, %v1825, 0.0
        %1830 = vadd.xlane.f32.xlu0 %v1829
        %v1831 = vpop.xlane.xlu0 %1830
        %v1832 = vsel %vm1127, %v1814, 0.0
        %v1833 = vsel %vm1128, %v1815, 0.0
        %v1834 = vsel %vm926, %v1832, 0.0
        %1835 = vadd.xlane.f32.xlu0 %v1834
        %v1836 = vpop.xlane.xlu0 %1835
        %v1837 = vsel %vm926, %v1833, 0.0
        %1838 = vadd.xlane.f32.xlu0 %v1837
        %v1839 = vpop.xlane.xlu0 %1838
        %v1840 = vsel %vm1141, %v1814, 0.0
        %v1841 = vsel %vm1142, %v1815, 0.0
        %v1842 = vsel %vm926, %v1840, 0.0
        %1843 = vadd.xlane.f32.xlu0 %v1842
        %v1844 = vpop.xlane.xlu0 %1843
        %v1845 = vsel %vm926, %v1841, 0.0
        %1846 = vadd.xlane.f32.xlu0 %v1845
        %v1847 = vpop.xlane.xlu0 %1846
        %v1848 = vsel %vm1155, %v1814, 0.0
        %v1849 = vsel %vm1156, %v1815, 0.0
        %v1850 = vsel %vm926, %v1848, 0.0
        %1851 = vadd.xlane.f32.xlu0 %v1850
        %v1852 = vpop.xlane.xlu0 %1851
        %v1853 = vsel %vm926, %v1849, 0.0
        %1854 = vadd.xlane.f32.xlu0 %v1853
        %v1855 = vpop.xlane.xlu0 %1854
        %v1856 = vsel %vm1169, %v1814, 0.0
        %v1857 = vsel %vm1170, %v1815, 0.0
        %v1858 = vsel %vm926, %v1856, 0.0
        %1859 = vadd.xlane.f32.xlu0 %v1858
        %v1860 = vpop.xlane.xlu0 %1859
        %v1861 = vsel %vm926, %v1857, 0.0
        %1862 = vadd.xlane.f32.xlu0 %v1861
        %v1863 = vpop.xlane.xlu0 %1862
        %v1864 = vsel %vm1183, %v1814, 0.0
        %v1865 = vsel %vm1184, %v1815, 0.0
        %v1866 = vsel %vm926, %v1864, 0.0
        %1867 = vadd.xlane.f32.xlu0 %v1866
        %v1868 = vpop.xlane.xlu0 %1867
        %v1869 = vsel %vm926, %v1865, 0.0
        %1870 = vadd.xlane.f32.xlu0 %v1869
        %v1871 = vpop.xlane.xlu0 %1870
        %v1872 = vsel %vm1197, %v1814, 0.0
        %v1873 = vsel %vm1198, %v1815, 0.0
        %v1874 = vsel %vm926, %v1872, 0.0
        %1875 = vadd.xlane.f32.xlu0 %v1874
        %v1876 = vpop.xlane.xlu0 %1875
        %v1877 = vsel %vm926, %v1873, 0.0
        %1878 = vadd.xlane.f32.xlu0 %v1877
        %v1879 = vpop.xlane.xlu0 %1878
        %v1880 = vsel %vm1211, %v1814, 0.0
        %v1881 = vsel %vm1212, %v1815, 0.0
        %v1882 = vsel %vm926, %v1880, 0.0
        %1883 = vadd.xlane.f32.xlu0 %v1882
        %v1884 = vpop.xlane.xlu0 %1883
        %v1885 = vsel %vm926, %v1881, 0.0
        %1886 = vadd.xlane.f32.xlu0 %v1885
        %v1887 = vpop.xlane.xlu0 %1886
        %v1888 = vsel %vm1321, %v1820, %v1828
        %v1889 = vsel %vm1321, %v1823, %v1831
        %v1890 = vsel %vm1324, %v1888, %v1836
        %v1891 = vsel %vm1324, %v1889, %v1839
        %v1892 = vsel %vm1327, %v1890, %v1844
        %v1893 = vsel %vm1327, %v1891, %v1847
        %v1894 = vsel %vm1330, %v1892, %v1852
        %v1895 = vsel %vm1330, %v1893, %v1855
        %v1896 = vsel %vm1333, %v1894, %v1860
        %v1897 = vsel %vm1333, %v1895, %v1863
        %v1898 = vsel %vm1336, %v1896, %v1868
        %v1899 = vsel %vm1336, %v1897, %v1871
        %v1900 = vsel %vm1339, %v1898, %v1876
        %v1901 = vsel %vm1339, %v1899, %v1879
        %v1902 = vsel %vm1342, %v1900, %v1884
        %v1903 = vsel %vm1342, %v1901, %v1887
        %v1905 = vsel %vm1345, %v1902, 0
        %v1908 = vsel %vm1345, %v1903, 0
        %1910 = vmatprep.subr.mxu0 0.0
        %1911 = vmatpush1.msra.mxu0 0.0
        %1912 = vmatprep.subr.mxu0 0.0
        %1913 = vmatpush1.msra.mxu0 0.0
        %1914 = vmatprep.subr.mxu0 0.0
        %1915 = vmatpush1.msra.mxu0 0.0
        %1916 = vmatprep.subr.mxu0 0.0
        %1917 = vmatpush1.msra.mxu0 0.0
        %1918 = vmatprep.subr.mxu0 0.0
        %1919 = vmatpush1.msra.mxu0 0.0
        %1920 = vmatprep.subr.mxu0 0.0
        %1921 = vmatpush1.msra.mxu0 0.0
        %1922 = vmatprep.subr.mxu0 0.0
        %1923 = vmatpush1.msra.mxu0 0.0
        %1924 = vmatprep.subr.mxu0 0.0
        %1925 = vmatpush1.msra.mxu0 0.0
        %1926 = vmatprep.subr.mxu0 0.0
        %1927 = vmatpush1.msra.mxu0 0.0
        %1928 = vmatprep.subr.mxu0 0.0
        %1929 = vmatpush1.msra.mxu0 0.0
        %1930 = vmatprep.subr.mxu0 0.0
        %1931 = vmatpush1.msra.mxu0 0.0
        %1932 = vmatprep.subr.mxu0 0.0
        %1933 = vmatpush1.msra.mxu0 0.0
        %1934 = vmatprep.subr.mxu0 0.0
        %1935 = vmatpush1.msra.mxu0 0.0
        %1936 = vmatprep.subr.mxu0 0.0
        %1937 = vmatpush1.msra.mxu0 0.0
        %1938 = vmatprep.subr.mxu0 0.0
        %1939 = vmatpush1.msra.mxu0 %v1354
        %1940 = vmatprep.subr.mxu0 0.0
        %1941 = vmatpush1.msra.mxu0 %v922
        %1942 = vmatprep.subr.mxu0 0.0
        %1943 = vmatpush2.msra.mxu0 0.0
        %1944 = vmatprep.subr.mxu0 0.0
        %1945 = vmatpush2.msra.mxu0 0.0
        %1946 = vmatprep.subr.mxu0 0.0
        %1947 = vmatpush2.msra.mxu0 0.0
        %1948 = vmatprep.subr.mxu0 0.0
        %1949 = vmatpush2.msra.mxu0 0.0
        %1950 = vmatprep.subr.mxu0 0.0
        %1951 = vmatpush2.msra.mxu0 0.0
        %1952 = vmatprep.subr.mxu0 0.0
        %1953 = vmatpush2.msra.mxu0 0.0
        %1954 = vmatprep.subr.mxu0 0.0
        %1955 = vmatpush2.msra.mxu0 0.0
        %1956 = vmatprep.subr.mxu0 0.0
        %1957 = vmatpush2.msra.mxu0 0.0
        %1958 = vmatprep.subr.mxu0 0.0
        %1959 = vmatpush2.msra.mxu0 0.0
        %1960 = vmatprep.subr.mxu0 0.0
        %1961 = vmatpush2.msra.mxu0 0.0
        %1962 = vmatprep.subr.mxu0 0.0
        %1963 = vmatpush2.msra.mxu0 0.0
        %1964 = vmatprep.subr.mxu0 0.0
        %1965 = vmatpush2.msra.mxu0 0.0
        %1966 = vmatprep.subr.mxu0 0.0
        %1967 = vmatpush2.msra.mxu0 0.0
        %1968 = vmatprep.subr.mxu0 0.0
        %1969 = vmatpush2.msra.mxu0 0.0
        %1970 = vmatprep.subr.mxu0 0.0
        %1971 = vmatpush2.msra.mxu0 0.0
        %1972 = vmatprep.subr.mxu0 0.0
        %1973 = vmatpush2.msra.mxu0 0.0
        %1974 = vmatprep.mubr.f32.mxu0 0.0
        %1975 = vmatmul.mubr.f32.gmra.mxu0 %v1905
        %v1976 = vpop.f32.mrf.mxu0
        %v1977 = vadd.f32 0.0, %v1976
        %v1978 = vpop.f32.mrf.mxu0
        %1979 = vmatprep.mubr.f32.mxu0 0.0
        %1980 = vmatmul.mubr.f32.gmra.mxu0 %v1908
        %v1981 = vpop.f32.mrf.mxu0
        %v1982 = vadd.f32 0.0, %v1981
        %v1983 = vpop.f32.mrf.mxu0
        %1984 = vdwg.mxu0
        %1985 = vrot.lane.b32.xlu0 %v905, 48
        %v1986 = vpop.permute.xlu0 %1985
        %1987 = vrot.lane.b32.xlu0 %v910, 48
        %v1988 = vpop.permute.xlu0 %1987
        %v1992 = vsel %vm926, %v1814, 0
        %v1995 = vsel %vm926, %v1815, 0
        %1997 = vmatprep.subr.mxu0 0.0
        %1998 = vmatpush1.msra.mxu0 0.0
        %1999 = vmatprep.subr.mxu0 0.0
        %2000 = vmatpush1.msra.mxu0 0.0
        %2001 = vmatprep.subr.mxu0 0.0
        %2002 = vmatpush1.msra.mxu0 0.0
        %2003 = vmatprep.subr.mxu0 0.0
        %2004 = vmatpush1.msra.mxu0 0.0
        %2005 = vmatprep.subr.mxu0 0.0
        %2006 = vmatpush1.msra.mxu0 0.0
        %2007 = vmatprep.subr.mxu0 0.0
        %2008 = vmatpush1.msra.mxu0 0.0
        %2009 = vmatprep.subr.mxu0 0.0
        %2010 = vmatpush1.msra.mxu0 0.0
        %2011 = vmatprep.subr.mxu0 0.0
        %2012 = vmatpush1.msra.mxu0 0.0
        %2013 = vmatprep.subr.mxu0 0.0
        %2014 = vmatpush1.msra.mxu0 0.0
        %2015 = vmatprep.subr.mxu0 0.0
        %2016 = vmatpush1.msra.mxu0 0.0
        %2017 = vmatprep.subr.mxu0 0.0
        %2018 = vmatpush1.msra.mxu0 0.0
        %2019 = vmatprep.subr.mxu0 0.0
        %2020 = vmatpush1.msra.mxu0 0.0
        %2021 = vmatprep.subr.mxu0 0.0
        %2022 = vmatpush1.msra.mxu0 0.0
        %2023 = vmatprep.subr.mxu0 0.0
        %2024 = vmatpush1.msra.mxu0 0.0
        %2025 = vmatprep.subr.mxu0 0.0
        %2026 = vmatpush1.msra.mxu0 %v1988
        %2027 = vmatprep.subr.mxu0 0.0
        %2028 = vmatpush1.msra.mxu0 %v1986
        %2029 = vmatprep.subr.mxu0 0.0
        %2030 = vmatpush2.msra.mxu0 0.0
        %2031 = vmatprep.subr.mxu0 0.0
        %2032 = vmatpush2.msra.mxu0 0.0
        %2033 = vmatprep.subr.mxu0 0.0
        %2034 = vmatpush2.msra.mxu0 0.0
        %2035 = vmatprep.subr.mxu0 0.0
        %2036 = vmatpush2.msra.mxu0 0.0
        %2037 = vmatprep.subr.mxu0 0.0
        %2038 = vmatpush2.msra.mxu0 0.0
        %2039 = vmatprep.subr.mxu0 0.0
        %2040 = vmatpush2.msra.mxu0 0.0
        %2041 = vmatprep.subr.mxu0 0.0
        %2042 = vmatpush2.msra.mxu0 0.0
        %2043 = vmatprep.subr.mxu0 0.0
        %2044 = vmatpush2.msra.mxu0 0.0
        %2045 = vmatprep.subr.mxu0 0.0
        %2046 = vmatpush2.msra.mxu0 0.0
        %2047 = vmatprep.subr.mxu0 0.0
        %2048 = vmatpush2.msra.mxu0 0.0
        %2049 = vmatprep.subr.mxu0 0.0
        %2050 = vmatpush2.msra.mxu0 0.0
        %2051 = vmatprep.subr.mxu0 0.0
        %2052 = vmatpush2.msra.mxu0 0.0
        %2053 = vmatprep.subr.mxu0 0.0
        %2054 = vmatpush2.msra.mxu0 0.0
        %2055 = vmatprep.subr.mxu0 0.0
        %2056 = vmatpush2.msra.mxu0 0.0
        %2057 = vmatprep.subr.mxu0 0.0
        %2058 = vmatpush2.msra.mxu0 0.0
        %2059 = vmatprep.subr.mxu0 0.0
        %2060 = vmatpush2.msra.mxu0 0.0
        %2061 = vmatprep.mubr.f32.mxu0 0.0
        %2062 = vmatmul.mubr.f32.gmra.mxu0 %v1992
        %v2063 = vpop.f32.mrf.mxu0
        %v2064 = vadd.f32 %v1977, %v2063
        %v2065 = vpop.f32.mrf.mxu0
        %2066 = vmatprep.mubr.f32.mxu0 0.0
        %2067 = vmatmul.mubr.f32.gmra.mxu0 %v1995
        %v2068 = vpop.f32.mrf.mxu0
        %v2069 = vadd.f32 %v1982, %v2068
        %v2070 = vpop.f32.mrf.mxu0
        %2071 = vdwg.mxu0
        %2074 = vrot.lane.b32.xlu0 %v2064, 16
        %v2075 = vpop.permute.xlu0 %2074
        %2076 = vrot.lane.b32.xlu0 %v2069, 16
        %v2077 = vpop.permute.xlu0 %2076
        %v2080 = vsel %vm926, %v1510, %v2075
        %v2081 = vsel %vm926, %v1515, %v2077
        %v2082 = vld [vmem:[%s764] sm:$0xff]
        %v2083 = vld [vmem:[%s764 + $0x8] sm:$0xff]
        %v2084 = vld [vmem:[%s764 + $0x10] sm:$0xff]
        %v2085 = vld [vmem:[%s764 + $0x18] sm:$0xff]
        %v2086 = vld [vmem:[%s767] sm:$0x1]
        %v2088 = vlaneseq
        %v2089 = vshrl.u32 %v2088, 7
        %v2090 = vsub.s32 0, %v2089
        %v2091 = vrot.slane %v2086, %v2090
        %v2094 = vsel %vm831, %v2080, 0
        %v2097 = vsel %vm831, %v2081, 0
        %2099 = vmatprep.subr.mxu0 0.0
        %2100 = vmatpush1.msra.mxu0 0.0
        %2101 = vmatprep.subr.mxu0 0.0
        %2102 = vmatpush1.msra.mxu0 0.0
        %2103 = vmatprep.subr.mxu0 0.0
        %2104 = vmatpush1.msra.mxu0 0.0
        %2105 = vmatprep.subr.mxu0 0.0
        %2106 = vmatpush1.msra.mxu0 0.0
        %2107 = vmatprep.subr.mxu0 0.0
        %2108 = vmatpush1.msra.mxu0 0.0
        %2109 = vmatprep.subr.mxu0 0.0
        %2110 = vmatpush1.msra.mxu0 0.0
        %2111 = vmatprep.subr.mxu0 0.0
        %2112 = vmatpush1.msra.mxu0 0.0
        %2113 = vmatprep.subr.mxu0 0.0
        %2114 = vmatpush1.msra.mxu0 0.0
        %2115 = vmatprep.subr.mxu0 0.0
        %2116 = vmatpush1.msra.mxu0 0.0
        %2117 = vmatprep.subr.mxu0 0.0
        %2118 = vmatpush1.msra.mxu0 0.0
        %2119 = vmatprep.subr.mxu0 0.0
        %2120 = vmatpush1.msra.mxu0 0.0
        %2121 = vmatprep.subr.mxu0 0.0
        %2122 = vmatpush1.msra.mxu0 0.0
        %2123 = vmatprep.subr.mxu0 0.0
        %2124 = vmatpush1.msra.mxu0 %v2085
        %2125 = vmatprep.subr.mxu0 0.0
        %2126 = vmatpush1.msra.mxu0 %v2084
        %2127 = vmatprep.subr.mxu0 0.0
        %2128 = vmatpush1.msra.mxu0 %v2083
        %2129 = vmatprep.subr.mxu0 0.0
        %2130 = vmatpush1.msra.mxu0 %v2082
        %2131 = vmatprep.subr.mxu0 0.0
        %2132 = vmatpush2.msra.mxu0 0.0
        %2133 = vmatprep.subr.mxu0 0.0
        %2134 = vmatpush2.msra.mxu0 0.0
        %2135 = vmatprep.subr.mxu0 0.0
        %2136 = vmatpush2.msra.mxu0 0.0
        %2137 = vmatprep.subr.mxu0 0.0
        %2138 = vmatpush2.msra.mxu0 0.0
        %2139 = vmatprep.subr.mxu0 0.0
        %2140 = vmatpush2.msra.mxu0 0.0
        %2141 = vmatprep.subr.mxu0 0.0
        %2142 = vmatpush2.msra.mxu0 0.0
        %2143 = vmatprep.subr.mxu0 0.0
        %2144 = vmatpush2.msra.mxu0 0.0
        %2145 = vmatprep.subr.mxu0 0.0
        %2146 = vmatpush2.msra.mxu0 0.0
        %2147 = vmatprep.subr.mxu0 0.0
        %2148 = vmatpush2.msra.mxu0 0.0
        %2149 = vmatprep.subr.mxu0 0.0
        %2150 = vmatpush2.msra.mxu0 0.0
        %2151 = vmatprep.subr.mxu0 0.0
        %2152 = vmatpush2.msra.mxu0 0.0
        %2153 = vmatprep.subr.mxu0 0.0
        %2154 = vmatpush2.msra.mxu0 0.0
        %2155 = vmatprep.subr.mxu0 0.0
        %2156 = vmatpush2.msra.mxu0 0.0
        %2157 = vmatprep.subr.mxu0 0.0
        %2158 = vmatpush2.msra.mxu0 0.0
        %2159 = vmatprep.subr.mxu0 0.0
        %2160 = vmatpush2.msra.mxu0 0.0
        %2161 = vmatprep.subr.mxu0 0.0
        %2162 = vmatpush2.msra.mxu0 0.0
        %2163 = vmatprep.mubr.f32.mxu0 0.0
        %2164 = vmatmul.mubr.f32.gmra.mxu0 %v2094
        %v2165 = vpop.f32.mrf.mxu0
        %v2166 = vadd.f32 %v2091, %v2165
        %v2167 = vpop.f32.mrf.mxu0
        %2168 = vmatprep.mubr.f32.mxu0 0.0
        %2169 = vmatmul.mubr.f32.gmra.mxu0 %v2097
        %v2170 = vpop.f32.mrf.mxu0
        %v2171 = vadd.f32 %v2091, %v2170
        %v2172 = vpop.f32.mrf.mxu0
        %2173 = vdwg.mxu0
        %v2174 = vadd.f32 %v818, %v2166
        %v2175 = vadd.f32 %v819, %v2171
        %v2176 = vld [vmem:[%s770] sm:$0x1]
        %v2177 = vld [vmem:[%s773] sm:$0x1]
        %v2178 = vsel %vm831, %v2174, 0.0
        %2179 = vadd.xlane.f32.xlu0 %v2178
        %v2180 = vpop.xlane.xlu0 %2179
        %v2181 = vsel %vm831, %v2175, 0.0
        %2182 = vadd.xlane.f32.xlu0 %v2181
        %v2183 = vpop.xlane.xlu0 %2182
        %v2184 = vrcp.pop 32.0
        %v2185 = vmul.f32 %v2180, %v2184
        %v2186 = vmul.f32 %v2183, %v2184
        %v2187 = vsub.f32 %v2174, %v2185
        %v2188 = vsub.f32 %v2175, %v2186
        %v2189 = vmul.f32 %v2187, %v2187
        %v2190 = vmul.f32 %v2188, %v2188
        %v2191 = vsel %vm831, %v2189, 0.0
        %2192 = vadd.xlane.f32.xlu0 %v2191
        %v2193 = vpop.xlane.xlu0 %2192
        %v2194 = vsel %vm831, %v2190, 0.0
        %2195 = vadd.xlane.f32.xlu0 %v2194
        %v2196 = vpop.xlane.xlu0 %2195
        %v2197 = vmul.f32 %v2193, %v2184
        %v2198 = vmul.f32 %v2196, %v2184
        %v2199 = vadd.f32 %v2197, 1e-05
        %v2200 = vadd.f32 %v2198, 1e-05
        %v2201 = vrsqrt.pop %v2199
        %v2202 = vrsqrt.pop %v2200
        %v2203 = vmul.f32 %v2187, %v2201
        %v2204 = vmul.f32 %v2188, %v2202
        %v2206 = vlaneseq
        %v2207 = vshrl.u32 %v2206, 7
        %v2208 = vsub.s32 0, %v2207
        %v2209 = vrot.slane %v2176, %v2208
        %v2211 = vmul.f32 %v2203, %v2209
        %v2212 = vmul.f32 %v2204, %v2209
        %v2214 = vlaneseq
        %v2215 = vshrl.u32 %v2214, 7
        %v2216 = vsub.s32 0, %v2215
        %v2217 = vrot.slane %v2177, %v2216
        %v2219 = vadd.f32 %v2211, %v2217
        %v2220 = vadd.f32 %v2212, %v2217
        %v2221 = vmul.f32 %v2219, %v805
        %v2222 = vmul.f32 %v2220, %v806
        %v2225 = vrot.slane %v2221, 7
        %v2226 = vrot.slane %v2222, 7
        %v2227 = vsel %vm1352, %v2225, %v2226
        %v2230 = vsel %vm1352, 0.0, %v2225
        %vm2231 = vcmask 1046528
        %v2232 = vrot.slane %v2221, 1
        %v2233 = vrot.slane %v2222, 1
        %v2234 = vsel %vm2231, %v2232, %v2233
        %v2236 = vsel %vm2231, %v2233, 0.0
        %2237 = vrot.lane.b32.xlu0 %v2221, 32
        %v2238 = vpop.permute.xlu0 %2237
        %2239 = vrot.lane.b32.xlu0 %v2222, 32
        %v2240 = vpop.permute.xlu0 %2239
        %2244 = vrot.lane.b32.xlu0 %v2234, 64
        %v2245 = vpop.permute.xlu0 %2244
        %2246 = vrot.lane.b32.xlu0 %v2236, 64
        %v2247 = vpop.permute.xlu0 %2246
        %v2250 = vsel %vm831, %v2230, %v2238
        %v2251 = vsel %vm831, %v2227, %v2240
        %vm2252 = vcmask 523264
        %v2253 = vsel %vm2252, %v2250, %v2245
        %v2254 = vsel %vm2252, %v2251, %v2247
        %v2255 = vld [vmem:[%s778] sm:$0xff]
        %v2256 = vld [vmem:[%s778 + $0x8] sm:$0xff]
        %v2257 = vld [vmem:[%s778 + $0x10] sm:$0xff]
        %v2258 = vld [vmem:[%s778 + $0x18] sm:$0xff]
        %v2259 = vld [vmem:[%s778 + $0x20] sm:$0xff]
        %v2260 = vld [vmem:[%s778 + $0x28] sm:$0xff]
        %v2261 = vld [vmem:[%s778 + $0x30] sm:$0xff]
        %v2262 = vld [vmem:[%s778 + $0x38] sm:$0xff]
        %v2263 = vld [vmem:[%s778 + $0x40] sm:$0xff]
        %v2264 = vld [vmem:[%s778 + $0x48] sm:$0xff]
        %v2265 = vld [vmem:[%s778 + $0x50] sm:$0xff]
        %v2266 = vld [vmem:[%s778 + $0x58] sm:$0xff]
        %v2267 = vld [vmem:[%s781] sm:$0x1]
        %v2269 = vlaneseq
        %v2270 = vshrl.u32 %v2269, 7
        %v2271 = vsub.s32 0, %v2270
        %v2272 = vrot.slane %v2267, %v2271
        %vm2274 = vcmask 785408
        %v2276 = vsel %vm2274, %v2253, 0
        %v2279 = vsel %vm2274, %v2254, 0
        %2281 = vmatprep.subr.mxu0 0.0
        %2282 = vmatpush1.msra.mxu0 0.0
        %2283 = vmatprep.subr.mxu0 0.0
        %2284 = vmatpush1.msra.mxu0 0.0
        %2285 = vmatprep.subr.mxu0 0.0
        %2286 = vmatpush1.msra.mxu0 0.0
        %2287 = vmatprep.subr.mxu0 0.0
        %2288 = vmatpush1.msra.mxu0 0.0
        %2289 = vmatprep.subr.mxu0 0.0
        %2290 = vmatpush1.msra.mxu0 %v2266
        %2291 = vmatprep.subr.mxu0 0.0
        %2292 = vmatpush1.msra.mxu0 %v2265
        %2293 = vmatprep.subr.mxu0 0.0
        %2294 = vmatpush1.msra.mxu0 %v2264
        %2295 = vmatprep.subr.mxu0 0.0
        %2296 = vmatpush1.msra.mxu0 %v2263
        %2297 = vmatprep.subr.mxu0 0.0
        %2298 = vmatpush1.msra.mxu0 %v2262
        %2299 = vmatprep.subr.mxu0 0.0
        %2300 = vmatpush1.msra.mxu0 %v2261
        %2301 = vmatprep.subr.mxu0 0.0
        %2302 = vmatpush1.msra.mxu0 %v2260
        %2303 = vmatprep.subr.mxu0 0.0
        %2304 = vmatpush1.msra.mxu0 %v2259
        %2305 = vmatprep.subr.mxu0 0.0
        %2306 = vmatpush1.msra.mxu0 %v2258
        %2307 = vmatprep.subr.mxu0 0.0
        %2308 = vmatpush1.msra.mxu0 %v2257
        %2309 = vmatprep.subr.mxu0 0.0
        %2310 = vmatpush1.msra.mxu0 %v2256
        %2311 = vmatprep.subr.mxu0 0.0
        %2312 = vmatpush1.msra.mxu0 %v2255
        %2313 = vmatprep.subr.mxu0 0.0
        %2314 = vmatpush2.msra.mxu0 0.0
        %2315 = vmatprep.subr.mxu0 0.0
        %2316 = vmatpush2.msra.mxu0 0.0
        %2317 = vmatprep.subr.mxu0 0.0
        %2318 = vmatpush2.msra.mxu0 0.0
        %2319 = vmatprep.subr.mxu0 0.0
        %2320 = vmatpush2.msra.mxu0 0.0
        %2321 = vmatprep.subr.mxu0 0.0
        %2322 = vmatpush2.msra.mxu0 0.0
        %2323 = vmatprep.subr.mxu0 0.0
        %2324 = vmatpush2.msra.mxu0 0.0
        %2325 = vmatprep.subr.mxu0 0.0
        %2326 = vmatpush2.msra.mxu0 0.0
        %2327 = vmatprep.subr.mxu0 0.0
        %2328 = vmatpush2.msra.mxu0 0.0
        %2329 = vmatprep.subr.mxu0 0.0
        %2330 = vmatpush2.msra.mxu0 0.0
        %2331 = vmatprep.subr.mxu0 0.0
        %2332 = vmatpush2.msra.mxu0 0.0
        %2333 = vmatprep.subr.mxu0 0.0
        %2334 = vmatpush2.msra.mxu0 0.0
        %2335 = vmatprep.subr.mxu0 0.0
        %2336 = vmatpush2.msra.mxu0 0.0
        %2337 = vmatprep.subr.mxu0 0.0
        %2338 = vmatpush2.msra.mxu0 0.0
        %2339 = vmatprep.subr.mxu0 0.0
        %2340 = vmatpush2.msra.mxu0 0.0
        %2341 = vmatprep.subr.mxu0 0.0
        %2342 = vmatpush2.msra.mxu0 0.0
        %2343 = vmatprep.subr.mxu0 0.0
        %2344 = vmatpush2.msra.mxu0 0.0
        %2345 = vmatprep.mubr.f32.mxu0 0.0
        %2346 = vmatmul.mubr.f32.gmra.mxu0 %v2276
        %v2347 = vpop.f32.mrf.mxu0
        %v2348 = vadd.f32 %v2272, %v2347
        %v2349 = vpop.f32.mrf.mxu0
        %2350 = vmatprep.mubr.f32.mxu0 0.0
        %2351 = vmatmul.mubr.f32.gmra.mxu0 %v2279
        %v2352 = vpop.f32.mrf.mxu0
        %v2353 = vadd.f32 %v2272, %v2352
        %v2354 = vpop.f32.mrf.mxu0
        %2355 = vdwg.mxu0
        %v2356 = vmax.f32 %v2348, 0.0
        %v2357 = vmax.f32 %v2353, 0.0
        %v2358 = vmul.f32 %v2356, %v805
        %v2359 = vmul.f32 %v2357, %v806
        %v2362 = vrot.slane %v2358, 7
        %v2363 = vrot.slane %v2359, 7
        %v2364 = vsel %vm1352, %v2362, %v2363
        %v2367 = vsel %vm1352, 0.0, %v2362
        %v2368 = vrot.slane %v2358, 1
        %v2369 = vrot.slane %v2359, 1
        %v2370 = vsel %vm2231, %v2368, %v2369
        %v2372 = vsel %vm2231, %v2369, 0.0
        %2373 = vrot.lane.b32.xlu0 %v2358, 64
        %v2374 = vpop.permute.xlu0 %2373
        %2375 = vrot.lane.b32.xlu0 %v2359, 64
        %v2376 = vpop.permute.xlu0 %2375
        %v2379 = vsel %vm2252, %v2367, %v2374
        %v2380 = vsel %vm2252, %v2364, %v2376
        %v2381 = vld [vmem:[%s786] sm:$0xff]
        %v2382 = vld [vmem:[%s786 + $0x8] sm:$0xff]
        %v2383 = vld [vmem:[%s786 + $0x10] sm:$0xff]
        %v2384 = vld [vmem:[%s786 + $0x18] sm:$0xff]
        %v2385 = vld [vmem:[%s786 + $0x20] sm:$0xff]
        %v2386 = vld [vmem:[%s786 + $0x28] sm:$0xff]
        %v2387 = vld [vmem:[%s786 + $0x30] sm:$0xff]
        %v2388 = vld [vmem:[%s786 + $0x38] sm:$0xff]
        %v2389 = vld [vmem:[%s786 + $0x40] sm:$0xff]
        %v2390 = vld [vmem:[%s786 + $0x48] sm:$0xff]
        %v2391 = vld [vmem:[%s786 + $0x50] sm:$0xff]
        %v2392 = vld [vmem:[%s786 + $0x58] sm:$0xff]
        %v2393 = vld [vmem:[%s786 + $0x60] sm:$0xff]
        %v2394 = vld [vmem:[%s786 + $0x68] sm:$0xff]
        %v2395 = vld [vmem:[%s786 + $0x70] sm:$0xff]
        %v2396 = vld [vmem:[%s786 + $0x78] sm:$0xff]
        %v2397 = vld [vmem:[%s786 + $0x80] sm:$0xff]
        %v2398 = vld [vmem:[%s786 + $0x88] sm:$0xff]
        %v2399 = vld [vmem:[%s786 + $0x90] sm:$0xff]
        %v2400 = vld [vmem:[%s786 + $0x98] sm:$0xff]
        %v2401 = vld [vmem:[%s786 + $0xa0] sm:$0xff]
        %v2402 = vld [vmem:[%s786 + $0xa8] sm:$0xff]
        %v2403 = vld [vmem:[%s786 + $0xb0] sm:$0xff]
        %v2404 = vld [vmem:[%s786 + $0xb8] sm:$0xff]
        %v2405 = vld [vmem:[%s789] sm:$0x1]
        %v2407 = vlaneseq
        %v2408 = vshrl.u32 %v2407, 7
        %v2409 = vsub.s32 0, %v2408
        %v2410 = vrot.slane %v2405, %v2409
        %v2412 = vsel %vm2252, %v2370, 0
        %v2415 = vsel %vm2252, %v2372, 0
        %2417 = vmatprep.subr.mxu0 0.0
        %2418 = vmatpush1.msra.mxu0 %v2396
        %2419 = vmatprep.subr.mxu0 0.0
        %2420 = vmatpush1.msra.mxu0 %v2395
        %2421 = vmatprep.subr.mxu0 0.0
        %2422 = vmatpush1.msra.mxu0 %v2394
        %2423 = vmatprep.subr.mxu0 0.0
        %2424 = vmatpush1.msra.mxu0 %v2393
        %2425 = vmatprep.subr.mxu0 0.0
        %2426 = vmatpush1.msra.mxu0 %v2392
        %2427 = vmatprep.subr.mxu0 0.0
        %2428 = vmatpush1.msra.mxu0 %v2391
        %2429 = vmatprep.subr.mxu0 0.0
        %2430 = vmatpush1.msra.mxu0 %v2390
        %2431 = vmatprep.subr.mxu0 0.0
        %2432 = vmatpush1.msra.mxu0 %v2389
        %2433 = vmatprep.subr.mxu0 0.0
        %2434 = vmatpush1.msra.mxu0 %v2388
        %2435 = vmatprep.subr.mxu0 0.0
        %2436 = vmatpush1.msra.mxu0 %v2387
        %2437 = vmatprep.subr.mxu0 0.0
        %2438 = vmatpush1.msra.mxu0 %v2386
        %2439 = vmatprep.subr.mxu0 0.0
        %2440 = vmatpush1.msra.mxu0 %v2385
        %2441 = vmatprep.subr.mxu0 0.0
        %2442 = vmatpush1.msra.mxu0 %v2384
        %2443 = vmatprep.subr.mxu0 0.0
        %2444 = vmatpush1.msra.mxu0 %v2383
        %2445 = vmatprep.subr.mxu0 0.0
        %2446 = vmatpush1.msra.mxu0 %v2382
        %2447 = vmatprep.subr.mxu0 0.0
        %2448 = vmatpush1.msra.mxu0 %v2381
        %2449 = vmatprep.subr.mxu0 0.0
        %2450 = vmatpush2.msra.mxu0 0.0
        %2451 = vmatprep.subr.mxu0 0.0
        %2452 = vmatpush2.msra.mxu0 0.0
        %2453 = vmatprep.subr.mxu0 0.0
        %2454 = vmatpush2.msra.mxu0 0.0
        %2455 = vmatprep.subr.mxu0 0.0
        %2456 = vmatpush2.msra.mxu0 0.0
        %2457 = vmatprep.subr.mxu0 0.0
        %2458 = vmatpush2.msra.mxu0 0.0
        %2459 = vmatprep.subr.mxu0 0.0
        %2460 = vmatpush2.msra.mxu0 0.0
        %2461 = vmatprep.subr.mxu0 0.0
        %2462 = vmatpush2.msra.mxu0 0.0
        %2463 = vmatprep.subr.mxu0 0.0
        %2464 = vmatpush2.msra.mxu0 0.0
        %2465 = vmatprep.subr.mxu0 0.0
        %2466 = vmatpush2.msra.mxu0 %v2404
        %2467 = vmatprep.subr.mxu0 0.0
        %2468 = vmatpush2.msra.mxu0 %v2403
        %2469 = vmatprep.subr.mxu0 0.0
        %2470 = vmatpush2.msra.mxu0 %v2402
        %2471 = vmatprep.subr.mxu0 0.0
        %2472 = vmatpush2.msra.mxu0 %v2401
        %2473 = vmatprep.subr.mxu0 0.0
        %2474 = vmatpush2.msra.mxu0 %v2400
        %2475 = vmatprep.subr.mxu0 0.0
        %2476 = vmatpush2.msra.mxu0 %v2399
        %2477 = vmatprep.subr.mxu0 0.0
        %2478 = vmatpush2.msra.mxu0 %v2398
        %2479 = vmatprep.subr.mxu0 0.0
        %2480 = vmatpush2.msra.mxu0 %v2397
        %2481 = vmatprep.mubr.f32.mxu0 %v2412
        %2482 = vmatmul.mubr.f32.gmra.mxu0 %v2379
        %v2483 = vpop.f32.mrf.mxu0
        %v2484 = vadd.f32 %v2410, %v2483
        %v2485 = vpop.f32.mrf.mxu0
        %2486 = vmatprep.mubr.f32.mxu0 %v2415
        %2487 = vmatmul.mubr.f32.gmra.mxu0 %v2380
        %v2488 = vpop.f32.mrf.mxu0
        %v2489 = vadd.f32 %v2410, %v2488
        %v2490 = vpop.f32.mrf.mxu0
        %2491 = vdwg.mxu0
        %v2492 = vmul.f32 %v2484, %v805
        %v2493 = vmul.f32 %v2489, %v806
        %v2494 = vadd.f32 %v2219, %v2492
        %v2495 = vadd.f32 %v2220, %v2493
        %v2496 = vld [vmem:[%s792] sm:$0x1]
        %v2497 = vld [vmem:[%s795] sm:$0x1]
        %v2498 = vsel %vm831, %v2494, 0.0
        %2499 = vadd.xlane.f32.xlu0 %v2498
        %v2500 = vpop.xlane.xlu0 %2499
        %v2501 = vsel %vm831, %v2495, 0.0
        %2502 = vadd.xlane.f32.xlu0 %v2501
        %v2503 = vpop.xlane.xlu0 %2502
        %v2504 = vmul.f32 %v2500, %v2184
        %v2505 = vmul.f32 %v2503, %v2184
        %v2506 = vsub.f32 %v2494, %v2504
        %v2507 = vsub.f32 %v2495, %v2505
        %v2508 = vmul.f32 %v2506, %v2506
        %v2509 = vmul.f32 %v2507, %v2507
        %v2510 = vsel %vm831, %v2508, 0.0
        %2511 = vadd.xlane.f32.xlu0 %v2510
        %v2512 = vpop.xlane.xlu0 %2511
        %v2513 = vsel %vm831, %v2509, 0.0
        %2514 = vadd.xlane.f32.xlu0 %v2513
        %v2515 = vpop.xlane.xlu0 %2514
        %v2516 = vmul.f32 %v2512, %v2184
        %v2517 = vmul.f32 %v2515, %v2184
        %v2518 = vadd.f32 %v2516, 1e-05
        %v2519 = vadd.f32 %v2517, 1e-05
        %v2520 = vrsqrt.pop %v2518
        %v2521 = vrsqrt.pop %v2519
        %v2522 = vmul.f32 %v2506, %v2520
        %v2523 = vmul.f32 %v2507, %v2521
        %v2525 = vlaneseq
        %v2526 = vshrl.u32 %v2525, 7
        %v2527 = vsub.s32 0, %v2526
        %v2528 = vrot.slane %v2496, %v2527
        %v2530 = vmul.f32 %v2522, %v2528
        %v2531 = vmul.f32 %v2523, %v2528
        %v2533 = vlaneseq
        %v2534 = vshrl.u32 %v2533, 7
        %v2535 = vsub.s32 0, %v2534
        %v2536 = vrot.slane %v2497, %v2535
        %v2538 = vadd.f32 %v2530, %v2536
        %v2539 = vadd.f32 %v2531, %v2536
        %2540 = vst.msk [vmem:[#allocation2] sm:$0xff] %vm831, %v2538
        %2541 = vst.msk [vmem:[#allocation2 + $0x8] sm:$0xff] %vm831, %v2539
        %p2542 = scmp.eq.s32.totalorder %s48, 1
        // Predicated region
        $region93: #{tpu_custom_call.1} parent=87 // pred_check
          %p2543 = pneg %p2542
        $region94: #{tpu_custom_call.1} parent=87 // pred_check_branch
          %2545 = sbr.rel (%p2543) target = $region96
        $region95: #{tpu_custom_call.1} parent=87 // pred_region
          %v2546 = vmul.f32 %v2538, %v805
          %v2547 = vmul.f32 %v2539, %v806
          %2548 = vst.msk [vmem:[%s739] sm:$0xff] %vm831, %v2546
          %2549 = vst.msk [vmem:[%s739 + $0x8] sm:$0xff] %vm831, %v2547
          %v2550 = vld [vmem:[%s16] sm:$0xff]
          %v2551 = vld [vmem:[%s16 + $0x8] sm:$0xff]
          %v2552 = vld [vmem:[%s16 + $0x10] sm:$0xff]
          %v2553 = vld [vmem:[%s16 + $0x18] sm:$0xff]
          %v2554 = vld [vmem:[%s17] sm:$0x1]
          %v2556 = vlaneseq
          %v2557 = vshrl.u32 %v2556, 7
          %v2558 = vsub.s32 0, %v2557
          %v2559 = vrot.slane %v2554, %v2558
          %v2562 = vsel %vm831, %v2546, 0
          %v2565 = vsel %vm831, %v2547, 0
          %2567 = vmatprep.subr.mxu0 0.0
          %2568 = vmatpush1.msra.mxu0 0.0
          %2569 = vmatprep.subr.mxu0 0.0
          %2570 = vmatpush1.msra.mxu0 0.0
          %2571 = vmatprep.subr.mxu0 0.0
          %2572 = vmatpush1.msra.mxu0 0.0
          %2573 = vmatprep.subr.mxu0 0.0
          %2574 = vmatpush1.msra.mxu0 0.0
          %2575 = vmatprep.subr.mxu0 0.0
          %2576 = vmatpush1.msra.mxu0 0.0
          %2577 = vmatprep.subr.mxu0 0.0
          %2578 = vmatpush1.msra.mxu0 0.0
          %2579 = vmatprep.subr.mxu0 0.0
          %2580 = vmatpush1.msra.mxu0 0.0
          %2581 = vmatprep.subr.mxu0 0.0
          %2582 = vmatpush1.msra.mxu0 0.0
          %2583 = vmatprep.subr.mxu0 0.0
          %2584 = vmatpush1.msra.mxu0 0.0
          %2585 = vmatprep.subr.mxu0 0.0
          %2586 = vmatpush1.msra.mxu0 0.0
          %2587 = vmatprep.subr.mxu0 0.0
          %2588 = vmatpush1.msra.mxu0 0.0
          %2589 = vmatprep.subr.mxu0 0.0
          %2590 = vmatpush1.msra.mxu0 0.0
          %2591 = vmatprep.subr.mxu0 0.0
          %2592 = vmatpush1.msra.mxu0 %v2553
          %2593 = vmatprep.subr.mxu0 0.0
          %2594 = vmatpush1.msra.mxu0 %v2552
          %2595 = vmatprep.subr.mxu0 0.0
          %2596 = vmatpush1.msra.mxu0 %v2551
          %2597 = vmatprep.subr.mxu0 0.0
          %2598 = vmatpush1.msra.mxu0 %v2550
          %2599 = vmatprep.subr.mxu0 0.0
          %2600 = vmatpush2.msra.mxu0 0.0
          %2601 = vmatprep.subr.mxu0 0.0
          %2602 = vmatpush2.msra.mxu0 0.0
          %2603 = vmatprep.subr.mxu0 0.0
          %2604 = vmatpush2.msra.mxu0 0.0
          %2605 = vmatprep.subr.mxu0 0.0
          %2606 = vmatpush2.msra.mxu0 0.0
          %2607 = vmatprep.subr.mxu0 0.0
          %2608 = vmatpush2.msra.mxu0 0.0
          %2609 = vmatprep.subr.mxu0 0.0
          %2610 = vmatpush2.msra.mxu0 0.0
          %2611 = vmatprep.subr.mxu0 0.0
          %2612 = vmatpush2.msra.mxu0 0.0
          %2613 = vmatprep.subr.mxu0 0.0
          %2614 = vmatpush2.msra.mxu0 0.0
          %2615 = vmatprep.subr.mxu0 0.0
          %2616 = vmatpush2.msra.mxu0 0.0
          %2617 = vmatprep.subr.mxu0 0.0
          %2618 = vmatpush2.msra.mxu0 0.0
          %2619 = vmatprep.subr.mxu0 0.0
          %2620 = vmatpush2.msra.mxu0 0.0
          %2621 = vmatprep.subr.mxu0 0.0
          %2622 = vmatpush2.msra.mxu0 0.0
          %2623 = vmatprep.subr.mxu0 0.0
          %2624 = vmatpush2.msra.mxu0 0.0
          %2625 = vmatprep.subr.mxu0 0.0
          %2626 = vmatpush2.msra.mxu0 0.0
          %2627 = vmatprep.subr.mxu0 0.0
          %2628 = vmatpush2.msra.mxu0 0.0
          %2629 = vmatprep.subr.mxu0 0.0
          %2630 = vmatpush2.msra.mxu0 0.0
          %2631 = vmatprep.mubr.f32.mxu0 0.0
          %2632 = vmatmul.mubr.f32.gmra.mxu0 %v2562
          %v2633 = vpop.f32.mrf.mxu0
          %v2634 = vadd.f32 %v2559, %v2633
          %v2635 = vpop.f32.mrf.mxu0
          %2636 = vmatprep.mubr.f32.mxu0 0.0
          %2637 = vmatmul.mubr.f32.gmra.mxu0 %v2565
          %v2638 = vpop.f32.mrf.mxu0
          %v2639 = vadd.f32 %v2559, %v2638
          %v2640 = vpop.f32.mrf.mxu0
          %2641 = vdwg.mxu0
          %v2642 = vmul.f32 %v2634, %v805
          %v2643 = vmul.f32 %v2639, %v806
          %2644 = vst.msk [vmem:[%s746] sm:$0xff] %vm831, %v2642
          %2645 = vst.msk [vmem:[%s746 + $0x8] sm:$0xff] %vm831, %v2643
        $region96: #{tpu_custom_call.1} parent=87 // pred_fallthru
          _
        %s2646 = sand.u32 %s485, 1
        %s2647 = scalar_lea.sflag [#allocation6], %s2646
        %s2648 = sand.u32 %s485, 1
        %s2649 = smul.addr %s2648, 16
        %s2650 = scalar_lea.vmem [#allocation5], %s2649
        %s2651 = sand.u32 %s511, 1
        %s2652 = scalar_lea.sflag [#allocation8], %s2651
        %s2653 = sand.u32 %s511, 1
        %s2654 = smul.addr %s2653, 16
        %s2655 = scalar_lea.vmem [#allocation7], %s2654
        // Predicated region
        $region97: #{tpu_custom_call.1} parent=87 // pred_check
          %p2656 = pneg %p495
        $region98: #{tpu_custom_call.1} parent=87 // pred_check_branch
          %2658 = sbr.rel (%p2656) target = $region100
        $region99: #{tpu_custom_call.1} parent=87 // pred_region
          %s2660 = ssub.s32 256, 256
          %2661 = vsyncadd %s2647, %s2660
          %s2662 = smul.addr %s47, 2
          %s2663 = smul.addr %s2662, 128
          %s2664 = scalar_lea.hbm %s18, %s2663
          %s2665 = sshll.u32 %s2650, 4
          %s2666 = int_to_ptr.vmem [resolvable:$true] %s2665
          %2671 = dma.vmem_to_hbm [thread:$0]  %s2666, 256, %s2664, %s2647, 128, 128, 8
        $region100: #{tpu_custom_call.1} parent=87 // pred_fallthru
          _
        // Predicated region
        $region101: #{tpu_custom_call.1} parent=87 // pred_check
          %p2672 = pneg %p521
        $region102: #{tpu_custom_call.1} parent=87 // pred_check_branch
          %2674 = sbr.rel (%p2672) target = $region104
        $region103: #{tpu_custom_call.1} parent=87 // pred_region
          %s2676 = ssub.s32 256, 256
          %2677 = vsyncadd %s2652, %s2676
          %s2678 = smul.addr %s47, 2
          %s2679 = smul.addr %s2678, 128
          %s2680 = scalar_lea.hbm %s19, %s2679
          %s2681 = sshll.u32 %s2655, 4
          %s2682 = int_to_ptr.vmem [resolvable:$true] %s2681
          %2687 = dma.vmem_to_hbm [thread:$0]  %s2682, 256, %s2680, %s2652, 128, 128, 8
        $region104: #{tpu_custom_call.1} parent=87 // pred_fallthru
          _
      $region88: #{tpu_custom_call.1} parent=5 // pred_fallthru
        _
      %p2688 = scmp.le.s32.totalorder 2, %s38
      // Predicated region
      $region105: #{tpu_custom_call.1} parent=5 // pred_check
        %p2689 = pneg %p2688
      $region106: #{tpu_custom_call.1} parent=5 // pred_check_branch
        %2691 = sbr.rel (%p2689) target = $region108
      $region107: #{tpu_custom_call.1} parent=5 // pred_region
        %s2692 = ssub.s32 %s38, 2
        // Predicated region
        $region109: #{tpu_custom_call.1} parent=107 // pred_check
          %p2693 = pneg %p501
        $region110: #{tpu_custom_call.1} parent=107 // pred_check_branch
          %2695 = sbr.rel (%p2693) target = $region112
        $region111: #{tpu_custom_call.1} parent=107 // pred_region
          %s2696 = sand.u32 %s486, 1
          %s2697 = scalar_lea.sflag [#allocation6], %s2696
          %s2698 = sand.u32 %s486, 1
          %s2699 = smul.addr %s2698, 16
          %s2700 = scalar_lea.vmem [#allocation5], %s2699
          %2701 = dma.done %s2697, 256
        $region112: #{tpu_custom_call.1} parent=107 // pred_fallthru
          _
        // Predicated region
        $region113: #{tpu_custom_call.1} parent=107 // pred_check
          %p2702 = pneg %p527
        $region114: #{tpu_custom_call.1} parent=107 // pred_check_branch
          %2704 = sbr.rel (%p2702) target = $region116
        $region115: #{tpu_custom_call.1} parent=107 // pred_region
          %s2705 = sand.u32 %s512, 1
          %s2706 = scalar_lea.sflag [#allocation8], %s2705
          %s2707 = sand.u32 %s512, 1
          %s2708 = smul.addr %s2707, 16
          %s2709 = scalar_lea.vmem [#allocation7], %s2708
          %2710 = dma.done %s2706, 256
        $region116: #{tpu_custom_call.1} parent=107 // pred_fallthru
          _
      $region108: #{tpu_custom_call.1} parent=5 // pred_fallthru
        _
    $region6: #{tpu_custom_call.1} parent=1 // loop_footer
      %s42 = sadd.s32 1, %s38
    $region7: #{tpu_custom_call.1} parent=1 // loop_footer_branch
      %37 = sbr.rel target = $region3
    $region8: #{tpu_custom_call.1} parent=1 // loop_exit
      _
    %2711 = vsyncpa [#allocation6], 1
    %s2712 = scalar_lea.sflag [#allocation6], 1
    %2713 = vsyncpa %s2712, 1
    %2714 = vsyncpa [#allocation8], 1
    %s2715 = scalar_lea.sflag [#allocation8], 1
    %2716 = vsyncpa %s2715, 1

</llo_original>
